<compile_context>
chip_gen: v6e
topology: v6e:2x2x1
jax: 0.10.0
libtpu: 0.0.40
codegen_flags: <defaults>
</compile_context>

<pallas_src>
import functools
import math

import jax
import jax.numpy as jnp
from jax.experimental import pallas as pl
from jax.experimental.pallas import tpu as pltpu


def _self_attention_wide_kernel(x_ref, wq_ref, wk_ref, wv_ref, wu_ref, bu_ref,
                                o_ref, *, heads: int, block_b: int, t: int,
                                k: int):
    """One block of `block_b` batch elements per grid step.

    x_ref        : (block_b*T, K)  packed input rows (batch-major)
    wq/wk/wv_ref : (H, K, K)       head-major projection weights (in, out);
                                   softmax scale 1/sqrt(K) folded into Wq
    wu_ref       : (H, K, K)       head-major unify weight (in-per-head, out)
    bu_ref       : (1, K)          unify bias
    o_ref        : (block_b*T, K)  output rows
    """
    m = block_b * t
    x = x_ref[...]                      # (M, K) float32
    bias = bu_ref[...]                  # (1, K) — read/broadcast once, hoisted

    acc = jnp.zeros((m, k), dtype=jnp.float32)

    # Static loop over heads.  All weight indexing is along the leading axis
    # (free); row reshapes split sublanes at multiples of the 8-row tile.
    for h in range(heads):
        # Projections over the whole packed row block (M rows on the MXU).
        qh = jnp.dot(x, wq_ref[h], preferred_element_type=jnp.float32)  # (M,K)
        kh = jnp.dot(x, wk_ref[h], preferred_element_type=jnp.float32)
        vh = jnp.dot(x, wv_ref[h], preferred_element_type=jnp.float32)

        q3 = qh.reshape(block_b, t, k)
        k3 = kh.reshape(block_b, t, k)
        v3 = vh.reshape(block_b, t, k)

        # Batched scaled-dot-product attention across the block's batches.
        dots = jnp.einsum("btd,bsd->bts", q3, k3,
                          preferred_element_type=jnp.float32)   # (BB, T, T)
        dots = dots - jnp.max(dots, axis=-1, keepdims=True)
        p = jnp.exp(dots)
        p = p * pl.reciprocal(jnp.sum(p, axis=-1, keepdims=True), approx=True)

        out_h = jnp.einsum("bts,bsd->btd", p, v3,
                           preferred_element_type=jnp.float32)  # (BB, T, K)

        # unifyheads(concat_h out_h) == sum_h out_h @ Wu[h]  (leading-axis
        # indexed, no lane-offset slices / concat scratch).
        acc = acc + jnp.dot(out_h.reshape(m, k), wu_ref[h],
                            preferred_element_type=jnp.float32)

    o_ref[...] = (acc + bias).astype(o_ref.dtype)


def _pick_block_b(b: int, t: int, target_rows: int = 256) -> int:
    """Largest divisor of b whose row slab block_b*t is close to target_rows."""
    bb = max(1, min(b, target_rows // max(t, 1)))
    while b % bb != 0:
        bb -= 1
    return bb


def self_attention_wide(x, wq, wk, wv, wu, bu, *, heads: int,
                        block_b: int | None = None):
    """x: (B, T, K) float32.

    wq/wk/wv: (K, H*K) pre-transposed projection weights (y = x @ W).
    wu: (H*K, K) pre-transposed unify weight; bu: (1, K) bias.
    """
    b, t, k = x.shape
    hk = heads * k
    assert wq.shape == (k, hk) and wk.shape == (k, hk) and wv.shape == (k, hk)
    assert wu.shape == (hk, k) and bu.shape == (1, k)

    if block_b is None:
        block_b = _pick_block_b(b, t)
    assert b % block_b == 0
    m = block_b * t
    grid = b // block_b
    # BlockSpec (8,128) rule: row blocks must be sublane aligned unless a
    # single block covers the whole array.
    assert (m % 8 == 0) or (grid == 1)

    # Head-major weight layouts so the kernel indexes heads on the leading
    # axis (no 32-lane-offset slices).  Fold the full softmax scale 1/sqrt(K)
    # into Wq here, once.
    scale = 1.0 / math.sqrt(float(k))
    wq_hm = (wq * scale).reshape(k, heads, k).transpose(1, 0, 2)  # (H, K, K)
    wk_hm = wk.reshape(k, heads, k).transpose(1, 0, 2)            # (H, K, K)
    wv_hm = wv.reshape(k, heads, k).transpose(1, 0, 2)            # (H, K, K)
    wu_hm = wu.reshape(heads, k, k)                               # (H, K, K)

    x_rows = x.reshape(b * t, k)

    kernel = functools.partial(_self_attention_wide_kernel, heads=heads,
                               block_b=block_b, t=t, k=k)

    out_rows = pl.pallas_call(
        kernel,
        out_shape=jax.ShapeDtypeStruct((b * t, k), x.dtype),
        grid_spec=pltpu.PrefetchScalarGridSpec(
            num_scalar_prefetch=0,
            grid=(grid,),
            in_specs=[
                pl.BlockSpec((m, k), lambda i: (i, 0)),            # x row slab
                pl.BlockSpec((heads, k, k), lambda i: (0, 0, 0)),  # Wq (scaled)
                pl.BlockSpec((heads, k, k), lambda i: (0, 0, 0)),  # Wk
                pl.BlockSpec((heads, k, k), lambda i: (0, 0, 0)),  # Wv
                pl.BlockSpec((heads, k, k), lambda i: (0, 0, 0)),  # Wu
                pl.BlockSpec((1, k), lambda i: (0, 0)),            # bias
            ],
            out_specs=pl.BlockSpec((m, k), lambda i: (i, 0)),
        ),
        compiler_params=pltpu.CompilerParams(
            dimension_semantics=("parallel",),
            vmem_limit_bytes=32 * 1024 * 1024,
        ),
    )(x_rows, wq_hm, wk_hm, wv_hm, wu_hm, bu)

    return out_rows.reshape(b, t, k)


def self_attention_wide_ref(x, wq, wk, wv, wu, bu, *, heads: int):
    """Pure-JAX reference mirroring the PyTorch forward exactly."""
    b, t, k = x.shape
    h = heads
    q = (x @ wq).reshape(b, t, h, k).transpose(0, 2, 1, 3).reshape(b * h, t, k)
    kk = (x @ wk).reshape(b, t, h, k).transpose(0, 2, 1, 3).reshape(b * h, t, k)
    v = (x @ wv).reshape(b, t, h, k).transpose(0, 2, 1, 3).reshape(b * h, t, k)
    q = q / (k ** 0.25)
    kk = kk / (k ** 0.25)
    dots = jnp.einsum("btd,bsd->bts", q, kk)
    p = jax.nn.softmax(dots, axis=2)
    out = jnp.einsum("bts,bsd->btd", p, v).reshape(b, h, t, k)
    final = out.transpose(0, 2, 1, 3).reshape(b, t, h * k)
    return final @ wu + bu[0]


if __name__ == "__main__":
    # Small shapes consistent with the module: b=2, t=8, k=32, heads=8.
    B, T, K, HEADS = 2, 8, 32, 8
    HK = HEADS * K

    key = jax.random.PRNGKey(0)
    kx, kq, kk_, kv, ku, kb = jax.random.split(key, 6)

    x = jax.random.normal(kx, (B, T, K), dtype=jnp.float32)
    # Deterministic parameter init (uniform, roughly PyTorch Linear scale).
    bound_proj = 1.0 / (K ** 0.5)
    bound_unif = 1.0 / (HK ** 0.5)
    wq = jax.random.uniform(kq, (K, HK), jnp.float32, -bound_proj, bound_proj)
    wk = jax.random.uniform(kk_, (K, HK), jnp.float32, -bound_proj, bound_proj)
    wv = jax.random.uniform(kv, (K, HK), jnp.float32, -bound_proj, bound_proj)
    wu = jax.random.uniform(ku, (HK, K), jnp.float32, -bound_unif, bound_unif)
    bu = jax.random.uniform(kb, (1, K), jnp.float32, -bound_unif, bound_unif)

    out = self_attention_wide(x, wq, wk, wv, wu, bu, heads=HEADS)
    out = jax.block_until_ready(out)

    ref = self_attention_wide_ref(x, wq, wk, wv, wu, bu, heads=HEADS)
    assert out.shape == (B, T, K)
    # approx=True softmax reciprocal -> slightly looser tolerance than 1e-4.
    assert jnp.allclose(out, ref, atol=2e-3, rtol=2e-3), "mismatch vs reference"

    print("KERNEL_OK")
</pallas_src>

<mosaic_0001>
module attributes {stable_mosaic.version = 11 : i64} {
  func.func @_self_attention_wide_kernel(%arg0: i32, %arg1: memref<16x32xf32, #tpu.memory_space<vmem>>, %arg2: memref<8x32x32xf32, #tpu.memory_space<vmem>>, %arg3: memref<8x32x32xf32, #tpu.memory_space<vmem>>, %arg4: memref<8x32x32xf32, #tpu.memory_space<vmem>>, %arg5: memref<8x32x32xf32, #tpu.memory_space<vmem>>, %arg6: memref<1x32xf32, #tpu.memory_space<vmem>>, %arg7: memref<16x32xf32, #tpu.memory_space<vmem>>) attributes {dimension_semantics = [#tpu.dimension_semantics<parallel>], iteration_bounds = array<i64: 1>, scalar_prefetch = 0 : i64, scratch_operands = 0 : i64, tpu.core_type = #tpu.core_type<tc>, window_params = [{transform_indices = @transform_0, window_bounds = array<i64: 16, 32>}, {pipeline_mode = #tpu.pipeline_mode<synchronous>, transform_indices = @transform_1, window_bounds = array<i64: 8, 32, 32>}, {pipeline_mode = #tpu.pipeline_mode<synchronous>, transform_indices = @transform_2, window_bounds = array<i64: 8, 32, 32>}, {pipeline_mode = #tpu.pipeline_mode<synchronous>, transform_indices = @transform_3, window_bounds = array<i64: 8, 32, 32>}, {pipeline_mode = #tpu.pipeline_mode<synchronous>, transform_indices = @transform_4, window_bounds = array<i64: 8, 32, 32>}, {pipeline_mode = #tpu.pipeline_mode<synchronous>, transform_indices = @transform_5, window_bounds = array<i64: 1, 32>}, {transform_indices = @transform_6, window_bounds = array<i64: 16, 32>}]} {
    %c0 = arith.constant 0 : index
    %c0_0 = arith.constant 0 : index
    %0 = vector.load %arg1[%c0, %c0_0] : memref<16x32xf32, #tpu.memory_space<vmem>>, vector<16x32xf32>
    %c0_1 = arith.constant 0 : index
    %c0_2 = arith.constant 0 : index
    %1 = vector.load %arg6[%c0_1, %c0_2] : memref<1x32xf32, #tpu.memory_space<vmem>>, vector<1x32xf32>
    %cst = arith.constant 0.000000e+00 : f32
    %2 = vector.broadcast %cst : f32 to vector<16x32xf32>
    %c0_3 = arith.constant 0 : index
    %c0_4 = arith.constant 0 : index
    %c0_5 = arith.constant 0 : index
    %3 = vector.load %arg2[%c0_3, %c0_4, %c0_5] : memref<8x32x32xf32, #tpu.memory_space<vmem>>, vector<1x32x32xf32>
    %4 = vector.shape_cast %3 : vector<1x32x32xf32> to vector<32x32xf32>
    %cst_6 = arith.constant dense<0.000000e+00> : vector<16x32xf32>
    %5 = tpu.matmul %0, %4, %cst_6 {dimension_numbers = #tpu.dot_dimension_numbers<[1], [0], [0], [1], [0, 0, 1, 1], [], []>} : vector<16x32xf32>, vector<32x32xf32>, vector<16x32xf32> -> vector<16x32xf32>
    %c0_7 = arith.constant 0 : index
    %c0_8 = arith.constant 0 : index
    %c0_9 = arith.constant 0 : index
    %6 = vector.load %arg3[%c0_7, %c0_8, %c0_9] : memref<8x32x32xf32, #tpu.memory_space<vmem>>, vector<1x32x32xf32>
    %7 = vector.shape_cast %6 : vector<1x32x32xf32> to vector<32x32xf32>
    %cst_10 = arith.constant dense<0.000000e+00> : vector<16x32xf32>
    %8 = tpu.matmul %0, %7, %cst_10 {dimension_numbers = #tpu.dot_dimension_numbers<[1], [0], [0], [1], [0, 0, 1, 1], [], []>} : vector<16x32xf32>, vector<32x32xf32>, vector<16x32xf32> -> vector<16x32xf32>
    %c0_11 = arith.constant 0 : index
    %c0_12 = arith.constant 0 : index
    %c0_13 = arith.constant 0 : index
    %9 = vector.load %arg4[%c0_11, %c0_12, %c0_13] : memref<8x32x32xf32, #tpu.memory_space<vmem>>, vector<1x32x32xf32>
    %10 = vector.shape_cast %9 : vector<1x32x32xf32> to vector<32x32xf32>
    %cst_14 = arith.constant dense<0.000000e+00> : vector<16x32xf32>
    %11 = tpu.matmul %0, %10, %cst_14 {dimension_numbers = #tpu.dot_dimension_numbers<[1], [0], [0], [1], [0, 0, 1, 1], [], []>} : vector<16x32xf32>, vector<32x32xf32>, vector<16x32xf32> -> vector<16x32xf32>
    %12 = vector.shape_cast %5 : vector<16x32xf32> to vector<2x8x32xf32>
    %13 = vector.shape_cast %8 : vector<16x32xf32> to vector<2x8x32xf32>
    %14 = vector.shape_cast %11 : vector<16x32xf32> to vector<2x8x32xf32>
    "tpu.trace_start"() <{level = 10 : i32, message = "btd,bsd->bts"}> : () -> ()
    %cst_15 = arith.constant dense<0.000000e+00> : vector<2x8x8xf32>
    %15 = tpu.matmul %12, %13, %cst_15 {dimension_numbers = #tpu.dot_dimension_numbers<[2], [2], [1], [1], [0, 0, 0, 1, 1, 1], [0], [0]>} : vector<2x8x32xf32>, vector<2x8x32xf32>, vector<2x8x8xf32> -> vector<2x8x8xf32>
    "tpu.trace_stop"() : () -> ()
    %cst_16 = arith.constant dense<0xFF800000> : vector<2x8xf32>
    %16 = vector.multi_reduction <maximumf>, %15, %cst_16 [2] : vector<2x8x8xf32> to vector<2x8xf32>
    %17 = vector.shape_cast %16 : vector<2x8xf32> to vector<2x8x1xf32>
    %18 = vector.broadcast %17 : vector<2x8x1xf32> to vector<2x8x8xf32>
    %19 = arith.subf %15, %18 : vector<2x8x8xf32>
    %20 = math.exp %19 : vector<2x8x8xf32>
    %cst_17 = arith.constant dense<0.000000e+00> : vector<2x8xf32>
    %21 = vector.multi_reduction <add>, %20, %cst_17 [2] : vector<2x8x8xf32> to vector<2x8xf32>
    %22 = vector.shape_cast %21 : vector<2x8xf32> to vector<2x8x1xf32>
    %23 = tpu.reciprocal %22 {approx = true} : vector<2x8x1xf32> -> vector<2x8x1xf32>
    %24 = vector.broadcast %23 : vector<2x8x1xf32> to vector<2x8x8xf32>
    %25 = arith.mulf %20, %24 : vector<2x8x8xf32>
    "tpu.trace_start"() <{level = 10 : i32, message = "bts,bsd->btd"}> : () -> ()
    %cst_18 = arith.constant dense<0.000000e+00> : vector<2x8x32xf32>
    %26 = tpu.matmul %25, %14, %cst_18 {dimension_numbers = #tpu.dot_dimension_numbers<[2], [1], [1], [2], [0, 0, 0, 1, 1, 2], [0], [0]>} : vector<2x8x8xf32>, vector<2x8x32xf32>, vector<2x8x32xf32> -> vector<2x8x32xf32>
    "tpu.trace_stop"() : () -> ()
    %27 = vector.shape_cast %26 : vector<2x8x32xf32> to vector<16x32xf32>
    %c0_19 = arith.constant 0 : index
    %c0_20 = arith.constant 0 : index
    %c0_21 = arith.constant 0 : index
    %28 = vector.load %arg5[%c0_19, %c0_20, %c0_21] : memref<8x32x32xf32, #tpu.memory_space<vmem>>, vector<1x32x32xf32>
    %29 = vector.shape_cast %28 : vector<1x32x32xf32> to vector<32x32xf32>
    %cst_22 = arith.constant dense<0.000000e+00> : vector<16x32xf32>
    %30 = tpu.matmul %27, %29, %cst_22 {dimension_numbers = #tpu.dot_dimension_numbers<[1], [0], [0], [1], [0, 0, 1, 1], [], []>} : vector<16x32xf32>, vector<32x32xf32>, vector<16x32xf32> -> vector<16x32xf32>
    %31 = arith.addf %2, %30 : vector<16x32xf32>
    %c1 = arith.constant 1 : index
    %c0_23 = arith.constant 0 : index
    %c0_24 = arith.constant 0 : index
    %32 = vector.load %arg2[%c1, %c0_23, %c0_24] : memref<8x32x32xf32, #tpu.memory_space<vmem>>, vector<1x32x32xf32>
    %33 = vector.shape_cast %32 : vector<1x32x32xf32> to vector<32x32xf32>
    %cst_25 = arith.constant dense<0.000000e+00> : vector<16x32xf32>
    %34 = tpu.matmul %0, %33, %cst_25 {dimension_numbers = #tpu.dot_dimension_numbers<[1], [0], [0], [1], [0, 0, 1, 1], [], []>} : vector<16x32xf32>, vector<32x32xf32>, vector<16x32xf32> -> vector<16x32xf32>
    %c1_26 = arith.constant 1 : index
    %c0_27 = arith.constant 0 : index
    %c0_28 = arith.constant 0 : index
    %35 = vector.load %arg3[%c1_26, %c0_27, %c0_28] : memref<8x32x32xf32, #tpu.memory_space<vmem>>, vector<1x32x32xf32>
    %36 = vector.shape_cast %35 : vector<1x32x32xf32> to vector<32x32xf32>
    %cst_29 = arith.constant dense<0.000000e+00> : vector<16x32xf32>
    %37 = tpu.matmul %0, %36, %cst_29 {dimension_numbers = #tpu.dot_dimension_numbers<[1], [0], [0], [1], [0, 0, 1, 1], [], []>} : vector<16x32xf32>, vector<32x32xf32>, vector<16x32xf32> -> vector<16x32xf32>
    %c1_30 = arith.constant 1 : index
    %c0_31 = arith.constant 0 : index
    %c0_32 = arith.constant 0 : index
    %38 = vector.load %arg4[%c1_30, %c0_31, %c0_32] : memref<8x32x32xf32, #tpu.memory_space<vmem>>, vector<1x32x32xf32>
    %39 = vector.shape_cast %38 : vector<1x32x32xf32> to vector<32x32xf32>
    %cst_33 = arith.constant dense<0.000000e+00> : vector<16x32xf32>
    %40 = tpu.matmul %0, %39, %cst_33 {dimension_numbers = #tpu.dot_dimension_numbers<[1], [0], [0], [1], [0, 0, 1, 1], [], []>} : vector<16x32xf32>, vector<32x32xf32>, vector<16x32xf32> -> vector<16x32xf32>
    %41 = vector.shape_cast %34 : vector<16x32xf32> to vector<2x8x32xf32>
    %42 = vector.shape_cast %37 : vector<16x32xf32> to vector<2x8x32xf32>
    %43 = vector.shape_cast %40 : vector<16x32xf32> to vector<2x8x32xf32>
    "tpu.trace_start"() <{level = 10 : i32, message = "btd,bsd->bts"}> : () -> ()
    %cst_34 = arith.constant dense<0.000000e+00> : vector<2x8x8xf32>
    %44 = tpu.matmul %41, %42, %cst_34 {dimension_numbers = #tpu.dot_dimension_numbers<[2], [2], [1], [1], [0, 0, 0, 1, 1, 1], [0], [0]>} : vector<2x8x32xf32>, vector<2x8x32xf32>, vector<2x8x8xf32> -> vector<2x8x8xf32>
    "tpu.trace_stop"() : () -> ()
    %cst_35 = arith.constant dense<0xFF800000> : vector<2x8xf32>
    %45 = vector.multi_reduction <maximumf>, %44, %cst_35 [2] : vector<2x8x8xf32> to vector<2x8xf32>
    %46 = vector.shape_cast %45 : vector<2x8xf32> to vector<2x8x1xf32>
    %47 = vector.broadcast %46 : vector<2x8x1xf32> to vector<2x8x8xf32>
    %48 = arith.subf %44, %47 : vector<2x8x8xf32>
    %49 = math.exp %48 : vector<2x8x8xf32>
    %cst_36 = arith.constant dense<0.000000e+00> : vector<2x8xf32>
    %50 = vector.multi_reduction <add>, %49, %cst_36 [2] : vector<2x8x8xf32> to vector<2x8xf32>
    %51 = vector.shape_cast %50 : vector<2x8xf32> to vector<2x8x1xf32>
    %52 = tpu.reciprocal %51 {approx = true} : vector<2x8x1xf32> -> vector<2x8x1xf32>
    %53 = vector.broadcast %52 : vector<2x8x1xf32> to vector<2x8x8xf32>
    %54 = arith.mulf %49, %53 : vector<2x8x8xf32>
    "tpu.trace_start"() <{level = 10 : i32, message = "bts,bsd->btd"}> : () -> ()
    %cst_37 = arith.constant dense<0.000000e+00> : vector<2x8x32xf32>
    %55 = tpu.matmul %54, %43, %cst_37 {dimension_numbers = #tpu.dot_dimension_numbers<[2], [1], [1], [2], [0, 0, 0, 1, 1, 2], [0], [0]>} : vector<2x8x8xf32>, vector<2x8x32xf32>, vector<2x8x32xf32> -> vector<2x8x32xf32>
    "tpu.trace_stop"() : () -> ()
    %56 = vector.shape_cast %55 : vector<2x8x32xf32> to vector<16x32xf32>
    %c1_38 = arith.constant 1 : index
    %c0_39 = arith.constant 0 : index
    %c0_40 = arith.constant 0 : index
    %57 = vector.load %arg5[%c1_38, %c0_39, %c0_40] : memref<8x32x32xf32, #tpu.memory_space<vmem>>, vector<1x32x32xf32>
    %58 = vector.shape_cast %57 : vector<1x32x32xf32> to vector<32x32xf32>
    %cst_41 = arith.constant dense<0.000000e+00> : vector<16x32xf32>
    %59 = tpu.matmul %56, %58, %cst_41 {dimension_numbers = #tpu.dot_dimension_numbers<[1], [0], [0], [1], [0, 0, 1, 1], [], []>} : vector<16x32xf32>, vector<32x32xf32>, vector<16x32xf32> -> vector<16x32xf32>
    %60 = arith.addf %31, %59 : vector<16x32xf32>
    %c2 = arith.constant 2 : index
    %c0_42 = arith.constant 0 : index
    %c0_43 = arith.constant 0 : index
    %61 = vector.load %arg2[%c2, %c0_42, %c0_43] : memref<8x32x32xf32, #tpu.memory_space<vmem>>, vector<1x32x32xf32>
    %62 = vector.shape_cast %61 : vector<1x32x32xf32> to vector<32x32xf32>
    %cst_44 = arith.constant dense<0.000000e+00> : vector<16x32xf32>
    %63 = tpu.matmul %0, %62, %cst_44 {dimension_numbers = #tpu.dot_dimension_numbers<[1], [0], [0], [1], [0, 0, 1, 1], [], []>} : vector<16x32xf32>, vector<32x32xf32>, vector<16x32xf32> -> vector<16x32xf32>
    %c2_45 = arith.constant 2 : index
    %c0_46 = arith.constant 0 : index
    %c0_47 = arith.constant 0 : index
    %64 = vector.load %arg3[%c2_45, %c0_46, %c0_47] : memref<8x32x32xf32, #tpu.memory_space<vmem>>, vector<1x32x32xf32>
    %65 = vector.shape_cast %64 : vector<1x32x32xf32> to vector<32x32xf32>
    %cst_48 = arith.constant dense<0.000000e+00> : vector<16x32xf32>
    %66 = tpu.matmul %0, %65, %cst_48 {dimension_numbers = #tpu.dot_dimension_numbers<[1], [0], [0], [1], [0, 0, 1, 1], [], []>} : vector<16x32xf32>, vector<32x32xf32>, vector<16x32xf32> -> vector<16x32xf32>
    %c2_49 = arith.constant 2 : index
    %c0_50 = arith.constant 0 : index
    %c0_51 = arith.constant 0 : index
    %67 = vector.load %arg4[%c2_49, %c0_50, %c0_51] : memref<8x32x32xf32, #tpu.memory_space<vmem>>, vector<1x32x32xf32>
    %68 = vector.shape_cast %67 : vector<1x32x32xf32> to vector<32x32xf32>
    %cst_52 = arith.constant dense<0.000000e+00> : vector<16x32xf32>
    %69 = tpu.matmul %0, %68, %cst_52 {dimension_numbers = #tpu.dot_dimension_numbers<[1], [0], [0], [1], [0, 0, 1, 1], [], []>} : vector<16x32xf32>, vector<32x32xf32>, vector<16x32xf32> -> vector<16x32xf32>
    %70 = vector.shape_cast %63 : vector<16x32xf32> to vector<2x8x32xf32>
    %71 = vector.shape_cast %66 : vector<16x32xf32> to vector<2x8x32xf32>
    %72 = vector.shape_cast %69 : vector<16x32xf32> to vector<2x8x32xf32>
    "tpu.trace_start"() <{level = 10 : i32, message = "btd,bsd->bts"}> : () -> ()
    %cst_53 = arith.constant dense<0.000000e+00> : vector<2x8x8xf32>
    %73 = tpu.matmul %70, %71, %cst_53 {dimension_numbers = #tpu.dot_dimension_numbers<[2], [2], [1], [1], [0, 0, 0, 1, 1, 1], [0], [0]>} : vector<2x8x32xf32>, vector<2x8x32xf32>, vector<2x8x8xf32> -> vector<2x8x8xf32>
    "tpu.trace_stop"() : () -> ()
    %cst_54 = arith.constant dense<0xFF800000> : vector<2x8xf32>
    %74 = vector.multi_reduction <maximumf>, %73, %cst_54 [2] : vector<2x8x8xf32> to vector<2x8xf32>
    %75 = vector.shape_cast %74 : vector<2x8xf32> to vector<2x8x1xf32>
    %76 = vector.broadcast %75 : vector<2x8x1xf32> to vector<2x8x8xf32>
    %77 = arith.subf %73, %76 : vector<2x8x8xf32>
    %78 = math.exp %77 : vector<2x8x8xf32>
    %cst_55 = arith.constant dense<0.000000e+00> : vector<2x8xf32>
    %79 = vector.multi_reduction <add>, %78, %cst_55 [2] : vector<2x8x8xf32> to vector<2x8xf32>
    %80 = vector.shape_cast %79 : vector<2x8xf32> to vector<2x8x1xf32>
    %81 = tpu.reciprocal %80 {approx = true} : vector<2x8x1xf32> -> vector<2x8x1xf32>
    %82 = vector.broadcast %81 : vector<2x8x1xf32> to vector<2x8x8xf32>
    %83 = arith.mulf %78, %82 : vector<2x8x8xf32>
    "tpu.trace_start"() <{level = 10 : i32, message = "bts,bsd->btd"}> : () -> ()
    %cst_56 = arith.constant dense<0.000000e+00> : vector<2x8x32xf32>
    %84 = tpu.matmul %83, %72, %cst_56 {dimension_numbers = #tpu.dot_dimension_numbers<[2], [1], [1], [2], [0, 0, 0, 1, 1, 2], [0], [0]>} : vector<2x8x8xf32>, vector<2x8x32xf32>, vector<2x8x32xf32> -> vector<2x8x32xf32>
    "tpu.trace_stop"() : () -> ()
    %85 = vector.shape_cast %84 : vector<2x8x32xf32> to vector<16x32xf32>
    %c2_57 = arith.constant 2 : index
    %c0_58 = arith.constant 0 : index
    %c0_59 = arith.constant 0 : index
    %86 = vector.load %arg5[%c2_57, %c0_58, %c0_59] : memref<8x32x32xf32, #tpu.memory_space<vmem>>, vector<1x32x32xf32>
    %87 = vector.shape_cast %86 : vector<1x32x32xf32> to vector<32x32xf32>
    %cst_60 = arith.constant dense<0.000000e+00> : vector<16x32xf32>
    %88 = tpu.matmul %85, %87, %cst_60 {dimension_numbers = #tpu.dot_dimension_numbers<[1], [0], [0], [1], [0, 0, 1, 1], [], []>} : vector<16x32xf32>, vector<32x32xf32>, vector<16x32xf32> -> vector<16x32xf32>
    %89 = arith.addf %60, %88 : vector<16x32xf32>
    %c3 = arith.constant 3 : index
    %c0_61 = arith.constant 0 : index
    %c0_62 = arith.constant 0 : index
    %90 = vector.load %arg2[%c3, %c0_61, %c0_62] : memref<8x32x32xf32, #tpu.memory_space<vmem>>, vector<1x32x32xf32>
    %91 = vector.shape_cast %90 : vector<1x32x32xf32> to vector<32x32xf32>
    %cst_63 = arith.constant dense<0.000000e+00> : vector<16x32xf32>
    %92 = tpu.matmul %0, %91, %cst_63 {dimension_numbers = #tpu.dot_dimension_numbers<[1], [0], [0], [1], [0, 0, 1, 1], [], []>} : vector<16x32xf32>, vector<32x32xf32>, vector<16x32xf32> -> vector<16x32xf32>
    %c3_64 = arith.constant 3 : index
    %c0_65 = arith.constant 0 : index
    %c0_66 = arith.constant 0 : index
    %93 = vector.load %arg3[%c3_64, %c0_65, %c0_66] : memref<8x32x32xf32, #tpu.memory_space<vmem>>, vector<1x32x32xf32>
    %94 = vector.shape_cast %93 : vector<1x32x32xf32> to vector<32x32xf32>
    %cst_67 = arith.constant dense<0.000000e+00> : vector<16x32xf32>
    %95 = tpu.matmul %0, %94, %cst_67 {dimension_numbers = #tpu.dot_dimension_numbers<[1], [0], [0], [1], [0, 0, 1, 1], [], []>} : vector<16x32xf32>, vector<32x32xf32>, vector<16x32xf32> -> vector<16x32xf32>
    %c3_68 = arith.constant 3 : index
    %c0_69 = arith.constant 0 : index
    %c0_70 = arith.constant 0 : index
    %96 = vector.load %arg4[%c3_68, %c0_69, %c0_70] : memref<8x32x32xf32, #tpu.memory_space<vmem>>, vector<1x32x32xf32>
    %97 = vector.shape_cast %96 : vector<1x32x32xf32> to vector<32x32xf32>
    %cst_71 = arith.constant dense<0.000000e+00> : vector<16x32xf32>
    %98 = tpu.matmul %0, %97, %cst_71 {dimension_numbers = #tpu.dot_dimension_numbers<[1], [0], [0], [1], [0, 0, 1, 1], [], []>} : vector<16x32xf32>, vector<32x32xf32>, vector<16x32xf32> -> vector<16x32xf32>
    %99 = vector.shape_cast %92 : vector<16x32xf32> to vector<2x8x32xf32>
    %100 = vector.shape_cast %95 : vector<16x32xf32> to vector<2x8x32xf32>
    %101 = vector.shape_cast %98 : vector<16x32xf32> to vector<2x8x32xf32>
    "tpu.trace_start"() <{level = 10 : i32, message = "btd,bsd->bts"}> : () -> ()
    %cst_72 = arith.constant dense<0.000000e+00> : vector<2x8x8xf32>
    %102 = tpu.matmul %99, %100, %cst_72 {dimension_numbers = #tpu.dot_dimension_numbers<[2], [2], [1], [1], [0, 0, 0, 1, 1, 1], [0], [0]>} : vector<2x8x32xf32>, vector<2x8x32xf32>, vector<2x8x8xf32> -> vector<2x8x8xf32>
    "tpu.trace_stop"() : () -> ()
    %cst_73 = arith.constant dense<0xFF800000> : vector<2x8xf32>
    %103 = vector.multi_reduction <maximumf>, %102, %cst_73 [2] : vector<2x8x8xf32> to vector<2x8xf32>
    %104 = vector.shape_cast %103 : vector<2x8xf32> to vector<2x8x1xf32>
    %105 = vector.broadcast %104 : vector<2x8x1xf32> to vector<2x8x8xf32>
    %106 = arith.subf %102, %105 : vector<2x8x8xf32>
    %107 = math.exp %106 : vector<2x8x8xf32>
    %cst_74 = arith.constant dense<0.000000e+00> : vector<2x8xf32>
    %108 = vector.multi_reduction <add>, %107, %cst_74 [2] : vector<2x8x8xf32> to vector<2x8xf32>
    %109 = vector.shape_cast %108 : vector<2x8xf32> to vector<2x8x1xf32>
    %110 = tpu.reciprocal %109 {approx = true} : vector<2x8x1xf32> -> vector<2x8x1xf32>
    %111 = vector.broadcast %110 : vector<2x8x1xf32> to vector<2x8x8xf32>
    %112 = arith.mulf %107, %111 : vector<2x8x8xf32>
    "tpu.trace_start"() <{level = 10 : i32, message = "bts,bsd->btd"}> : () -> ()
    %cst_75 = arith.constant dense<0.000000e+00> : vector<2x8x32xf32>
    %113 = tpu.matmul %112, %101, %cst_75 {dimension_numbers = #tpu.dot_dimension_numbers<[2], [1], [1], [2], [0, 0, 0, 1, 1, 2], [0], [0]>} : vector<2x8x8xf32>, vector<2x8x32xf32>, vector<2x8x32xf32> -> vector<2x8x32xf32>
    "tpu.trace_stop"() : () -> ()
    %114 = vector.shape_cast %113 : vector<2x8x32xf32> to vector<16x32xf32>
    %c3_76 = arith.constant 3 : index
    %c0_77 = arith.constant 0 : index
    %c0_78 = arith.constant 0 : index
    %115 = vector.load %arg5[%c3_76, %c0_77, %c0_78] : memref<8x32x32xf32, #tpu.memory_space<vmem>>, vector<1x32x32xf32>
    %116 = vector.shape_cast %115 : vector<1x32x32xf32> to vector<32x32xf32>
    %cst_79 = arith.constant dense<0.000000e+00> : vector<16x32xf32>
    %117 = tpu.matmul %114, %116, %cst_79 {dimension_numbers = #tpu.dot_dimension_numbers<[1], [0], [0], [1], [0, 0, 1, 1], [], []>} : vector<16x32xf32>, vector<32x32xf32>, vector<16x32xf32> -> vector<16x32xf32>
    %118 = arith.addf %89, %117 : vector<16x32xf32>
    %c4 = arith.constant 4 : index
    %c0_80 = arith.constant 0 : index
    %c0_81 = arith.constant 0 : index
    %119 = vector.load %arg2[%c4, %c0_80, %c0_81] : memref<8x32x32xf32, #tpu.memory_space<vmem>>, vector<1x32x32xf32>
    %120 = vector.shape_cast %119 : vector<1x32x32xf32> to vector<32x32xf32>
    %cst_82 = arith.constant dense<0.000000e+00> : vector<16x32xf32>
    %121 = tpu.matmul %0, %120, %cst_82 {dimension_numbers = #tpu.dot_dimension_numbers<[1], [0], [0], [1], [0, 0, 1, 1], [], []>} : vector<16x32xf32>, vector<32x32xf32>, vector<16x32xf32> -> vector<16x32xf32>
    %c4_83 = arith.constant 4 : index
    %c0_84 = arith.constant 0 : index
    %c0_85 = arith.constant 0 : index
    %122 = vector.load %arg3[%c4_83, %c0_84, %c0_85] : memref<8x32x32xf32, #tpu.memory_space<vmem>>, vector<1x32x32xf32>
    %123 = vector.shape_cast %122 : vector<1x32x32xf32> to vector<32x32xf32>
    %cst_86 = arith.constant dense<0.000000e+00> : vector<16x32xf32>
    %124 = tpu.matmul %0, %123, %cst_86 {dimension_numbers = #tpu.dot_dimension_numbers<[1], [0], [0], [1], [0, 0, 1, 1], [], []>} : vector<16x32xf32>, vector<32x32xf32>, vector<16x32xf32> -> vector<16x32xf32>
    %c4_87 = arith.constant 4 : index
    %c0_88 = arith.constant 0 : index
    %c0_89 = arith.constant 0 : index
    %125 = vector.load %arg4[%c4_87, %c0_88, %c0_89] : memref<8x32x32xf32, #tpu.memory_space<vmem>>, vector<1x32x32xf32>
    %126 = vector.shape_cast %125 : vector<1x32x32xf32> to vector<32x32xf32>
    %cst_90 = arith.constant dense<0.000000e+00> : vector<16x32xf32>
    %127 = tpu.matmul %0, %126, %cst_90 {dimension_numbers = #tpu.dot_dimension_numbers<[1], [0], [0], [1], [0, 0, 1, 1], [], []>} : vector<16x32xf32>, vector<32x32xf32>, vector<16x32xf32> -> vector<16x32xf32>
    %128 = vector.shape_cast %121 : vector<16x32xf32> to vector<2x8x32xf32>
    %129 = vector.shape_cast %124 : vector<16x32xf32> to vector<2x8x32xf32>
    %130 = vector.shape_cast %127 : vector<16x32xf32> to vector<2x8x32xf32>
    "tpu.trace_start"() <{level = 10 : i32, message = "btd,bsd->bts"}> : () -> ()
    %cst_91 = arith.constant dense<0.000000e+00> : vector<2x8x8xf32>
    %131 = tpu.matmul %128, %129, %cst_91 {dimension_numbers = #tpu.dot_dimension_numbers<[2], [2], [1], [1], [0, 0, 0, 1, 1, 1], [0], [0]>} : vector<2x8x32xf32>, vector<2x8x32xf32>, vector<2x8x8xf32> -> vector<2x8x8xf32>
    "tpu.trace_stop"() : () -> ()
    %cst_92 = arith.constant dense<0xFF800000> : vector<2x8xf32>
    %132 = vector.multi_reduction <maximumf>, %131, %cst_92 [2] : vector<2x8x8xf32> to vector<2x8xf32>
    %133 = vector.shape_cast %132 : vector<2x8xf32> to vector<2x8x1xf32>
    %134 = vector.broadcast %133 : vector<2x8x1xf32> to vector<2x8x8xf32>
    %135 = arith.subf %131, %134 : vector<2x8x8xf32>
    %136 = math.exp %135 : vector<2x8x8xf32>
    %cst_93 = arith.constant dense<0.000000e+00> : vector<2x8xf32>
    %137 = vector.multi_reduction <add>, %136, %cst_93 [2] : vector<2x8x8xf32> to vector<2x8xf32>
    %138 = vector.shape_cast %137 : vector<2x8xf32> to vector<2x8x1xf32>
    %139 = tpu.reciprocal %138 {approx = true} : vector<2x8x1xf32> -> vector<2x8x1xf32>
    %140 = vector.broadcast %139 : vector<2x8x1xf32> to vector<2x8x8xf32>
    %141 = arith.mulf %136, %140 : vector<2x8x8xf32>
    "tpu.trace_start"() <{level = 10 : i32, message = "bts,bsd->btd"}> : () -> ()
    %cst_94 = arith.constant dense<0.000000e+00> : vector<2x8x32xf32>
    %142 = tpu.matmul %141, %130, %cst_94 {dimension_numbers = #tpu.dot_dimension_numbers<[2], [1], [1], [2], [0, 0, 0, 1, 1, 2], [0], [0]>} : vector<2x8x8xf32>, vector<2x8x32xf32>, vector<2x8x32xf32> -> vector<2x8x32xf32>
    "tpu.trace_stop"() : () -> ()
    %143 = vector.shape_cast %142 : vector<2x8x32xf32> to vector<16x32xf32>
    %c4_95 = arith.constant 4 : index
    %c0_96 = arith.constant 0 : index
    %c0_97 = arith.constant 0 : index
    %144 = vector.load %arg5[%c4_95, %c0_96, %c0_97] : memref<8x32x32xf32, #tpu.memory_space<vmem>>, vector<1x32x32xf32>
    %145 = vector.shape_cast %144 : vector<1x32x32xf32> to vector<32x32xf32>
    %cst_98 = arith.constant dense<0.000000e+00> : vector<16x32xf32>
    %146 = tpu.matmul %143, %145, %cst_98 {dimension_numbers = #tpu.dot_dimension_numbers<[1], [0], [0], [1], [0, 0, 1, 1], [], []>} : vector<16x32xf32>, vector<32x32xf32>, vector<16x32xf32> -> vector<16x32xf32>
    %147 = arith.addf %118, %146 : vector<16x32xf32>
    %c5 = arith.constant 5 : index
    %c0_99 = arith.constant 0 : index
    %c0_100 = arith.constant 0 : index
    %148 = vector.load %arg2[%c5, %c0_99, %c0_100] : memref<8x32x32xf32, #tpu.memory_space<vmem>>, vector<1x32x32xf32>
    %149 = vector.shape_cast %148 : vector<1x32x32xf32> to vector<32x32xf32>
    %cst_101 = arith.constant dense<0.000000e+00> : vector<16x32xf32>
    %150 = tpu.matmul %0, %149, %cst_101 {dimension_numbers = #tpu.dot_dimension_numbers<[1], [0], [0], [1], [0, 0, 1, 1], [], []>} : vector<16x32xf32>, vector<32x32xf32>, vector<16x32xf32> -> vector<16x32xf32>
    %c5_102 = arith.constant 5 : index
    %c0_103 = arith.constant 0 : index
    %c0_104 = arith.constant 0 : index
    %151 = vector.load %arg3[%c5_102, %c0_103, %c0_104] : memref<8x32x32xf32, #tpu.memory_space<vmem>>, vector<1x32x32xf32>
    %152 = vector.shape_cast %151 : vector<1x32x32xf32> to vector<32x32xf32>
    %cst_105 = arith.constant dense<0.000000e+00> : vector<16x32xf32>
    %153 = tpu.matmul %0, %152, %cst_105 {dimension_numbers = #tpu.dot_dimension_numbers<[1], [0], [0], [1], [0, 0, 1, 1], [], []>} : vector<16x32xf32>, vector<32x32xf32>, vector<16x32xf32> -> vector<16x32xf32>
    %c5_106 = arith.constant 5 : index
    %c0_107 = arith.constant 0 : index
    %c0_108 = arith.constant 0 : index
    %154 = vector.load %arg4[%c5_106, %c0_107, %c0_108] : memref<8x32x32xf32, #tpu.memory_space<vmem>>, vector<1x32x32xf32>
    %155 = vector.shape_cast %154 : vector<1x32x32xf32> to vector<32x32xf32>
    %cst_109 = arith.constant dense<0.000000e+00> : vector<16x32xf32>
    %156 = tpu.matmul %0, %155, %cst_109 {dimension_numbers = #tpu.dot_dimension_numbers<[1], [0], [0], [1], [0, 0, 1, 1], [], []>} : vector<16x32xf32>, vector<32x32xf32>, vector<16x32xf32> -> vector<16x32xf32>
    %157 = vector.shape_cast %150 : vector<16x32xf32> to vector<2x8x32xf32>
    %158 = vector.shape_cast %153 : vector<16x32xf32> to vector<2x8x32xf32>
    %159 = vector.shape_cast %156 : vector<16x32xf32> to vector<2x8x32xf32>
    "tpu.trace_start"() <{level = 10 : i32, message = "btd,bsd->bts"}> : () -> ()
    %cst_110 = arith.constant dense<0.000000e+00> : vector<2x8x8xf32>
    %160 = tpu.matmul %157, %158, %cst_110 {dimension_numbers = #tpu.dot_dimension_numbers<[2], [2], [1], [1], [0, 0, 0, 1, 1, 1], [0], [0]>} : vector<2x8x32xf32>, vector<2x8x32xf32>, vector<2x8x8xf32> -> vector<2x8x8xf32>
    "tpu.trace_stop"() : () -> ()
    %cst_111 = arith.constant dense<0xFF800000> : vector<2x8xf32>
    %161 = vector.multi_reduction <maximumf>, %160, %cst_111 [2] : vector<2x8x8xf32> to vector<2x8xf32>
    %162 = vector.shape_cast %161 : vector<2x8xf32> to vector<2x8x1xf32>
    %163 = vector.broadcast %162 : vector<2x8x1xf32> to vector<2x8x8xf32>
    %164 = arith.subf %160, %163 : vector<2x8x8xf32>
    %165 = math.exp %164 : vector<2x8x8xf32>
    %cst_112 = arith.constant dense<0.000000e+00> : vector<2x8xf32>
    %166 = vector.multi_reduction <add>, %165, %cst_112 [2] : vector<2x8x8xf32> to vector<2x8xf32>
    %167 = vector.shape_cast %166 : vector<2x8xf32> to vector<2x8x1xf32>
    %168 = tpu.reciprocal %167 {approx = true} : vector<2x8x1xf32> -> vector<2x8x1xf32>
    %169 = vector.broadcast %168 : vector<2x8x1xf32> to vector<2x8x8xf32>
    %170 = arith.mulf %165, %169 : vector<2x8x8xf32>
    "tpu.trace_start"() <{level = 10 : i32, message = "bts,bsd->btd"}> : () -> ()
    %cst_113 = arith.constant dense<0.000000e+00> : vector<2x8x32xf32>
    %171 = tpu.matmul %170, %159, %cst_113 {dimension_numbers = #tpu.dot_dimension_numbers<[2], [1], [1], [2], [0, 0, 0, 1, 1, 2], [0], [0]>} : vector<2x8x8xf32>, vector<2x8x32xf32>, vector<2x8x32xf32> -> vector<2x8x32xf32>
    "tpu.trace_stop"() : () -> ()
    %172 = vector.shape_cast %171 : vector<2x8x32xf32> to vector<16x32xf32>
    %c5_114 = arith.constant 5 : index
    %c0_115 = arith.constant 0 : index
    %c0_116 = arith.constant 0 : index
    %173 = vector.load %arg5[%c5_114, %c0_115, %c0_116] : memref<8x32x32xf32, #tpu.memory_space<vmem>>, vector<1x32x32xf32>
    %174 = vector.shape_cast %173 : vector<1x32x32xf32> to vector<32x32xf32>
    %cst_117 = arith.constant dense<0.000000e+00> : vector<16x32xf32>
    %175 = tpu.matmul %172, %174, %cst_117 {dimension_numbers = #tpu.dot_dimension_numbers<[1], [0], [0], [1], [0, 0, 1, 1], [], []>} : vector<16x32xf32>, vector<32x32xf32>, vector<16x32xf32> -> vector<16x32xf32>
    %176 = arith.addf %147, %175 : vector<16x32xf32>
    %c6 = arith.constant 6 : index
    %c0_118 = arith.constant 0 : index
    %c0_119 = arith.constant 0 : index
    %177 = vector.load %arg2[%c6, %c0_118, %c0_119] : memref<8x32x32xf32, #tpu.memory_space<vmem>>, vector<1x32x32xf32>
    %178 = vector.shape_cast %177 : vector<1x32x32xf32> to vector<32x32xf32>
    %cst_120 = arith.constant dense<0.000000e+00> : vector<16x32xf32>
    %179 = tpu.matmul %0, %178, %cst_120 {dimension_numbers = #tpu.dot_dimension_numbers<[1], [0], [0], [1], [0, 0, 1, 1], [], []>} : vector<16x32xf32>, vector<32x32xf32>, vector<16x32xf32> -> vector<16x32xf32>
    %c6_121 = arith.constant 6 : index
    %c0_122 = arith.constant 0 : index
    %c0_123 = arith.constant 0 : index
    %180 = vector.load %arg3[%c6_121, %c0_122, %c0_123] : memref<8x32x32xf32, #tpu.memory_space<vmem>>, vector<1x32x32xf32>
    %181 = vector.shape_cast %180 : vector<1x32x32xf32> to vector<32x32xf32>
    %cst_124 = arith.constant dense<0.000000e+00> : vector<16x32xf32>
    %182 = tpu.matmul %0, %181, %cst_124 {dimension_numbers = #tpu.dot_dimension_numbers<[1], [0], [0], [1], [0, 0, 1, 1], [], []>} : vector<16x32xf32>, vector<32x32xf32>, vector<16x32xf32> -> vector<16x32xf32>
    %c6_125 = arith.constant 6 : index
    %c0_126 = arith.constant 0 : index
    %c0_127 = arith.constant 0 : index
    %183 = vector.load %arg4[%c6_125, %c0_126, %c0_127] : memref<8x32x32xf32, #tpu.memory_space<vmem>>, vector<1x32x32xf32>
    %184 = vector.shape_cast %183 : vector<1x32x32xf32> to vector<32x32xf32>
    %cst_128 = arith.constant dense<0.000000e+00> : vector<16x32xf32>
    %185 = tpu.matmul %0, %184, %cst_128 {dimension_numbers = #tpu.dot_dimension_numbers<[1], [0], [0], [1], [0, 0, 1, 1], [], []>} : vector<16x32xf32>, vector<32x32xf32>, vector<16x32xf32> -> vector<16x32xf32>
    %186 = vector.shape_cast %179 : vector<16x32xf32> to vector<2x8x32xf32>
    %187 = vector.shape_cast %182 : vector<16x32xf32> to vector<2x8x32xf32>
    %188 = vector.shape_cast %185 : vector<16x32xf32> to vector<2x8x32xf32>
    "tpu.trace_start"() <{level = 10 : i32, message = "btd,bsd->bts"}> : () -> ()
    %cst_129 = arith.constant dense<0.000000e+00> : vector<2x8x8xf32>
    %189 = tpu.matmul %186, %187, %cst_129 {dimension_numbers = #tpu.dot_dimension_numbers<[2], [2], [1], [1], [0, 0, 0, 1, 1, 1], [0], [0]>} : vector<2x8x32xf32>, vector<2x8x32xf32>, vector<2x8x8xf32> -> vector<2x8x8xf32>
    "tpu.trace_stop"() : () -> ()
    %cst_130 = arith.constant dense<0xFF800000> : vector<2x8xf32>
    %190 = vector.multi_reduction <maximumf>, %189, %cst_130 [2] : vector<2x8x8xf32> to vector<2x8xf32>
    %191 = vector.shape_cast %190 : vector<2x8xf32> to vector<2x8x1xf32>
    %192 = vector.broadcast %191 : vector<2x8x1xf32> to vector<2x8x8xf32>
    %193 = arith.subf %189, %192 : vector<2x8x8xf32>
    %194 = math.exp %193 : vector<2x8x8xf32>
    %cst_131 = arith.constant dense<0.000000e+00> : vector<2x8xf32>
    %195 = vector.multi_reduction <add>, %194, %cst_131 [2] : vector<2x8x8xf32> to vector<2x8xf32>
    %196 = vector.shape_cast %195 : vector<2x8xf32> to vector<2x8x1xf32>
    %197 = tpu.reciprocal %196 {approx = true} : vector<2x8x1xf32> -> vector<2x8x1xf32>
    %198 = vector.broadcast %197 : vector<2x8x1xf32> to vector<2x8x8xf32>
    %199 = arith.mulf %194, %198 : vector<2x8x8xf32>
    "tpu.trace_start"() <{level = 10 : i32, message = "bts,bsd->btd"}> : () -> ()
    %cst_132 = arith.constant dense<0.000000e+00> : vector<2x8x32xf32>
    %200 = tpu.matmul %199, %188, %cst_132 {dimension_numbers = #tpu.dot_dimension_numbers<[2], [1], [1], [2], [0, 0, 0, 1, 1, 2], [0], [0]>} : vector<2x8x8xf32>, vector<2x8x32xf32>, vector<2x8x32xf32> -> vector<2x8x32xf32>
    "tpu.trace_stop"() : () -> ()
    %201 = vector.shape_cast %200 : vector<2x8x32xf32> to vector<16x32xf32>
    %c6_133 = arith.constant 6 : index
    %c0_134 = arith.constant 0 : index
    %c0_135 = arith.constant 0 : index
    %202 = vector.load %arg5[%c6_133, %c0_134, %c0_135] : memref<8x32x32xf32, #tpu.memory_space<vmem>>, vector<1x32x32xf32>
    %203 = vector.shape_cast %202 : vector<1x32x32xf32> to vector<32x32xf32>
    %cst_136 = arith.constant dense<0.000000e+00> : vector<16x32xf32>
    %204 = tpu.matmul %201, %203, %cst_136 {dimension_numbers = #tpu.dot_dimension_numbers<[1], [0], [0], [1], [0, 0, 1, 1], [], []>} : vector<16x32xf32>, vector<32x32xf32>, vector<16x32xf32> -> vector<16x32xf32>
    %205 = arith.addf %176, %204 : vector<16x32xf32>
    %c7 = arith.constant 7 : index
    %c0_137 = arith.constant 0 : index
    %c0_138 = arith.constant 0 : index
    %206 = vector.load %arg2[%c7, %c0_137, %c0_138] : memref<8x32x32xf32, #tpu.memory_space<vmem>>, vector<1x32x32xf32>
    %207 = vector.shape_cast %206 : vector<1x32x32xf32> to vector<32x32xf32>
    %cst_139 = arith.constant dense<0.000000e+00> : vector<16x32xf32>
    %208 = tpu.matmul %0, %207, %cst_139 {dimension_numbers = #tpu.dot_dimension_numbers<[1], [0], [0], [1], [0, 0, 1, 1], [], []>} : vector<16x32xf32>, vector<32x32xf32>, vector<16x32xf32> -> vector<16x32xf32>
    %c7_140 = arith.constant 7 : index
    %c0_141 = arith.constant 0 : index
    %c0_142 = arith.constant 0 : index
    %209 = vector.load %arg3[%c7_140, %c0_141, %c0_142] : memref<8x32x32xf32, #tpu.memory_space<vmem>>, vector<1x32x32xf32>
    %210 = vector.shape_cast %209 : vector<1x32x32xf32> to vector<32x32xf32>
    %cst_143 = arith.constant dense<0.000000e+00> : vector<16x32xf32>
    %211 = tpu.matmul %0, %210, %cst_143 {dimension_numbers = #tpu.dot_dimension_numbers<[1], [0], [0], [1], [0, 0, 1, 1], [], []>} : vector<16x32xf32>, vector<32x32xf32>, vector<16x32xf32> -> vector<16x32xf32>
    %c7_144 = arith.constant 7 : index
    %c0_145 = arith.constant 0 : index
    %c0_146 = arith.constant 0 : index
    %212 = vector.load %arg4[%c7_144, %c0_145, %c0_146] : memref<8x32x32xf32, #tpu.memory_space<vmem>>, vector<1x32x32xf32>
    %213 = vector.shape_cast %212 : vector<1x32x32xf32> to vector<32x32xf32>
    %cst_147 = arith.constant dense<0.000000e+00> : vector<16x32xf32>
    %214 = tpu.matmul %0, %213, %cst_147 {dimension_numbers = #tpu.dot_dimension_numbers<[1], [0], [0], [1], [0, 0, 1, 1], [], []>} : vector<16x32xf32>, vector<32x32xf32>, vector<16x32xf32> -> vector<16x32xf32>
    %215 = vector.shape_cast %208 : vector<16x32xf32> to vector<2x8x32xf32>
    %216 = vector.shape_cast %211 : vector<16x32xf32> to vector<2x8x32xf32>
    %217 = vector.shape_cast %214 : vector<16x32xf32> to vector<2x8x32xf32>
    "tpu.trace_start"() <{level = 10 : i32, message = "btd,bsd->bts"}> : () -> ()
    %cst_148 = arith.constant dense<0.000000e+00> : vector<2x8x8xf32>
    %218 = tpu.matmul %215, %216, %cst_148 {dimension_numbers = #tpu.dot_dimension_numbers<[2], [2], [1], [1], [0, 0, 0, 1, 1, 1], [0], [0]>} : vector<2x8x32xf32>, vector<2x8x32xf32>, vector<2x8x8xf32> -> vector<2x8x8xf32>
    "tpu.trace_stop"() : () -> ()
    %cst_149 = arith.constant dense<0xFF800000> : vector<2x8xf32>
    %219 = vector.multi_reduction <maximumf>, %218, %cst_149 [2] : vector<2x8x8xf32> to vector<2x8xf32>
    %220 = vector.shape_cast %219 : vector<2x8xf32> to vector<2x8x1xf32>
    %221 = vector.broadcast %220 : vector<2x8x1xf32> to vector<2x8x8xf32>
    %222 = arith.subf %218, %221 : vector<2x8x8xf32>
    %223 = math.exp %222 : vector<2x8x8xf32>
    %cst_150 = arith.constant dense<0.000000e+00> : vector<2x8xf32>
    %224 = vector.multi_reduction <add>, %223, %cst_150 [2] : vector<2x8x8xf32> to vector<2x8xf32>
    %225 = vector.shape_cast %224 : vector<2x8xf32> to vector<2x8x1xf32>
    %226 = tpu.reciprocal %225 {approx = true} : vector<2x8x1xf32> -> vector<2x8x1xf32>
    %227 = vector.broadcast %226 : vector<2x8x1xf32> to vector<2x8x8xf32>
    %228 = arith.mulf %223, %227 : vector<2x8x8xf32>
    "tpu.trace_start"() <{level = 10 : i32, message = "bts,bsd->btd"}> : () -> ()
    %cst_151 = arith.constant dense<0.000000e+00> : vector<2x8x32xf32>
    %229 = tpu.matmul %228, %217, %cst_151 {dimension_numbers = #tpu.dot_dimension_numbers<[2], [1], [1], [2], [0, 0, 0, 1, 1, 2], [0], [0]>} : vector<2x8x8xf32>, vector<2x8x32xf32>, vector<2x8x32xf32> -> vector<2x8x32xf32>
    "tpu.trace_stop"() : () -> ()
    %230 = vector.shape_cast %229 : vector<2x8x32xf32> to vector<16x32xf32>
    %c7_152 = arith.constant 7 : index
    %c0_153 = arith.constant 0 : index
    %c0_154 = arith.constant 0 : index
    %231 = vector.load %arg5[%c7_152, %c0_153, %c0_154] : memref<8x32x32xf32, #tpu.memory_space<vmem>>, vector<1x32x32xf32>
    %232 = vector.shape_cast %231 : vector<1x32x32xf32> to vector<32x32xf32>
    %cst_155 = arith.constant dense<0.000000e+00> : vector<16x32xf32>
    %233 = tpu.matmul %230, %232, %cst_155 {dimension_numbers = #tpu.dot_dimension_numbers<[1], [0], [0], [1], [0, 0, 1, 1], [], []>} : vector<16x32xf32>, vector<32x32xf32>, vector<16x32xf32> -> vector<16x32xf32>
    %234 = arith.addf %205, %233 : vector<16x32xf32>
    %235 = vector.broadcast %1 : vector<1x32xf32> to vector<16x32xf32>
    %236 = arith.addf %234, %235 : vector<16x32xf32>
    %c0_156 = arith.constant 0 : index
    %c0_157 = arith.constant 0 : index
    %237 = vector.load %arg7[%c0_156, %c0_157] : memref<16x32xf32, #tpu.memory_space<vmem>>, vector<16x32xf32>
    tpu.vector_store %arg7[%c0_156, %c0_157], %236 {strides = array<i32>} : memref<16x32xf32, #tpu.memory_space<vmem>>, vector<16x32xf32>,
    return
  }
  func.func @transform_0(%arg0: i32) -> (i32, i32) {
    %c0_i32 = arith.constant 0 : i32
    %c0_i32_0 = arith.constant 0 : i32
    return %arg0, %c0_i32 : i32, i32
  }
  func.func @transform_1(%arg0: i32) -> (i32, i32, i32) {
    %c0_i32 = arith.constant 0 : i32
    %c0_i32_0 = arith.constant 0 : i32
    %c0_i32_1 = arith.constant 0 : i32
    %c0_i32_2 = arith.constant 0 : i32
    return %c0_i32, %c0_i32_0, %c0_i32_1 : i32, i32, i32
  }
  func.func @transform_2(%arg0: i32) -> (i32, i32, i32) {
    %c0_i32 = arith.constant 0 : i32
    %c0_i32_0 = arith.constant 0 : i32
    %c0_i32_1 = arith.constant 0 : i32
    %c0_i32_2 = arith.constant 0 : i32
    return %c0_i32, %c0_i32_0, %c0_i32_1 : i32, i32, i32
  }
  func.func @transform_3(%arg0: i32) -> (i32, i32, i32) {
    %c0_i32 = arith.constant 0 : i32
    %c0_i32_0 = arith.constant 0 : i32
    %c0_i32_1 = arith.constant 0 : i32
    %c0_i32_2 = arith.constant 0 : i32
    return %c0_i32, %c0_i32_0, %c0_i32_1 : i32, i32, i32
  }
  func.func @transform_4(%arg0: i32) -> (i32, i32, i32) {
    %c0_i32 = arith.constant 0 : i32
    %c0_i32_0 = arith.constant 0 : i32
    %c0_i32_1 = arith.constant 0 : i32
    %c0_i32_2 = arith.constant 0 : i32
    return %c0_i32, %c0_i32_0, %c0_i32_1 : i32, i32, i32
  }
  func.func @transform_5(%arg0: i32) -> (i32, i32) {
    %c0_i32 = arith.constant 0 : i32
    %c0_i32_0 = arith.constant 0 : i32
    %c0_i32_1 = arith.constant 0 : i32
    return %c0_i32, %c0_i32_0 : i32, i32
  }
  func.func @transform_6(%arg0: i32) -> (i32, i32) {
    %c0_i32 = arith.constant 0 : i32
    %c0_i32_0 = arith.constant 0 : i32
    return %arg0, %c0_i32 : i32, i32
  }
}

</mosaic_0001>

<llo_original>
// kernel: tpu_custom_call.1
$region0: #{tpu_custom_call.1}
  #allocation0 [shape = 'u32[]', space=smem, size = 0x4, offset = 0x4, fixed_abs, tag = 'smem constant byte address 0x4 - core index']
  #allocation1 [shape = 'u32[144,128]{1,0:T(1,128)}', space=vmem, size = 0x12000, scoped, tag = 'internal scratch']
  %s0 = inlined_call_operand.hbm [shape: f32[16,32], index: 0, kind: input, shape index: {}]
  %s1 = inlined_call_operand.hbm [shape: f32[8,32,32], index: 1, kind: input, shape index: {}]
  %s2 = inlined_call_operand.hbm [shape: f32[8,32,32], index: 2, kind: input, shape index: {}]
  %s3 = inlined_call_operand.hbm [shape: f32[8,32,32], index: 3, kind: input, shape index: {}]
  %s4 = inlined_call_operand.hbm [shape: f32[8,32,32], index: 4, kind: input, shape index: {}]
  %s5 = inlined_call_operand.vmem [shape: f32[1,32], index: 5, kind: input, shape index: {}]
  %s6 = inlined_call_operand.hbm [shape: f32[16,32], index: 6, kind: output, shape index: {}]
  %s7 = sld [smem:[#allocation0]]
  $region54: #{tpu_custom_call.1} parent=0
    _
  %s9 = ssub.s32 1, %s7
  %s10 = scalar_select 0, %s9, %s7
  $region1: #{tpu_custom_call.1} parent=0
    #allocation2 [shape = 'u8[8192]{0}', space=vmem, size = 0x2000, scoped, tag = 'input window, operand 0, single buffered']
    #allocation3 [shape = 's32[1]{0}', space=sflag, size = 0x4, scoped, tag = 'scoped memory for tpu_custom_call.1']
    #allocation4 [shape = 's32[1]{0}', space=sflag, size = 0x4, scoped, tag = 'scoped memory for tpu_custom_call.1']
    #allocation5 [shape = 'u8[131072]{0}', space=vmem, size = 0x20000, scoped, tag = 'input window, operand 1, single buffered']
    #allocation6 [shape = 's32[1]{0}', space=sflag, size = 0x4, scoped, tag = 'scoped memory for tpu_custom_call.1']
    #allocation7 [shape = 'u8[131072]{0}', space=vmem, size = 0x20000, scoped, tag = 'input window, operand 2, single buffered']
    #allocation8 [shape = 'u8[131072]{0}', space=vmem, size = 0x20000, scoped, tag = 'input window, operand 3, single buffered']
    #allocation9 [shape = 's32[1]{0}', space=sflag, size = 0x4, scoped, tag = 'scoped memory for tpu_custom_call.1']
    #allocation10 [shape = 'u8[131072]{0}', space=vmem, size = 0x20000, scoped, tag = 'input window, operand 4, single buffered']
    #allocation11 [shape = 'u8[8192]{0}', space=vmem, size = 0x2000, scoped, tag = 'output window, operand 0, single buffered']
    %11 = vsyncpa [#allocation3], 0
    %12 = vsyncpa [#allocation6], 0
    %13 = vsyncpa [#allocation9], 0
    %14 = vsyncpa [#allocation4], 0
    // Predicated region
    $region2: #{tpu_custom_call.1} parent=1 // pred_check
      _
    $region3: #{tpu_custom_call.1} parent=1 // pred_check_branch
      %16 = sbr.rel (0) target = $region5
    $region4: #{tpu_custom_call.1} parent=1 // pred_region
      %s18 = ssub.s32 256, 256
      %19 = vsyncadd [#allocation3], %s18
      %s20 = sshll.u32 [#allocation2], 4
      %s21 = int_to_ptr.vmem [resolvable:$true] %s20
      %26 = dma.hbm_to_vmem [thread:$0]  %s0, 256, %s21, [#allocation3], 128, 128, 8
    $region5: #{tpu_custom_call.1} parent=1 // pred_fallthru
      _
    // Predicated region
    $region6: #{tpu_custom_call.1} parent=1 // pred_check
      _
    $region7: #{tpu_custom_call.1} parent=1 // pred_check_branch
      %28 = sbr.rel (0) target = $region9
    $region8: #{tpu_custom_call.1} parent=1 // pred_region
      %s30 = ssub.s32 4096, 4096
      %31 = vsyncadd [#allocation6], %s30
      %s32 = sshll.u32 [#allocation5], 4
      %s33 = int_to_ptr.vmem [resolvable:$true] %s32
      %38 = dma.hbm_to_vmem [thread:$0]  %s1, 4096, %s33, [#allocation6], 128, 128, 8
    $region9: #{tpu_custom_call.1} parent=1 // pred_fallthru
      _
    // Predicated region
    $region10: #{tpu_custom_call.1} parent=1 // pred_check
      _
    $region11: #{tpu_custom_call.1} parent=1 // pred_check_branch
      %40 = sbr.rel (0) target = $region13
    $region12: #{tpu_custom_call.1} parent=1 // pred_region
      %s42 = ssub.s32 4096, 4096
      %43 = vsyncadd [#allocation6], %s42
      %s44 = sshll.u32 [#allocation7], 4
      %s45 = int_to_ptr.vmem [resolvable:$true] %s44
      %50 = dma.hbm_to_vmem [thread:$0]  %s2, 4096, %s45, [#allocation6], 128, 128, 8
    $region13: #{tpu_custom_call.1} parent=1 // pred_fallthru
      _
    // Predicated region
    $region14: #{tpu_custom_call.1} parent=1 // pred_check
      _
    $region15: #{tpu_custom_call.1} parent=1 // pred_check_branch
      %52 = sbr.rel (0) target = $region17
    $region16: #{tpu_custom_call.1} parent=1 // pred_region
      %s54 = ssub.s32 4096, 4096
      %55 = vsyncadd [#allocation9], %s54
      %s56 = sshll.u32 [#allocation8], 4
      %s57 = int_to_ptr.vmem [resolvable:$true] %s56
      %62 = dma.hbm_to_vmem [thread:$0]  %s3, 4096, %s57, [#allocation9], 128, 128, 8
    $region17: #{tpu_custom_call.1} parent=1 // pred_fallthru
      _
    // Predicated region
    $region18: #{tpu_custom_call.1} parent=1 // pred_check
      _
    $region19: #{tpu_custom_call.1} parent=1 // pred_check_branch
      %64 = sbr.rel (0) target = $region21
    $region20: #{tpu_custom_call.1} parent=1 // pred_region
      %s66 = ssub.s32 4096, 4096
      %67 = vsyncadd [#allocation9], %s66
      %s68 = sshll.u32 [#allocation10], 4
      %s69 = int_to_ptr.vmem [resolvable:$true] %s68
      %74 = dma.hbm_to_vmem [thread:$0]  %s4, 4096, %s69, [#allocation9], 128, 128, 8
    $region21: #{tpu_custom_call.1} parent=1 // pred_fallthru
      _
    // Predicated region
    $region22: #{tpu_custom_call.1} parent=1 // pred_check
      _
    $region23: #{tpu_custom_call.1} parent=1 // pred_check_branch
      %76 = sbr.rel (0) target = $region25
    $region24: #{tpu_custom_call.1} parent=1 // pred_region
      _
    $region25: #{tpu_custom_call.1} parent=1 // pred_fallthru
      _
    // Predicated region
    $region26: #{tpu_custom_call.1} parent=1 // pred_check
      _
    $region27: #{tpu_custom_call.1} parent=1 // pred_check_branch
      %78 = sbr.rel (0) target = $region29
    $region28: #{tpu_custom_call.1} parent=1 // pred_region
      %79 = dma.done [#allocation3], 256
    $region29: #{tpu_custom_call.1} parent=1 // pred_fallthru
      _
    // Predicated region
    $region30: #{tpu_custom_call.1} parent=1 // pred_check
      _
    $region31: #{tpu_custom_call.1} parent=1 // pred_check_branch
      %81 = sbr.rel (0) target = $region33
    $region32: #{tpu_custom_call.1} parent=1 // pred_region
      %82 = dma.done [#allocation6], 4096
    $region33: #{tpu_custom_call.1} parent=1 // pred_fallthru
      _
    // Predicated region
    $region34: #{tpu_custom_call.1} parent=1 // pred_check
      _
    $region35: #{tpu_custom_call.1} parent=1 // pred_check_branch
      %84 = sbr.rel (0) target = $region37
    $region36: #{tpu_custom_call.1} parent=1 // pred_region
      %85 = dma.done [#allocation6], 4096
    $region37: #{tpu_custom_call.1} parent=1 // pred_fallthru
      _
    // Predicated region
    $region38: #{tpu_custom_call.1} parent=1 // pred_check
      _
    $region39: #{tpu_custom_call.1} parent=1 // pred_check_branch
      %87 = sbr.rel (0) target = $region41
    $region40: #{tpu_custom_call.1} parent=1 // pred_region
      %88 = dma.done [#allocation9], 4096
    $region41: #{tpu_custom_call.1} parent=1 // pred_fallthru
      _
    // Predicated region
    $region42: #{tpu_custom_call.1} parent=1 // pred_check
      _
    $region43: #{tpu_custom_call.1} parent=1 // pred_check_branch
      %90 = sbr.rel (0) target = $region45
    $region44: #{tpu_custom_call.1} parent=1 // pred_region
      %91 = dma.done [#allocation9], 4096
    $region45: #{tpu_custom_call.1} parent=1 // pred_fallthru
      _
    %v92 = vld [vmem:[#allocation2] sm:$0xff]
    %v93 = vld [vmem:[#allocation2 + $0x8] sm:$0xff]
    %v94 = vld [vmem:[%s5] sm:$0x1]
    %v95 = vld [vmem:[#allocation5] sm:$0xff]
    %v96 = vld [vmem:[#allocation5 + $0x8] sm:$0xff]
    %v97 = vld [vmem:[#allocation5 + $0x10] sm:$0xff]
    %v98 = vld [vmem:[#allocation5 + $0x18] sm:$0xff]
    %vm99 = vcmask 261120
    %v101 = vsel %vm99, %v92, 0
    %v104 = vsel %vm99, %v93, 0
    %106 = vmatprep.subr.mxu0 0.0
    %107 = vmatpush1.msra.mxu0 0.0
    %108 = vmatprep.subr.mxu0 0.0
    %109 = vmatpush1.msra.mxu0 0.0
    %110 = vmatprep.subr.mxu0 0.0
    %111 = vmatpush1.msra.mxu0 0.0
    %112 = vmatprep.subr.mxu0 0.0
    %113 = vmatpush1.msra.mxu0 0.0
    %114 = vmatprep.subr.mxu0 0.0
    %115 = vmatpush1.msra.mxu0 0.0
    %116 = vmatprep.subr.mxu0 0.0
    %117 = vmatpush1.msra.mxu0 0.0
    %118 = vmatprep.subr.mxu0 0.0
    %119 = vmatpush1.msra.mxu0 0.0
    %120 = vmatprep.subr.mxu0 0.0
    %121 = vmatpush1.msra.mxu0 0.0
    %122 = vmatprep.subr.mxu0 0.0
    %123 = vmatpush1.msra.mxu0 0.0
    %124 = vmatprep.subr.mxu0 0.0
    %125 = vmatpush1.msra.mxu0 0.0
    %126 = vmatprep.subr.mxu0 0.0
    %127 = vmatpush1.msra.mxu0 0.0
    %128 = vmatprep.subr.mxu0 0.0
    %129 = vmatpush1.msra.mxu0 0.0
    %130 = vmatprep.subr.mxu0 0.0
    %131 = vmatpush1.msra.mxu0 %v98
    %132 = vmatprep.subr.mxu0 0.0
    %133 = vmatpush1.msra.mxu0 %v97
    %134 = vmatprep.subr.mxu0 0.0
    %135 = vmatpush1.msra.mxu0 %v96
    %136 = vmatprep.subr.mxu0 0.0
    %137 = vmatpush1.msra.mxu0 %v95
    %138 = vmatprep.subr.mxu0 0.0
    %139 = vmatpush2.msra.mxu0 0.0
    %140 = vmatprep.subr.mxu0 0.0
    %141 = vmatpush2.msra.mxu0 0.0
    %142 = vmatprep.subr.mxu0 0.0
    %143 = vmatpush2.msra.mxu0 0.0
    %144 = vmatprep.subr.mxu0 0.0
    %145 = vmatpush2.msra.mxu0 0.0
    %146 = vmatprep.subr.mxu0 0.0
    %147 = vmatpush2.msra.mxu0 0.0
    %148 = vmatprep.subr.mxu0 0.0
    %149 = vmatpush2.msra.mxu0 0.0
    %150 = vmatprep.subr.mxu0 0.0
    %151 = vmatpush2.msra.mxu0 0.0
    %152 = vmatprep.subr.mxu0 0.0
    %153 = vmatpush2.msra.mxu0 0.0
    %154 = vmatprep.subr.mxu0 0.0
    %155 = vmatpush2.msra.mxu0 0.0
    %156 = vmatprep.subr.mxu0 0.0
    %157 = vmatpush2.msra.mxu0 0.0
    %158 = vmatprep.subr.mxu0 0.0
    %159 = vmatpush2.msra.mxu0 0.0
    %160 = vmatprep.subr.mxu0 0.0
    %161 = vmatpush2.msra.mxu0 0.0
    %162 = vmatprep.subr.mxu0 0.0
    %163 = vmatpush2.msra.mxu0 0.0
    %164 = vmatprep.subr.mxu0 0.0
    %165 = vmatpush2.msra.mxu0 0.0
    %166 = vmatprep.subr.mxu0 0.0
    %167 = vmatpush2.msra.mxu0 0.0
    %168 = vmatprep.subr.mxu0 0.0
    %169 = vmatpush2.msra.mxu0 0.0
    %170 = vmatprep.mubr.f32.mxu0 0.0
    %171 = vmatmul.mubr.f32.gmra.mxu0 %v101
    %v172 = vpop.f32.mrf.mxu0
    %v173 = vadd.f32 0.0, %v172
    %v174 = vpop.f32.mrf.mxu0
    %175 = vmatprep.mubr.f32.mxu0 0.0
    %176 = vmatmul.mubr.f32.gmra.mxu0 %v104
    %v177 = vpop.f32.mrf.mxu0
    %v178 = vadd.f32 0.0, %v177
    %v179 = vpop.f32.mrf.mxu0
    %180 = vdwg.mxu0
    %v181 = vld [vmem:[#allocation7] sm:$0xff]
    %v182 = vld [vmem:[#allocation7 + $0x8] sm:$0xff]
    %v183 = vld [vmem:[#allocation7 + $0x10] sm:$0xff]
    %v184 = vld [vmem:[#allocation7 + $0x18] sm:$0xff]
    %185 = vmatprep.subr.mxu0 0.0
    %186 = vmatpush1.msra.mxu0 0.0
    %187 = vmatprep.subr.mxu0 0.0
    %188 = vmatpush1.msra.mxu0 0.0
    %189 = vmatprep.subr.mxu0 0.0
    %190 = vmatpush1.msra.mxu0 0.0
    %191 = vmatprep.subr.mxu0 0.0
    %192 = vmatpush1.msra.mxu0 0.0
    %193 = vmatprep.subr.mxu0 0.0
    %194 = vmatpush1.msra.mxu0 0.0
    %195 = vmatprep.subr.mxu0 0.0
    %196 = vmatpush1.msra.mxu0 0.0
    %197 = vmatprep.subr.mxu0 0.0
    %198 = vmatpush1.msra.mxu0 0.0
    %199 = vmatprep.subr.mxu0 0.0
    %200 = vmatpush1.msra.mxu0 0.0
    %201 = vmatprep.subr.mxu0 0.0
    %202 = vmatpush1.msra.mxu0 0.0
    %203 = vmatprep.subr.mxu0 0.0
    %204 = vmatpush1.msra.mxu0 0.0
    %205 = vmatprep.subr.mxu0 0.0
    %206 = vmatpush1.msra.mxu0 0.0
    %207 = vmatprep.subr.mxu0 0.0
    %208 = vmatpush1.msra.mxu0 0.0
    %209 = vmatprep.subr.mxu0 0.0
    %210 = vmatpush1.msra.mxu0 %v184
    %211 = vmatprep.subr.mxu0 0.0
    %212 = vmatpush1.msra.mxu0 %v183
    %213 = vmatprep.subr.mxu0 0.0
    %214 = vmatpush1.msra.mxu0 %v182
    %215 = vmatprep.subr.mxu0 0.0
    %216 = vmatpush1.msra.mxu0 %v181
    %217 = vmatprep.subr.mxu0 0.0
    %218 = vmatpush2.msra.mxu0 0.0
    %219 = vmatprep.subr.mxu0 0.0
    %220 = vmatpush2.msra.mxu0 0.0
    %221 = vmatprep.subr.mxu0 0.0
    %222 = vmatpush2.msra.mxu0 0.0
    %223 = vmatprep.subr.mxu0 0.0
    %224 = vmatpush2.msra.mxu0 0.0
    %225 = vmatprep.subr.mxu0 0.0
    %226 = vmatpush2.msra.mxu0 0.0
    %227 = vmatprep.subr.mxu0 0.0
    %228 = vmatpush2.msra.mxu0 0.0
    %229 = vmatprep.subr.mxu0 0.0
    %230 = vmatpush2.msra.mxu0 0.0
    %231 = vmatprep.subr.mxu0 0.0
    %232 = vmatpush2.msra.mxu0 0.0
    %233 = vmatprep.subr.mxu0 0.0
    %234 = vmatpush2.msra.mxu0 0.0
    %235 = vmatprep.subr.mxu0 0.0
    %236 = vmatpush2.msra.mxu0 0.0
    %237 = vmatprep.subr.mxu0 0.0
    %238 = vmatpush2.msra.mxu0 0.0
    %239 = vmatprep.subr.mxu0 0.0
    %240 = vmatpush2.msra.mxu0 0.0
    %241 = vmatprep.subr.mxu0 0.0
    %242 = vmatpush2.msra.mxu0 0.0
    %243 = vmatprep.subr.mxu0 0.0
    %244 = vmatpush2.msra.mxu0 0.0
    %245 = vmatprep.subr.mxu0 0.0
    %246 = vmatpush2.msra.mxu0 0.0
    %247 = vmatprep.subr.mxu0 0.0
    %248 = vmatpush2.msra.mxu0 0.0
    %249 = vmatprep.mubr.f32.mxu0 0.0
    %250 = vmatmul.mubr.f32.gmra.mxu0 %v101
    %v251 = vpop.f32.mrf.mxu0
    %v252 = vadd.f32 0.0, %v251
    %v253 = vpop.f32.mrf.mxu0
    %254 = vmatprep.mubr.f32.mxu0 0.0
    %255 = vmatmul.mubr.f32.gmra.mxu0 %v104
    %v256 = vpop.f32.mrf.mxu0
    %v257 = vadd.f32 0.0, %v256
    %v258 = vpop.f32.mrf.mxu0
    %259 = vdwg.mxu0
    %v260 = vld [vmem:[#allocation8] sm:$0xff]
    %v261 = vld [vmem:[#allocation8 + $0x8] sm:$0xff]
    %v262 = vld [vmem:[#allocation8 + $0x10] sm:$0xff]
    %v263 = vld [vmem:[#allocation8 + $0x18] sm:$0xff]
    %264 = vmatprep.subr.mxu0 0.0
    %265 = vmatpush1.msra.mxu0 0.0
    %266 = vmatprep.subr.mxu0 0.0
    %267 = vmatpush1.msra.mxu0 0.0
    %268 = vmatprep.subr.mxu0 0.0
    %269 = vmatpush1.msra.mxu0 0.0
    %270 = vmatprep.subr.mxu0 0.0
    %271 = vmatpush1.msra.mxu0 0.0
    %272 = vmatprep.subr.mxu0 0.0
    %273 = vmatpush1.msra.mxu0 0.0
    %274 = vmatprep.subr.mxu0 0.0
    %275 = vmatpush1.msra.mxu0 0.0
    %276 = vmatprep.subr.mxu0 0.0
    %277 = vmatpush1.msra.mxu0 0.0
    %278 = vmatprep.subr.mxu0 0.0
    %279 = vmatpush1.msra.mxu0 0.0
    %280 = vmatprep.subr.mxu0 0.0
    %281 = vmatpush1.msra.mxu0 0.0
    %282 = vmatprep.subr.mxu0 0.0
    %283 = vmatpush1.msra.mxu0 0.0
    %284 = vmatprep.subr.mxu0 0.0
    %285 = vmatpush1.msra.mxu0 0.0
    %286 = vmatprep.subr.mxu0 0.0
    %287 = vmatpush1.msra.mxu0 0.0
    %288 = vmatprep.subr.mxu0 0.0
    %289 = vmatpush1.msra.mxu0 %v263
    %290 = vmatprep.subr.mxu0 0.0
    %291 = vmatpush1.msra.mxu0 %v262
    %292 = vmatprep.subr.mxu0 0.0
    %293 = vmatpush1.msra.mxu0 %v261
    %294 = vmatprep.subr.mxu0 0.0
    %295 = vmatpush1.msra.mxu0 %v260
    %296 = vmatprep.subr.mxu0 0.0
    %297 = vmatpush2.msra.mxu0 0.0
    %298 = vmatprep.subr.mxu0 0.0
    %299 = vmatpush2.msra.mxu0 0.0
    %300 = vmatprep.subr.mxu0 0.0
    %301 = vmatpush2.msra.mxu0 0.0
    %302 = vmatprep.subr.mxu0 0.0
    %303 = vmatpush2.msra.mxu0 0.0
    %304 = vmatprep.subr.mxu0 0.0
    %305 = vmatpush2.msra.mxu0 0.0
    %306 = vmatprep.subr.mxu0 0.0
    %307 = vmatpush2.msra.mxu0 0.0
    %308 = vmatprep.subr.mxu0 0.0
    %309 = vmatpush2.msra.mxu0 0.0
    %310 = vmatprep.subr.mxu0 0.0
    %311 = vmatpush2.msra.mxu0 0.0
    %312 = vmatprep.subr.mxu0 0.0
    %313 = vmatpush2.msra.mxu0 0.0
    %314 = vmatprep.subr.mxu0 0.0
    %315 = vmatpush2.msra.mxu0 0.0
    %316 = vmatprep.subr.mxu0 0.0
    %317 = vmatpush2.msra.mxu0 0.0
    %318 = vmatprep.subr.mxu0 0.0
    %319 = vmatpush2.msra.mxu0 0.0
    %320 = vmatprep.subr.mxu0 0.0
    %321 = vmatpush2.msra.mxu0 0.0
    %322 = vmatprep.subr.mxu0 0.0
    %323 = vmatpush2.msra.mxu0 0.0
    %324 = vmatprep.subr.mxu0 0.0
    %325 = vmatpush2.msra.mxu0 0.0
    %326 = vmatprep.subr.mxu0 0.0
    %327 = vmatpush2.msra.mxu0 0.0
    %328 = vmatprep.mubr.f32.mxu0 0.0
    %329 = vmatmul.mubr.f32.gmra.mxu0 %v101
    %v330 = vpop.f32.mrf.mxu0
    %v331 = vadd.f32 0.0, %v330
    %v332 = vpop.f32.mrf.mxu0
    %333 = vmatprep.mubr.f32.mxu0 0.0
    %334 = vmatmul.mubr.f32.gmra.mxu0 %v104
    %v335 = vpop.f32.mrf.mxu0
    %v336 = vadd.f32 0.0, %v335
    %v337 = vpop.f32.mrf.mxu0
    %338 = vdwg.mxu0
    %v340 = vsel %vm99, %v173, 0
    %v343 = vsel %vm99, %v252, 0
    %345 = vmatprep.subr.mxu0 0.0
    %346 = vmatpush1.xpose.msra.mxu0 0.0
    %347 = vmatprep.subr.mxu0 0.0
    %348 = vmatpush1.xpose.msra.mxu0 0.0
    %349 = vmatprep.subr.mxu0 0.0
    %350 = vmatpush1.xpose.msra.mxu0 0.0
    %351 = vmatprep.subr.mxu0 0.0
    %352 = vmatpush1.xpose.msra.mxu0 0.0
    %353 = vmatprep.subr.mxu0 0.0
    %354 = vmatpush1.xpose.msra.mxu0 0.0
    %355 = vmatprep.subr.mxu0 0.0
    %356 = vmatpush1.xpose.msra.mxu0 0.0
    %357 = vmatprep.subr.mxu0 0.0
    %358 = vmatpush1.xpose.msra.mxu0 0.0
    %359 = vmatprep.subr.mxu0 0.0
    %360 = vmatpush1.xpose.msra.mxu0 0.0
    %361 = vmatprep.subr.mxu0 0.0
    %362 = vmatpush1.xpose.msra.mxu0 0.0
    %363 = vmatprep.subr.mxu0 0.0
    %364 = vmatpush1.xpose.msra.mxu0 0.0
    %365 = vmatprep.subr.mxu0 0.0
    %366 = vmatpush1.xpose.msra.mxu0 0.0
    %367 = vmatprep.subr.mxu0 0.0
    %368 = vmatpush1.xpose.msra.mxu0 0.0
    %369 = vmatprep.subr.mxu0 0.0
    %370 = vmatpush1.xpose.msra.mxu0 0.0
    %371 = vmatprep.subr.mxu0 0.0
    %372 = vmatpush1.xpose.msra.mxu0 0.0
    %373 = vmatprep.subr.mxu0 0.0
    %374 = vmatpush1.xpose.msra.mxu0 0.0
    %375 = vmatprep.subr.mxu0 0.0
    %376 = vmatpush1.xpose.msra.mxu0 %v343
    %377 = vmatprep.subr.mxu0 0.0
    %378 = vmatpush2.xpose.msra.mxu0 0.0
    %379 = vmatprep.subr.mxu0 0.0
    %380 = vmatpush2.xpose.msra.mxu0 0.0
    %381 = vmatprep.subr.mxu0 0.0
    %382 = vmatpush2.xpose.msra.mxu0 0.0
    %383 = vmatprep.subr.mxu0 0.0
    %384 = vmatpush2.xpose.msra.mxu0 0.0
    %385 = vmatprep.subr.mxu0 0.0
    %386 = vmatpush2.xpose.msra.mxu0 0.0
    %387 = vmatprep.subr.mxu0 0.0
    %388 = vmatpush2.xpose.msra.mxu0 0.0
    %389 = vmatprep.subr.mxu0 0.0
    %390 = vmatpush2.xpose.msra.mxu0 0.0
    %391 = vmatprep.subr.mxu0 0.0
    %392 = vmatpush2.xpose.msra.mxu0 0.0
    %393 = vmatprep.subr.mxu0 0.0
    %394 = vmatpush2.xpose.msra.mxu0 0.0
    %395 = vmatprep.subr.mxu0 0.0
    %396 = vmatpush2.xpose.msra.mxu0 0.0
    %397 = vmatprep.subr.mxu0 0.0
    %398 = vmatpush2.xpose.msra.mxu0 0.0
    %399 = vmatprep.subr.mxu0 0.0
    %400 = vmatpush2.xpose.msra.mxu0 0.0
    %401 = vmatprep.subr.mxu0 0.0
    %402 = vmatpush2.xpose.msra.mxu0 0.0
    %403 = vmatprep.subr.mxu0 0.0
    %404 = vmatpush2.xpose.msra.mxu0 0.0
    %405 = vmatprep.subr.mxu0 0.0
    %406 = vmatpush2.xpose.msra.mxu0 0.0
    %407 = vmatprep.subr.mxu0 0.0
    %408 = vmatpush2.xpose.msra.mxu0 0.0
    %409 = vmatprep.mubr.f32.mxu0 0.0
    %410 = vmatmul.mubr.f32.gmra.mxu0 %v340
    %v411 = vpop.f32.mrf.mxu0
    %v412 = vadd.f32 0.0, %v411
    %v413 = vpop.f32.mrf.mxu0
    %414 = vdwg.mxu0
    %v416 = vsel %vm99, %v178, 0
    %v419 = vsel %vm99, %v257, 0
    %421 = vmatprep.subr.mxu0 0.0
    %422 = vmatpush1.xpose.msra.mxu0 0.0
    %423 = vmatprep.subr.mxu0 0.0
    %424 = vmatpush1.xpose.msra.mxu0 0.0
    %425 = vmatprep.subr.mxu0 0.0
    %426 = vmatpush1.xpose.msra.mxu0 0.0
    %427 = vmatprep.subr.mxu0 0.0
    %428 = vmatpush1.xpose.msra.mxu0 0.0
    %429 = vmatprep.subr.mxu0 0.0
    %430 = vmatpush1.xpose.msra.mxu0 0.0
    %431 = vmatprep.subr.mxu0 0.0
    %432 = vmatpush1.xpose.msra.mxu0 0.0
    %433 = vmatprep.subr.mxu0 0.0
    %434 = vmatpush1.xpose.msra.mxu0 0.0
    %435 = vmatprep.subr.mxu0 0.0
    %436 = vmatpush1.xpose.msra.mxu0 0.0
    %437 = vmatprep.subr.mxu0 0.0
    %438 = vmatpush1.xpose.msra.mxu0 0.0
    %439 = vmatprep.subr.mxu0 0.0
    %440 = vmatpush1.xpose.msra.mxu0 0.0
    %441 = vmatprep.subr.mxu0 0.0
    %442 = vmatpush1.xpose.msra.mxu0 0.0
    %443 = vmatprep.subr.mxu0 0.0
    %444 = vmatpush1.xpose.msra.mxu0 0.0
    %445 = vmatprep.subr.mxu0 0.0
    %446 = vmatpush1.xpose.msra.mxu0 0.0
    %447 = vmatprep.subr.mxu0 0.0
    %448 = vmatpush1.xpose.msra.mxu0 0.0
    %449 = vmatprep.subr.mxu0 0.0
    %450 = vmatpush1.xpose.msra.mxu0 0.0
    %451 = vmatprep.subr.mxu0 0.0
    %452 = vmatpush1.xpose.msra.mxu0 %v419
    %453 = vmatprep.subr.mxu0 0.0
    %454 = vmatpush2.xpose.msra.mxu0 0.0
    %455 = vmatprep.subr.mxu0 0.0
    %456 = vmatpush2.xpose.msra.mxu0 0.0
    %457 = vmatprep.subr.mxu0 0.0
    %458 = vmatpush2.xpose.msra.mxu0 0.0
    %459 = vmatprep.subr.mxu0 0.0
    %460 = vmatpush2.xpose.msra.mxu0 0.0
    %461 = vmatprep.subr.mxu0 0.0
    %462 = vmatpush2.xpose.msra.mxu0 0.0
    %463 = vmatprep.subr.mxu0 0.0
    %464 = vmatpush2.xpose.msra.mxu0 0.0
    %465 = vmatprep.subr.mxu0 0.0
    %466 = vmatpush2.xpose.msra.mxu0 0.0
    %467 = vmatprep.subr.mxu0 0.0
    %468 = vmatpush2.xpose.msra.mxu0 0.0
    %469 = vmatprep.subr.mxu0 0.0
    %470 = vmatpush2.xpose.msra.mxu0 0.0
    %471 = vmatprep.subr.mxu0 0.0
    %472 = vmatpush2.xpose.msra.mxu0 0.0
    %473 = vmatprep.subr.mxu0 0.0
    %474 = vmatpush2.xpose.msra.mxu0 0.0
    %475 = vmatprep.subr.mxu0 0.0
    %476 = vmatpush2.xpose.msra.mxu0 0.0
    %477 = vmatprep.subr.mxu0 0.0
    %478 = vmatpush2.xpose.msra.mxu0 0.0
    %479 = vmatprep.subr.mxu0 0.0
    %480 = vmatpush2.xpose.msra.mxu0 0.0
    %481 = vmatprep.subr.mxu0 0.0
    %482 = vmatpush2.xpose.msra.mxu0 0.0
    %483 = vmatprep.subr.mxu0 0.0
    %484 = vmatpush2.xpose.msra.mxu0 0.0
    %485 = vmatprep.mubr.f32.mxu0 0.0
    %486 = vmatmul.mubr.f32.gmra.mxu0 %v416
    %v487 = vpop.f32.mrf.mxu0
    %v488 = vadd.f32 0.0, %v487
    %v489 = vpop.f32.mrf.mxu0
    %490 = vdwg.mxu0
    %vm491 = vcmask 64512
    %v492 = vsel %vm491, %v412, -inf
    %493 = vmax.xlane.f32.xlu0 %v492
    %v494 = vpop.xlane.xlu0 %493
    %v495 = vsel %vm491, %v488, -inf
    %496 = vmax.xlane.f32.xlu0 %v495
    %v497 = vpop.xlane.xlu0 %496
    %v498 = vsub.f32 %v412, %v494
    %v499 = vsub.f32 %v488, %v497
    %v500 = vmul.f32 %v498, 1.442695
    %v501 = vpow.pop %v500
    %v502 = vmul.f32 %v499, 1.442695
    %v503 = vpow.pop %v502
    %v504 = vsel %vm491, %v501, 0.0
    %505 = vadd.xlane.f32.xlu0 %v504
    %v506 = vpop.xlane.xlu0 %505
    %v507 = vsel %vm491, %v503, 0.0
    %508 = vadd.xlane.f32.xlu0 %v507
    %v509 = vpop.xlane.xlu0 %508
    %v510 = vrcp.pop %v506
    %v511 = vrcp.pop %v509
    %v512 = vmul.f32 %v501, %v510
    %v513 = vmul.f32 %v503, %v511
    %v515 = vsel %vm491, %v512, 0
    %517 = vmatprep.subr.mxu0 0.0
    %518 = vmatpush1.msra.mxu0 0.0
    %519 = vmatprep.subr.mxu0 0.0
    %520 = vmatpush1.msra.mxu0 0.0
    %521 = vmatprep.subr.mxu0 0.0
    %522 = vmatpush1.msra.mxu0 0.0
    %523 = vmatprep.subr.mxu0 0.0
    %524 = vmatpush1.msra.mxu0 0.0
    %525 = vmatprep.subr.mxu0 0.0
    %526 = vmatpush1.msra.mxu0 0.0
    %527 = vmatprep.subr.mxu0 0.0
    %528 = vmatpush1.msra.mxu0 0.0
    %529 = vmatprep.subr.mxu0 0.0
    %530 = vmatpush1.msra.mxu0 0.0
    %531 = vmatprep.subr.mxu0 0.0
    %532 = vmatpush1.msra.mxu0 0.0
    %533 = vmatprep.subr.mxu0 0.0
    %534 = vmatpush1.msra.mxu0 0.0
    %535 = vmatprep.subr.mxu0 0.0
    %536 = vmatpush1.msra.mxu0 0.0
    %537 = vmatprep.subr.mxu0 0.0
    %538 = vmatpush1.msra.mxu0 0.0
    %539 = vmatprep.subr.mxu0 0.0
    %540 = vmatpush1.msra.mxu0 0.0
    %541 = vmatprep.subr.mxu0 0.0
    %542 = vmatpush1.msra.mxu0 0.0
    %543 = vmatprep.subr.mxu0 0.0
    %544 = vmatpush1.msra.mxu0 0.0
    %545 = vmatprep.subr.mxu0 0.0
    %546 = vmatpush1.msra.mxu0 0.0
    %547 = vmatprep.subr.mxu0 0.0
    %548 = vmatpush1.msra.mxu0 %v331
    %549 = vmatprep.subr.mxu0 0.0
    %550 = vmatpush2.msra.mxu0 0.0
    %551 = vmatprep.subr.mxu0 0.0
    %552 = vmatpush2.msra.mxu0 0.0
    %553 = vmatprep.subr.mxu0 0.0
    %554 = vmatpush2.msra.mxu0 0.0
    %555 = vmatprep.subr.mxu0 0.0
    %556 = vmatpush2.msra.mxu0 0.0
    %557 = vmatprep.subr.mxu0 0.0
    %558 = vmatpush2.msra.mxu0 0.0
    %559 = vmatprep.subr.mxu0 0.0
    %560 = vmatpush2.msra.mxu0 0.0
    %561 = vmatprep.subr.mxu0 0.0
    %562 = vmatpush2.msra.mxu0 0.0
    %563 = vmatprep.subr.mxu0 0.0
    %564 = vmatpush2.msra.mxu0 0.0
    %565 = vmatprep.subr.mxu0 0.0
    %566 = vmatpush2.msra.mxu0 0.0
    %567 = vmatprep.subr.mxu0 0.0
    %568 = vmatpush2.msra.mxu0 0.0
    %569 = vmatprep.subr.mxu0 0.0
    %570 = vmatpush2.msra.mxu0 0.0
    %571 = vmatprep.subr.mxu0 0.0
    %572 = vmatpush2.msra.mxu0 0.0
    %573 = vmatprep.subr.mxu0 0.0
    %574 = vmatpush2.msra.mxu0 0.0
    %575 = vmatprep.subr.mxu0 0.0
    %576 = vmatpush2.msra.mxu0 0.0
    %577 = vmatprep.subr.mxu0 0.0
    %578 = vmatpush2.msra.mxu0 0.0
    %579 = vmatprep.subr.mxu0 0.0
    %580 = vmatpush2.msra.mxu0 0.0
    %581 = vmatprep.mubr.f32.mxu0 0.0
    %582 = vmatmul.mubr.f32.gmra.mxu0 %v515
    %v583 = vpop.f32.mrf.mxu0
    %v584 = vadd.f32 0.0, %v583
    %v585 = vpop.f32.mrf.mxu0
    %586 = vdwg.mxu0
    %v588 = vsel %vm491, %v513, 0
    %590 = vmatprep.subr.mxu0 0.0
    %591 = vmatpush1.msra.mxu0 0.0
    %592 = vmatprep.subr.mxu0 0.0
    %593 = vmatpush1.msra.mxu0 0.0
    %594 = vmatprep.subr.mxu0 0.0
    %595 = vmatpush1.msra.mxu0 0.0
    %596 = vmatprep.subr.mxu0 0.0
    %597 = vmatpush1.msra.mxu0 0.0
    %598 = vmatprep.subr.mxu0 0.0
    %599 = vmatpush1.msra.mxu0 0.0
    %600 = vmatprep.subr.mxu0 0.0
    %601 = vmatpush1.msra.mxu0 0.0
    %602 = vmatprep.subr.mxu0 0.0
    %603 = vmatpush1.msra.mxu0 0.0
    %604 = vmatprep.subr.mxu0 0.0
    %605 = vmatpush1.msra.mxu0 0.0
    %606 = vmatprep.subr.mxu0 0.0
    %607 = vmatpush1.msra.mxu0 0.0
    %608 = vmatprep.subr.mxu0 0.0
    %609 = vmatpush1.msra.mxu0 0.0
    %610 = vmatprep.subr.mxu0 0.0
    %611 = vmatpush1.msra.mxu0 0.0
    %612 = vmatprep.subr.mxu0 0.0
    %613 = vmatpush1.msra.mxu0 0.0
    %614 = vmatprep.subr.mxu0 0.0
    %615 = vmatpush1.msra.mxu0 0.0
    %616 = vmatprep.subr.mxu0 0.0
    %617 = vmatpush1.msra.mxu0 0.0
    %618 = vmatprep.subr.mxu0 0.0
    %619 = vmatpush1.msra.mxu0 0.0
    %620 = vmatprep.subr.mxu0 0.0
    %621 = vmatpush1.msra.mxu0 %v336
    %622 = vmatprep.subr.mxu0 0.0
    %623 = vmatpush2.msra.mxu0 0.0
    %624 = vmatprep.subr.mxu0 0.0
    %625 = vmatpush2.msra.mxu0 0.0
    %626 = vmatprep.subr.mxu0 0.0
    %627 = vmatpush2.msra.mxu0 0.0
    %628 = vmatprep.subr.mxu0 0.0
    %629 = vmatpush2.msra.mxu0 0.0
    %630 = vmatprep.subr.mxu0 0.0
    %631 = vmatpush2.msra.mxu0 0.0
    %632 = vmatprep.subr.mxu0 0.0
    %633 = vmatpush2.msra.mxu0 0.0
    %634 = vmatprep.subr.mxu0 0.0
    %635 = vmatpush2.msra.mxu0 0.0
    %636 = vmatprep.subr.mxu0 0.0
    %637 = vmatpush2.msra.mxu0 0.0
    %638 = vmatprep.subr.mxu0 0.0
    %639 = vmatpush2.msra.mxu0 0.0
    %640 = vmatprep.subr.mxu0 0.0
    %641 = vmatpush2.msra.mxu0 0.0
    %642 = vmatprep.subr.mxu0 0.0
    %643 = vmatpush2.msra.mxu0 0.0
    %644 = vmatprep.subr.mxu0 0.0
    %645 = vmatpush2.msra.mxu0 0.0
    %646 = vmatprep.subr.mxu0 0.0
    %647 = vmatpush2.msra.mxu0 0.0
    %648 = vmatprep.subr.mxu0 0.0
    %649 = vmatpush2.msra.mxu0 0.0
    %650 = vmatprep.subr.mxu0 0.0
    %651 = vmatpush2.msra.mxu0 0.0
    %652 = vmatprep.subr.mxu0 0.0
    %653 = vmatpush2.msra.mxu0 0.0
    %654 = vmatprep.mubr.f32.mxu0 0.0
    %655 = vmatmul.mubr.f32.gmra.mxu0 %v588
    %v656 = vpop.f32.mrf.mxu0
    %v657 = vadd.f32 0.0, %v656
    %v658 = vpop.f32.mrf.mxu0
    %659 = vdwg.mxu0
    %v660 = vld [vmem:[#allocation10] sm:$0xff]
    %v661 = vld [vmem:[#allocation10 + $0x8] sm:$0xff]
    %v662 = vld [vmem:[#allocation10 + $0x10] sm:$0xff]
    %v663 = vld [vmem:[#allocation10 + $0x18] sm:$0xff]
    %s664 = scalar_lea.vmem [#allocation5], 32
    %v665 = vld [vmem:[%s664] sm:$0xff]
    %v666 = vld [vmem:[%s664 + $0x8] sm:$0xff]
    %v667 = vld [vmem:[%s664 + $0x10] sm:$0xff]
    %v668 = vld [vmem:[%s664 + $0x18] sm:$0xff]
    %669 = vmatprep.subr.mxu0 0.0
    %670 = vmatpush1.msra.mxu0 0.0
    %671 = vmatprep.subr.mxu0 0.0
    %672 = vmatpush1.msra.mxu0 0.0
    %673 = vmatprep.subr.mxu0 0.0
    %674 = vmatpush1.msra.mxu0 0.0
    %675 = vmatprep.subr.mxu0 0.0
    %676 = vmatpush1.msra.mxu0 0.0
    %677 = vmatprep.subr.mxu0 0.0
    %678 = vmatpush1.msra.mxu0 0.0
    %679 = vmatprep.subr.mxu0 0.0
    %680 = vmatpush1.msra.mxu0 0.0
    %681 = vmatprep.subr.mxu0 0.0
    %682 = vmatpush1.msra.mxu0 0.0
    %683 = vmatprep.subr.mxu0 0.0
    %684 = vmatpush1.msra.mxu0 0.0
    %685 = vmatprep.subr.mxu0 0.0
    %686 = vmatpush1.msra.mxu0 0.0
    %687 = vmatprep.subr.mxu0 0.0
    %688 = vmatpush1.msra.mxu0 0.0
    %689 = vmatprep.subr.mxu0 0.0
    %690 = vmatpush1.msra.mxu0 0.0
    %691 = vmatprep.subr.mxu0 0.0
    %692 = vmatpush1.msra.mxu0 0.0
    %693 = vmatprep.subr.mxu0 0.0
    %694 = vmatpush1.msra.mxu0 %v668
    %695 = vmatprep.subr.mxu0 0.0
    %696 = vmatpush1.msra.mxu0 %v667
    %697 = vmatprep.subr.mxu0 0.0
    %698 = vmatpush1.msra.mxu0 %v666
    %699 = vmatprep.subr.mxu0 0.0
    %700 = vmatpush1.msra.mxu0 %v665
    %701 = vmatprep.subr.mxu0 0.0
    %702 = vmatpush2.msra.mxu0 0.0
    %703 = vmatprep.subr.mxu0 0.0
    %704 = vmatpush2.msra.mxu0 0.0
    %705 = vmatprep.subr.mxu0 0.0
    %706 = vmatpush2.msra.mxu0 0.0
    %707 = vmatprep.subr.mxu0 0.0
    %708 = vmatpush2.msra.mxu0 0.0
    %709 = vmatprep.subr.mxu0 0.0
    %710 = vmatpush2.msra.mxu0 0.0
    %711 = vmatprep.subr.mxu0 0.0
    %712 = vmatpush2.msra.mxu0 0.0
    %713 = vmatprep.subr.mxu0 0.0
    %714 = vmatpush2.msra.mxu0 0.0
    %715 = vmatprep.subr.mxu0 0.0
    %716 = vmatpush2.msra.mxu0 0.0
    %717 = vmatprep.subr.mxu0 0.0
    %718 = vmatpush2.msra.mxu0 0.0
    %719 = vmatprep.subr.mxu0 0.0
    %720 = vmatpush2.msra.mxu0 0.0
    %721 = vmatprep.subr.mxu0 0.0
    %722 = vmatpush2.msra.mxu0 0.0
    %723 = vmatprep.subr.mxu0 0.0
    %724 = vmatpush2.msra.mxu0 0.0
    %725 = vmatprep.subr.mxu0 0.0
    %726 = vmatpush2.msra.mxu0 0.0
    %727 = vmatprep.subr.mxu0 0.0
    %728 = vmatpush2.msra.mxu0 0.0
    %729 = vmatprep.subr.mxu0 0.0
    %730 = vmatpush2.msra.mxu0 0.0
    %731 = vmatprep.subr.mxu0 0.0
    %732 = vmatpush2.msra.mxu0 0.0
    %733 = vmatprep.mubr.f32.mxu0 0.0
    %734 = vmatmul.mubr.f32.gmra.mxu0 %v101
    %v735 = vpop.f32.mrf.mxu0
    %v736 = vadd.f32 0.0, %v735
    %v737 = vpop.f32.mrf.mxu0
    %738 = vmatprep.mubr.f32.mxu0 0.0
    %739 = vmatmul.mubr.f32.gmra.mxu0 %v104
    %v740 = vpop.f32.mrf.mxu0
    %v741 = vadd.f32 0.0, %v740
    %v742 = vpop.f32.mrf.mxu0
    %743 = vdwg.mxu0
    %s744 = scalar_lea.vmem [#allocation7], 32
    %v745 = vld [vmem:[%s744] sm:$0xff]
    %v746 = vld [vmem:[%s744 + $0x8] sm:$0xff]
    %v747 = vld [vmem:[%s744 + $0x10] sm:$0xff]
    %v748 = vld [vmem:[%s744 + $0x18] sm:$0xff]
    %749 = vmatprep.subr.mxu0 0.0
    %750 = vmatpush1.msra.mxu0 0.0
    %751 = vmatprep.subr.mxu0 0.0
    %752 = vmatpush1.msra.mxu0 0.0
    %753 = vmatprep.subr.mxu0 0.0
    %754 = vmatpush1.msra.mxu0 0.0
    %755 = vmatprep.subr.mxu0 0.0
    %756 = vmatpush1.msra.mxu0 0.0
    %757 = vmatprep.subr.mxu0 0.0
    %758 = vmatpush1.msra.mxu0 0.0
    %759 = vmatprep.subr.mxu0 0.0
    %760 = vmatpush1.msra.mxu0 0.0
    %761 = vmatprep.subr.mxu0 0.0
    %762 = vmatpush1.msra.mxu0 0.0
    %763 = vmatprep.subr.mxu0 0.0
    %764 = vmatpush1.msra.mxu0 0.0
    %765 = vmatprep.subr.mxu0 0.0
    %766 = vmatpush1.msra.mxu0 0.0
    %767 = vmatprep.subr.mxu0 0.0
    %768 = vmatpush1.msra.mxu0 0.0
    %769 = vmatprep.subr.mxu0 0.0
    %770 = vmatpush1.msra.mxu0 0.0
    %771 = vmatprep.subr.mxu0 0.0
    %772 = vmatpush1.msra.mxu0 0.0
    %773 = vmatprep.subr.mxu0 0.0
    %774 = vmatpush1.msra.mxu0 %v748
    %775 = vmatprep.subr.mxu0 0.0
    %776 = vmatpush1.msra.mxu0 %v747
    %777 = vmatprep.subr.mxu0 0.0
    %778 = vmatpush1.msra.mxu0 %v746
    %779 = vmatprep.subr.mxu0 0.0
    %780 = vmatpush1.msra.mxu0 %v745
    %781 = vmatprep.subr.mxu0 0.0
    %782 = vmatpush2.msra.mxu0 0.0
    %783 = vmatprep.subr.mxu0 0.0
    %784 = vmatpush2.msra.mxu0 0.0
    %785 = vmatprep.subr.mxu0 0.0
    %786 = vmatpush2.msra.mxu0 0.0
    %787 = vmatprep.subr.mxu0 0.0
    %788 = vmatpush2.msra.mxu0 0.0
    %789 = vmatprep.subr.mxu0 0.0
    %790 = vmatpush2.msra.mxu0 0.0
    %791 = vmatprep.subr.mxu0 0.0
    %792 = vmatpush2.msra.mxu0 0.0
    %793 = vmatprep.subr.mxu0 0.0
    %794 = vmatpush2.msra.mxu0 0.0
    %795 = vmatprep.subr.mxu0 0.0
    %796 = vmatpush2.msra.mxu0 0.0
    %797 = vmatprep.subr.mxu0 0.0
    %798 = vmatpush2.msra.mxu0 0.0
    %799 = vmatprep.subr.mxu0 0.0
    %800 = vmatpush2.msra.mxu0 0.0
    %801 = vmatprep.subr.mxu0 0.0
    %802 = vmatpush2.msra.mxu0 0.0
    %803 = vmatprep.subr.mxu0 0.0
    %804 = vmatpush2.msra.mxu0 0.0
    %805 = vmatprep.subr.mxu0 0.0
    %806 = vmatpush2.msra.mxu0 0.0
    %807 = vmatprep.subr.mxu0 0.0
    %808 = vmatpush2.msra.mxu0 0.0
    %809 = vmatprep.subr.mxu0 0.0
    %810 = vmatpush2.msra.mxu0 0.0
    %811 = vmatprep.subr.mxu0 0.0
    %812 = vmatpush2.msra.mxu0 0.0
    %813 = vmatprep.mubr.f32.mxu0 0.0
    %814 = vmatmul.mubr.f32.gmra.mxu0 %v101
    %v815 = vpop.f32.mrf.mxu0
    %v816 = vadd.f32 0.0, %v815
    %v817 = vpop.f32.mrf.mxu0
    %818 = vmatprep.mubr.f32.mxu0 0.0
    %819 = vmatmul.mubr.f32.gmra.mxu0 %v104
    %v820 = vpop.f32.mrf.mxu0
    %v821 = vadd.f32 0.0, %v820
    %v822 = vpop.f32.mrf.mxu0
    %823 = vdwg.mxu0
    %s824 = scalar_lea.vmem [#allocation8], 32
    %v825 = vld [vmem:[%s824] sm:$0xff]
    %v826 = vld [vmem:[%s824 + $0x8] sm:$0xff]
    %v827 = vld [vmem:[%s824 + $0x10] sm:$0xff]
    %v828 = vld [vmem:[%s824 + $0x18] sm:$0xff]
    %829 = vmatprep.subr.mxu0 0.0
    %830 = vmatpush1.msra.mxu0 0.0
    %831 = vmatprep.subr.mxu0 0.0
    %832 = vmatpush1.msra.mxu0 0.0
    %833 = vmatprep.subr.mxu0 0.0
    %834 = vmatpush1.msra.mxu0 0.0
    %835 = vmatprep.subr.mxu0 0.0
    %836 = vmatpush1.msra.mxu0 0.0
    %837 = vmatprep.subr.mxu0 0.0
    %838 = vmatpush1.msra.mxu0 0.0
    %839 = vmatprep.subr.mxu0 0.0
    %840 = vmatpush1.msra.mxu0 0.0
    %841 = vmatprep.subr.mxu0 0.0
    %842 = vmatpush1.msra.mxu0 0.0
    %843 = vmatprep.subr.mxu0 0.0
    %844 = vmatpush1.msra.mxu0 0.0
    %845 = vmatprep.subr.mxu0 0.0
    %846 = vmatpush1.msra.mxu0 0.0
    %847 = vmatprep.subr.mxu0 0.0
    %848 = vmatpush1.msra.mxu0 0.0
    %849 = vmatprep.subr.mxu0 0.0
    %850 = vmatpush1.msra.mxu0 0.0
    %851 = vmatprep.subr.mxu0 0.0
    %852 = vmatpush1.msra.mxu0 0.0
    %853 = vmatprep.subr.mxu0 0.0
    %854 = vmatpush1.msra.mxu0 %v828
    %855 = vmatprep.subr.mxu0 0.0
    %856 = vmatpush1.msra.mxu0 %v827
    %857 = vmatprep.subr.mxu0 0.0
    %858 = vmatpush1.msra.mxu0 %v826
    %859 = vmatprep.subr.mxu0 0.0
    %860 = vmatpush1.msra.mxu0 %v825
    %861 = vmatprep.subr.mxu0 0.0
    %862 = vmatpush2.msra.mxu0 0.0
    %863 = vmatprep.subr.mxu0 0.0
    %864 = vmatpush2.msra.mxu0 0.0
    %865 = vmatprep.subr.mxu0 0.0
    %866 = vmatpush2.msra.mxu0 0.0
    %867 = vmatprep.subr.mxu0 0.0
    %868 = vmatpush2.msra.mxu0 0.0
    %869 = vmatprep.subr.mxu0 0.0
    %870 = vmatpush2.msra.mxu0 0.0
    %871 = vmatprep.subr.mxu0 0.0
    %872 = vmatpush2.msra.mxu0 0.0
    %873 = vmatprep.subr.mxu0 0.0
    %874 = vmatpush2.msra.mxu0 0.0
    %875 = vmatprep.subr.mxu0 0.0
    %876 = vmatpush2.msra.mxu0 0.0
    %877 = vmatprep.subr.mxu0 0.0
    %878 = vmatpush2.msra.mxu0 0.0
    %879 = vmatprep.subr.mxu0 0.0
    %880 = vmatpush2.msra.mxu0 0.0
    %881 = vmatprep.subr.mxu0 0.0
    %882 = vmatpush2.msra.mxu0 0.0
    %883 = vmatprep.subr.mxu0 0.0
    %884 = vmatpush2.msra.mxu0 0.0
    %885 = vmatprep.subr.mxu0 0.0
    %886 = vmatpush2.msra.mxu0 0.0
    %887 = vmatprep.subr.mxu0 0.0
    %888 = vmatpush2.msra.mxu0 0.0
    %889 = vmatprep.subr.mxu0 0.0
    %890 = vmatpush2.msra.mxu0 0.0
    %891 = vmatprep.subr.mxu0 0.0
    %892 = vmatpush2.msra.mxu0 0.0
    %893 = vmatprep.mubr.f32.mxu0 0.0
    %894 = vmatmul.mubr.f32.gmra.mxu0 %v101
    %v895 = vpop.f32.mrf.mxu0
    %v896 = vadd.f32 0.0, %v895
    %v897 = vpop.f32.mrf.mxu0
    %898 = vmatprep.mubr.f32.mxu0 0.0
    %899 = vmatmul.mubr.f32.gmra.mxu0 %v104
    %v900 = vpop.f32.mrf.mxu0
    %v901 = vadd.f32 0.0, %v900
    %v902 = vpop.f32.mrf.mxu0
    %903 = vdwg.mxu0
    %v905 = vsel %vm99, %v736, 0
    %v908 = vsel %vm99, %v816, 0
    %910 = vmatprep.subr.mxu0 0.0
    %911 = vmatpush1.xpose.msra.mxu0 0.0
    %912 = vmatprep.subr.mxu0 0.0
    %913 = vmatpush1.xpose.msra.mxu0 0.0
    %914 = vmatprep.subr.mxu0 0.0
    %915 = vmatpush1.xpose.msra.mxu0 0.0
    %916 = vmatprep.subr.mxu0 0.0
    %917 = vmatpush1.xpose.msra.mxu0 0.0
    %918 = vmatprep.subr.mxu0 0.0
    %919 = vmatpush1.xpose.msra.mxu0 0.0
    %920 = vmatprep.subr.mxu0 0.0
    %921 = vmatpush1.xpose.msra.mxu0 0.0
    %922 = vmatprep.subr.mxu0 0.0
    %923 = vmatpush1.xpose.msra.mxu0 0.0
    %924 = vmatprep.subr.mxu0 0.0
    %925 = vmatpush1.xpose.msra.mxu0 0.0
    %926 = vmatprep.subr.mxu0 0.0
    %927 = vmatpush1.xpose.msra.mxu0 0.0
    %928 = vmatprep.subr.mxu0 0.0
    %929 = vmatpush1.xpose.msra.mxu0 0.0
    %930 = vmatprep.subr.mxu0 0.0
    %931 = vmatpush1.xpose.msra.mxu0 0.0
    %932 = vmatprep.subr.mxu0 0.0
    %933 = vmatpush1.xpose.msra.mxu0 0.0
    %934 = vmatprep.subr.mxu0 0.0
    %935 = vmatpush1.xpose.msra.mxu0 0.0
    %936 = vmatprep.subr.mxu0 0.0
    %937 = vmatpush1.xpose.msra.mxu0 0.0
    %938 = vmatprep.subr.mxu0 0.0
    %939 = vmatpush1.xpose.msra.mxu0 0.0
    %940 = vmatprep.subr.mxu0 0.0
    %941 = vmatpush1.xpose.msra.mxu0 %v908
    %942 = vmatprep.subr.mxu0 0.0
    %943 = vmatpush2.xpose.msra.mxu0 0.0
    %944 = vmatprep.subr.mxu0 0.0
    %945 = vmatpush2.xpose.msra.mxu0 0.0
    %946 = vmatprep.subr.mxu0 0.0
    %947 = vmatpush2.xpose.msra.mxu0 0.0
    %948 = vmatprep.subr.mxu0 0.0
    %949 = vmatpush2.xpose.msra.mxu0 0.0
    %950 = vmatprep.subr.mxu0 0.0
    %951 = vmatpush2.xpose.msra.mxu0 0.0
    %952 = vmatprep.subr.mxu0 0.0
    %953 = vmatpush2.xpose.msra.mxu0 0.0
    %954 = vmatprep.subr.mxu0 0.0
    %955 = vmatpush2.xpose.msra.mxu0 0.0
    %956 = vmatprep.subr.mxu0 0.0
    %957 = vmatpush2.xpose.msra.mxu0 0.0
    %958 = vmatprep.subr.mxu0 0.0
    %959 = vmatpush2.xpose.msra.mxu0 0.0
    %960 = vmatprep.subr.mxu0 0.0
    %961 = vmatpush2.xpose.msra.mxu0 0.0
    %962 = vmatprep.subr.mxu0 0.0
    %963 = vmatpush2.xpose.msra.mxu0 0.0
    %964 = vmatprep.subr.mxu0 0.0
    %965 = vmatpush2.xpose.msra.mxu0 0.0
    %966 = vmatprep.subr.mxu0 0.0
    %967 = vmatpush2.xpose.msra.mxu0 0.0
    %968 = vmatprep.subr.mxu0 0.0
    %969 = vmatpush2.xpose.msra.mxu0 0.0
    %970 = vmatprep.subr.mxu0 0.0
    %971 = vmatpush2.xpose.msra.mxu0 0.0
    %972 = vmatprep.subr.mxu0 0.0
    %973 = vmatpush2.xpose.msra.mxu0 0.0
    %974 = vmatprep.mubr.f32.mxu0 0.0
    %975 = vmatmul.mubr.f32.gmra.mxu0 %v905
    %v976 = vpop.f32.mrf.mxu0
    %v977 = vadd.f32 0.0, %v976
    %v978 = vpop.f32.mrf.mxu0
    %979 = vdwg.mxu0
    %v981 = vsel %vm99, %v741, 0
    %v984 = vsel %vm99, %v821, 0
    %986 = vmatprep.subr.mxu0 0.0
    %987 = vmatpush1.xpose.msra.mxu0 0.0
    %988 = vmatprep.subr.mxu0 0.0
    %989 = vmatpush1.xpose.msra.mxu0 0.0
    %990 = vmatprep.subr.mxu0 0.0
    %991 = vmatpush1.xpose.msra.mxu0 0.0
    %992 = vmatprep.subr.mxu0 0.0
    %993 = vmatpush1.xpose.msra.mxu0 0.0
    %994 = vmatprep.subr.mxu0 0.0
    %995 = vmatpush1.xpose.msra.mxu0 0.0
    %996 = vmatprep.subr.mxu0 0.0
    %997 = vmatpush1.xpose.msra.mxu0 0.0
    %998 = vmatprep.subr.mxu0 0.0
    %999 = vmatpush1.xpose.msra.mxu0 0.0
    %1000 = vmatprep.subr.mxu0 0.0
    %1001 = vmatpush1.xpose.msra.mxu0 0.0
    %1002 = vmatprep.subr.mxu0 0.0
    %1003 = vmatpush1.xpose.msra.mxu0 0.0
    %1004 = vmatprep.subr.mxu0 0.0
    %1005 = vmatpush1.xpose.msra.mxu0 0.0
    %1006 = vmatprep.subr.mxu0 0.0
    %1007 = vmatpush1.xpose.msra.mxu0 0.0
    %1008 = vmatprep.subr.mxu0 0.0
    %1009 = vmatpush1.xpose.msra.mxu0 0.0
    %1010 = vmatprep.subr.mxu0 0.0
    %1011 = vmatpush1.xpose.msra.mxu0 0.0
    %1012 = vmatprep.subr.mxu0 0.0
    %1013 = vmatpush1.xpose.msra.mxu0 0.0
    %1014 = vmatprep.subr.mxu0 0.0
    %1015 = vmatpush1.xpose.msra.mxu0 0.0
    %1016 = vmatprep.subr.mxu0 0.0
    %1017 = vmatpush1.xpose.msra.mxu0 %v984
    %1018 = vmatprep.subr.mxu0 0.0
    %1019 = vmatpush2.xpose.msra.mxu0 0.0
    %1020 = vmatprep.subr.mxu0 0.0
    %1021 = vmatpush2.xpose.msra.mxu0 0.0
    %1022 = vmatprep.subr.mxu0 0.0
    %1023 = vmatpush2.xpose.msra.mxu0 0.0
    %1024 = vmatprep.subr.mxu0 0.0
    %1025 = vmatpush2.xpose.msra.mxu0 0.0
    %1026 = vmatprep.subr.mxu0 0.0
    %1027 = vmatpush2.xpose.msra.mxu0 0.0
    %1028 = vmatprep.subr.mxu0 0.0
    %1029 = vmatpush2.xpose.msra.mxu0 0.0
    %1030 = vmatprep.subr.mxu0 0.0
    %1031 = vmatpush2.xpose.msra.mxu0 0.0
    %1032 = vmatprep.subr.mxu0 0.0
    %1033 = vmatpush2.xpose.msra.mxu0 0.0
    %1034 = vmatprep.subr.mxu0 0.0
    %1035 = vmatpush2.xpose.msra.mxu0 0.0
    %1036 = vmatprep.subr.mxu0 0.0
    %1037 = vmatpush2.xpose.msra.mxu0 0.0
    %1038 = vmatprep.subr.mxu0 0.0
    %1039 = vmatpush2.xpose.msra.mxu0 0.0
    %1040 = vmatprep.subr.mxu0 0.0
    %1041 = vmatpush2.xpose.msra.mxu0 0.0
    %1042 = vmatprep.subr.mxu0 0.0
    %1043 = vmatpush2.xpose.msra.mxu0 0.0
    %1044 = vmatprep.subr.mxu0 0.0
    %1045 = vmatpush2.xpose.msra.mxu0 0.0
    %1046 = vmatprep.subr.mxu0 0.0
    %1047 = vmatpush2.xpose.msra.mxu0 0.0
    %1048 = vmatprep.subr.mxu0 0.0
    %1049 = vmatpush2.xpose.msra.mxu0 0.0
    %1050 = vmatprep.mubr.f32.mxu0 0.0
    %1051 = vmatmul.mubr.f32.gmra.mxu0 %v981
    %v1052 = vpop.f32.mrf.mxu0
    %v1053 = vadd.f32 0.0, %v1052
    %v1054 = vpop.f32.mrf.mxu0
    %1055 = vdwg.mxu0
    %v1056 = vsel %vm491, %v977, -inf
    %1057 = vmax.xlane.f32.xlu0 %v1056
    %v1058 = vpop.xlane.xlu0 %1057
    %v1059 = vsel %vm491, %v1053, -inf
    %1060 = vmax.xlane.f32.xlu0 %v1059
    %v1061 = vpop.xlane.xlu0 %1060
    %v1062 = vsub.f32 %v977, %v1058
    %v1063 = vsub.f32 %v1053, %v1061
    %v1064 = vmul.f32 %v1062, 1.442695
    %v1065 = vpow.pop %v1064
    %v1066 = vmul.f32 %v1063, 1.442695
    %v1067 = vpow.pop %v1066
    %v1068 = vsel %vm491, %v1065, 0.0
    %1069 = vadd.xlane.f32.xlu0 %v1068
    %v1070 = vpop.xlane.xlu0 %1069
    %v1071 = vsel %vm491, %v1067, 0.0
    %1072 = vadd.xlane.f32.xlu0 %v1071
    %v1073 = vpop.xlane.xlu0 %1072
    %v1074 = vrcp.pop %v1070
    %v1075 = vrcp.pop %v1073
    %v1076 = vmul.f32 %v1065, %v1074
    %v1077 = vmul.f32 %v1067, %v1075
    %v1079 = vsel %vm491, %v1076, 0
    %1081 = vmatprep.subr.mxu0 0.0
    %1082 = vmatpush1.msra.mxu0 0.0
    %1083 = vmatprep.subr.mxu0 0.0
    %1084 = vmatpush1.msra.mxu0 0.0
    %1085 = vmatprep.subr.mxu0 0.0
    %1086 = vmatpush1.msra.mxu0 0.0
    %1087 = vmatprep.subr.mxu0 0.0
    %1088 = vmatpush1.msra.mxu0 0.0
    %1089 = vmatprep.subr.mxu0 0.0
    %1090 = vmatpush1.msra.mxu0 0.0
    %1091 = vmatprep.subr.mxu0 0.0
    %1092 = vmatpush1.msra.mxu0 0.0
    %1093 = vmatprep.subr.mxu0 0.0
    %1094 = vmatpush1.msra.mxu0 0.0
    %1095 = vmatprep.subr.mxu0 0.0
    %1096 = vmatpush1.msra.mxu0 0.0
    %1097 = vmatprep.subr.mxu0 0.0
    %1098 = vmatpush1.msra.mxu0 0.0
    %1099 = vmatprep.subr.mxu0 0.0
    %1100 = vmatpush1.msra.mxu0 0.0
    %1101 = vmatprep.subr.mxu0 0.0
    %1102 = vmatpush1.msra.mxu0 0.0
    %1103 = vmatprep.subr.mxu0 0.0
    %1104 = vmatpush1.msra.mxu0 0.0
    %1105 = vmatprep.subr.mxu0 0.0
    %1106 = vmatpush1.msra.mxu0 0.0
    %1107 = vmatprep.subr.mxu0 0.0
    %1108 = vmatpush1.msra.mxu0 0.0
    %1109 = vmatprep.subr.mxu0 0.0
    %1110 = vmatpush1.msra.mxu0 0.0
    %1111 = vmatprep.subr.mxu0 0.0
    %1112 = vmatpush1.msra.mxu0 %v896
    %1113 = vmatprep.subr.mxu0 0.0
    %1114 = vmatpush2.msra.mxu0 0.0
    %1115 = vmatprep.subr.mxu0 0.0
    %1116 = vmatpush2.msra.mxu0 0.0
    %1117 = vmatprep.subr.mxu0 0.0
    %1118 = vmatpush2.msra.mxu0 0.0
    %1119 = vmatprep.subr.mxu0 0.0
    %1120 = vmatpush2.msra.mxu0 0.0
    %1121 = vmatprep.subr.mxu0 0.0
    %1122 = vmatpush2.msra.mxu0 0.0
    %1123 = vmatprep.subr.mxu0 0.0
    %1124 = vmatpush2.msra.mxu0 0.0
    %1125 = vmatprep.subr.mxu0 0.0
    %1126 = vmatpush2.msra.mxu0 0.0
    %1127 = vmatprep.subr.mxu0 0.0
    %1128 = vmatpush2.msra.mxu0 0.0
    %1129 = vmatprep.subr.mxu0 0.0
    %1130 = vmatpush2.msra.mxu0 0.0
    %1131 = vmatprep.subr.mxu0 0.0
    %1132 = vmatpush2.msra.mxu0 0.0
    %1133 = vmatprep.subr.mxu0 0.0
    %1134 = vmatpush2.msra.mxu0 0.0
    %1135 = vmatprep.subr.mxu0 0.0
    %1136 = vmatpush2.msra.mxu0 0.0
    %1137 = vmatprep.subr.mxu0 0.0
    %1138 = vmatpush2.msra.mxu0 0.0
    %1139 = vmatprep.subr.mxu0 0.0
    %1140 = vmatpush2.msra.mxu0 0.0
    %1141 = vmatprep.subr.mxu0 0.0
    %1142 = vmatpush2.msra.mxu0 0.0
    %1143 = vmatprep.subr.mxu0 0.0
    %1144 = vmatpush2.msra.mxu0 0.0
    %1145 = vmatprep.mubr.f32.mxu0 0.0
    %1146 = vmatmul.mubr.f32.gmra.mxu0 %v1079
    %v1147 = vpop.f32.mrf.mxu0
    %v1148 = vadd.f32 0.0, %v1147
    %v1149 = vpop.f32.mrf.mxu0
    %1150 = vdwg.mxu0
    %v1152 = vsel %vm491, %v1077, 0
    %1154 = vmatprep.subr.mxu0 0.0
    %1155 = vmatpush1.msra.mxu0 0.0
    %1156 = vmatprep.subr.mxu0 0.0
    %1157 = vmatpush1.msra.mxu0 0.0
    %1158 = vmatprep.subr.mxu0 0.0
    %1159 = vmatpush1.msra.mxu0 0.0
    %1160 = vmatprep.subr.mxu0 0.0
    %1161 = vmatpush1.msra.mxu0 0.0
    %1162 = vmatprep.subr.mxu0 0.0
    %1163 = vmatpush1.msra.mxu0 0.0
    %1164 = vmatprep.subr.mxu0 0.0
    %1165 = vmatpush1.msra.mxu0 0.0
    %1166 = vmatprep.subr.mxu0 0.0
    %1167 = vmatpush1.msra.mxu0 0.0
    %1168 = vmatprep.subr.mxu0 0.0
    %1169 = vmatpush1.msra.mxu0 0.0
    %1170 = vmatprep.subr.mxu0 0.0
    %1171 = vmatpush1.msra.mxu0 0.0
    %1172 = vmatprep.subr.mxu0 0.0
    %1173 = vmatpush1.msra.mxu0 0.0
    %1174 = vmatprep.subr.mxu0 0.0
    %1175 = vmatpush1.msra.mxu0 0.0
    %1176 = vmatprep.subr.mxu0 0.0
    %1177 = vmatpush1.msra.mxu0 0.0
    %1178 = vmatprep.subr.mxu0 0.0
    %1179 = vmatpush1.msra.mxu0 0.0
    %1180 = vmatprep.subr.mxu0 0.0
    %1181 = vmatpush1.msra.mxu0 0.0
    %1182 = vmatprep.subr.mxu0 0.0
    %1183 = vmatpush1.msra.mxu0 0.0
    %1184 = vmatprep.subr.mxu0 0.0
    %1185 = vmatpush1.msra.mxu0 %v901
    %1186 = vmatprep.subr.mxu0 0.0
    %1187 = vmatpush2.msra.mxu0 0.0
    %1188 = vmatprep.subr.mxu0 0.0
    %1189 = vmatpush2.msra.mxu0 0.0
    %1190 = vmatprep.subr.mxu0 0.0
    %1191 = vmatpush2.msra.mxu0 0.0
    %1192 = vmatprep.subr.mxu0 0.0
    %1193 = vmatpush2.msra.mxu0 0.0
    %1194 = vmatprep.subr.mxu0 0.0
    %1195 = vmatpush2.msra.mxu0 0.0
    %1196 = vmatprep.subr.mxu0 0.0
    %1197 = vmatpush2.msra.mxu0 0.0
    %1198 = vmatprep.subr.mxu0 0.0
    %1199 = vmatpush2.msra.mxu0 0.0
    %1200 = vmatprep.subr.mxu0 0.0
    %1201 = vmatpush2.msra.mxu0 0.0
    %1202 = vmatprep.subr.mxu0 0.0
    %1203 = vmatpush2.msra.mxu0 0.0
    %1204 = vmatprep.subr.mxu0 0.0
    %1205 = vmatpush2.msra.mxu0 0.0
    %1206 = vmatprep.subr.mxu0 0.0
    %1207 = vmatpush2.msra.mxu0 0.0
    %1208 = vmatprep.subr.mxu0 0.0
    %1209 = vmatpush2.msra.mxu0 0.0
    %1210 = vmatprep.subr.mxu0 0.0
    %1211 = vmatpush2.msra.mxu0 0.0
    %1212 = vmatprep.subr.mxu0 0.0
    %1213 = vmatpush2.msra.mxu0 0.0
    %1214 = vmatprep.subr.mxu0 0.0
    %1215 = vmatpush2.msra.mxu0 0.0
    %1216 = vmatprep.subr.mxu0 0.0
    %1217 = vmatpush2.msra.mxu0 0.0
    %1218 = vmatprep.mubr.f32.mxu0 0.0
    %1219 = vmatmul.mubr.f32.gmra.mxu0 %v1152
    %v1220 = vpop.f32.mrf.mxu0
    %v1221 = vadd.f32 0.0, %v1220
    %v1222 = vpop.f32.mrf.mxu0
    %1223 = vdwg.mxu0
    %s1224 = scalar_lea.vmem [#allocation10], 32
    %v1225 = vld [vmem:[%s1224] sm:$0xff]
    %v1226 = vld [vmem:[%s1224 + $0x8] sm:$0xff]
    %v1227 = vld [vmem:[%s1224 + $0x10] sm:$0xff]
    %v1228 = vld [vmem:[%s1224 + $0x18] sm:$0xff]
    %v1230 = vsel %vm99, %v1148, 0
    %v1233 = vsel %vm99, %v1221, 0
    %1235 = vmatprep.subr.mxu0 0.0
    %1236 = vmatpush1.msra.mxu0 0.0
    %1237 = vmatprep.subr.mxu0 0.0
    %1238 = vmatpush1.msra.mxu0 0.0
    %1239 = vmatprep.subr.mxu0 0.0
    %1240 = vmatpush1.msra.mxu0 0.0
    %1241 = vmatprep.subr.mxu0 0.0
    %1242 = vmatpush1.msra.mxu0 0.0
    %1243 = vmatprep.subr.mxu0 0.0
    %1244 = vmatpush1.msra.mxu0 0.0
    %1245 = vmatprep.subr.mxu0 0.0
    %1246 = vmatpush1.msra.mxu0 0.0
    %1247 = vmatprep.subr.mxu0 0.0
    %1248 = vmatpush1.msra.mxu0 0.0
    %1249 = vmatprep.subr.mxu0 0.0
    %1250 = vmatpush1.msra.mxu0 0.0
    %1251 = vmatprep.subr.mxu0 0.0
    %1252 = vmatpush1.msra.mxu0 0.0
    %1253 = vmatprep.subr.mxu0 0.0
    %1254 = vmatpush1.msra.mxu0 0.0
    %1255 = vmatprep.subr.mxu0 0.0
    %1256 = vmatpush1.msra.mxu0 0.0
    %1257 = vmatprep.subr.mxu0 0.0
    %1258 = vmatpush1.msra.mxu0 0.0
    %1259 = vmatprep.subr.mxu0 0.0
    %1260 = vmatpush1.msra.mxu0 %v1228
    %1261 = vmatprep.subr.mxu0 0.0
    %1262 = vmatpush1.msra.mxu0 %v1227
    %1263 = vmatprep.subr.mxu0 0.0
    %1264 = vmatpush1.msra.mxu0 %v1226
    %1265 = vmatprep.subr.mxu0 0.0
    %1266 = vmatpush1.msra.mxu0 %v1225
    %1267 = vmatprep.subr.mxu0 0.0
    %1268 = vmatpush2.msra.mxu0 0.0
    %1269 = vmatprep.subr.mxu0 0.0
    %1270 = vmatpush2.msra.mxu0 0.0
    %1271 = vmatprep.subr.mxu0 0.0
    %1272 = vmatpush2.msra.mxu0 0.0
    %1273 = vmatprep.subr.mxu0 0.0
    %1274 = vmatpush2.msra.mxu0 0.0
    %1275 = vmatprep.subr.mxu0 0.0
    %1276 = vmatpush2.msra.mxu0 0.0
    %1277 = vmatprep.subr.mxu0 0.0
    %1278 = vmatpush2.msra.mxu0 0.0
    %1279 = vmatprep.subr.mxu0 0.0
    %1280 = vmatpush2.msra.mxu0 0.0
    %1281 = vmatprep.subr.mxu0 0.0
    %1282 = vmatpush2.msra.mxu0 0.0
    %1283 = vmatprep.subr.mxu0 0.0
    %1284 = vmatpush2.msra.mxu0 0.0
    %1285 = vmatprep.subr.mxu0 0.0
    %1286 = vmatpush2.msra.mxu0 0.0
    %1287 = vmatprep.subr.mxu0 0.0
    %1288 = vmatpush2.msra.mxu0 0.0
    %1289 = vmatprep.subr.mxu0 0.0
    %1290 = vmatpush2.msra.mxu0 0.0
    %1291 = vmatprep.subr.mxu0 0.0
    %1292 = vmatpush2.msra.mxu0 0.0
    %1293 = vmatprep.subr.mxu0 0.0
    %1294 = vmatpush2.msra.mxu0 0.0
    %1295 = vmatprep.subr.mxu0 0.0
    %1296 = vmatpush2.msra.mxu0 0.0
    %1297 = vmatprep.subr.mxu0 0.0
    %1298 = vmatpush2.msra.mxu0 0.0
    %1299 = vmatprep.mubr.f32.mxu0 0.0
    %1300 = vmatmul.mubr.f32.gmra.mxu0 %v1230
    %v1301 = vpop.f32.mrf.mxu0
    %v1302 = vadd.f32 0.0, %v1301
    %v1303 = vpop.f32.mrf.mxu0
    %1304 = vmatprep.mubr.f32.mxu0 0.0
    %1305 = vmatmul.mubr.f32.gmra.mxu0 %v1233
    %v1306 = vpop.f32.mrf.mxu0
    %v1307 = vadd.f32 0.0, %v1306
    %v1308 = vpop.f32.mrf.mxu0
    %1309 = vdwg.mxu0
    %v1311 = vsel %vm99, %v584, 0
    %v1314 = vsel %vm99, %v657, 0
    %1316 = vmatprep.subr.mxu0 0.0
    %1317 = vmatpush1.msra.mxu0 0.0
    %1318 = vmatprep.subr.mxu0 0.0
    %1319 = vmatpush1.msra.mxu0 0.0
    %1320 = vmatprep.subr.mxu0 0.0
    %1321 = vmatpush1.msra.mxu0 0.0
    %1322 = vmatprep.subr.mxu0 0.0
    %1323 = vmatpush1.msra.mxu0 0.0
    %1324 = vmatprep.subr.mxu0 0.0
    %1325 = vmatpush1.msra.mxu0 0.0
    %1326 = vmatprep.subr.mxu0 0.0
    %1327 = vmatpush1.msra.mxu0 0.0
    %1328 = vmatprep.subr.mxu0 0.0
    %1329 = vmatpush1.msra.mxu0 0.0
    %1330 = vmatprep.subr.mxu0 0.0
    %1331 = vmatpush1.msra.mxu0 0.0
    %1332 = vmatprep.subr.mxu0 0.0
    %1333 = vmatpush1.msra.mxu0 0.0
    %1334 = vmatprep.subr.mxu0 0.0
    %1335 = vmatpush1.msra.mxu0 0.0
    %1336 = vmatprep.subr.mxu0 0.0
    %1337 = vmatpush1.msra.mxu0 0.0
    %1338 = vmatprep.subr.mxu0 0.0
    %1339 = vmatpush1.msra.mxu0 0.0
    %1340 = vmatprep.subr.mxu0 0.0
    %1341 = vmatpush1.msra.mxu0 %v663
    %1342 = vmatprep.subr.mxu0 0.0
    %1343 = vmatpush1.msra.mxu0 %v662
    %1344 = vmatprep.subr.mxu0 0.0
    %1345 = vmatpush1.msra.mxu0 %v661
    %1346 = vmatprep.subr.mxu0 0.0
    %1347 = vmatpush1.msra.mxu0 %v660
    %1348 = vmatprep.subr.mxu0 0.0
    %1349 = vmatpush2.msra.mxu0 0.0
    %1350 = vmatprep.subr.mxu0 0.0
    %1351 = vmatpush2.msra.mxu0 0.0
    %1352 = vmatprep.subr.mxu0 0.0
    %1353 = vmatpush2.msra.mxu0 0.0
    %1354 = vmatprep.subr.mxu0 0.0
    %1355 = vmatpush2.msra.mxu0 0.0
    %1356 = vmatprep.subr.mxu0 0.0
    %1357 = vmatpush2.msra.mxu0 0.0
    %1358 = vmatprep.subr.mxu0 0.0
    %1359 = vmatpush2.msra.mxu0 0.0
    %1360 = vmatprep.subr.mxu0 0.0
    %1361 = vmatpush2.msra.mxu0 0.0
    %1362 = vmatprep.subr.mxu0 0.0
    %1363 = vmatpush2.msra.mxu0 0.0
    %1364 = vmatprep.subr.mxu0 0.0
    %1365 = vmatpush2.msra.mxu0 0.0
    %1366 = vmatprep.subr.mxu0 0.0
    %1367 = vmatpush2.msra.mxu0 0.0
    %1368 = vmatprep.subr.mxu0 0.0
    %1369 = vmatpush2.msra.mxu0 0.0
    %1370 = vmatprep.subr.mxu0 0.0
    %1371 = vmatpush2.msra.mxu0 0.0
    %1372 = vmatprep.subr.mxu0 0.0
    %1373 = vmatpush2.msra.mxu0 0.0
    %1374 = vmatprep.subr.mxu0 0.0
    %1375 = vmatpush2.msra.mxu0 0.0
    %1376 = vmatprep.subr.mxu0 0.0
    %1377 = vmatpush2.msra.mxu0 0.0
    %1378 = vmatprep.subr.mxu0 0.0
    %1379 = vmatpush2.msra.mxu0 0.0
    %1380 = vmatprep.mubr.f32.mxu0 0.0
    %1381 = vmatmul.mubr.f32.gmra.mxu0 %v1311
    %v1382 = vpop.f32.mrf.mxu0
    %v1383 = vadd.f32 %v1302, %v1382
    %v1384 = vpop.f32.mrf.mxu0
    %1385 = vmatprep.mubr.f32.mxu0 0.0
    %1386 = vmatmul.mubr.f32.gmra.mxu0 %v1314
    %v1387 = vpop.f32.mrf.mxu0
    %v1388 = vadd.f32 %v1307, %v1387
    %v1389 = vpop.f32.mrf.mxu0
    %1390 = vdwg.mxu0
    %s1391 = scalar_lea.vmem [#allocation5], 64
    %v1392 = vld [vmem:[%s1391] sm:$0xff]
    %v1393 = vld [vmem:[%s1391 + $0x8] sm:$0xff]
    %v1394 = vld [vmem:[%s1391 + $0x10] sm:$0xff]
    %v1395 = vld [vmem:[%s1391 + $0x18] sm:$0xff]
    %1396 = vmatprep.subr.mxu0 0.0
    %1397 = vmatpush1.msra.mxu0 0.0
    %1398 = vmatprep.subr.mxu0 0.0
    %1399 = vmatpush1.msra.mxu0 0.0
    %1400 = vmatprep.subr.mxu0 0.0
    %1401 = vmatpush1.msra.mxu0 0.0
    %1402 = vmatprep.subr.mxu0 0.0
    %1403 = vmatpush1.msra.mxu0 0.0
    %1404 = vmatprep.subr.mxu0 0.0
    %1405 = vmatpush1.msra.mxu0 0.0
    %1406 = vmatprep.subr.mxu0 0.0
    %1407 = vmatpush1.msra.mxu0 0.0
    %1408 = vmatprep.subr.mxu0 0.0
    %1409 = vmatpush1.msra.mxu0 0.0
    %1410 = vmatprep.subr.mxu0 0.0
    %1411 = vmatpush1.msra.mxu0 0.0
    %1412 = vmatprep.subr.mxu0 0.0
    %1413 = vmatpush1.msra.mxu0 0.0
    %1414 = vmatprep.subr.mxu0 0.0
    %1415 = vmatpush1.msra.mxu0 0.0
    %1416 = vmatprep.subr.mxu0 0.0
    %1417 = vmatpush1.msra.mxu0 0.0
    %1418 = vmatprep.subr.mxu0 0.0
    %1419 = vmatpush1.msra.mxu0 0.0
    %1420 = vmatprep.subr.mxu0 0.0
    %1421 = vmatpush1.msra.mxu0 %v1395
    %1422 = vmatprep.subr.mxu0 0.0
    %1423 = vmatpush1.msra.mxu0 %v1394
    %1424 = vmatprep.subr.mxu0 0.0
    %1425 = vmatpush1.msra.mxu0 %v1393
    %1426 = vmatprep.subr.mxu0 0.0
    %1427 = vmatpush1.msra.mxu0 %v1392
    %1428 = vmatprep.subr.mxu0 0.0
    %1429 = vmatpush2.msra.mxu0 0.0
    %1430 = vmatprep.subr.mxu0 0.0
    %1431 = vmatpush2.msra.mxu0 0.0
    %1432 = vmatprep.subr.mxu0 0.0
    %1433 = vmatpush2.msra.mxu0 0.0
    %1434 = vmatprep.subr.mxu0 0.0
    %1435 = vmatpush2.msra.mxu0 0.0
    %1436 = vmatprep.subr.mxu0 0.0
    %1437 = vmatpush2.msra.mxu0 0.0
    %1438 = vmatprep.subr.mxu0 0.0
    %1439 = vmatpush2.msra.mxu0 0.0
    %1440 = vmatprep.subr.mxu0 0.0
    %1441 = vmatpush2.msra.mxu0 0.0
    %1442 = vmatprep.subr.mxu0 0.0
    %1443 = vmatpush2.msra.mxu0 0.0
    %1444 = vmatprep.subr.mxu0 0.0
    %1445 = vmatpush2.msra.mxu0 0.0
    %1446 = vmatprep.subr.mxu0 0.0
    %1447 = vmatpush2.msra.mxu0 0.0
    %1448 = vmatprep.subr.mxu0 0.0
    %1449 = vmatpush2.msra.mxu0 0.0
    %1450 = vmatprep.subr.mxu0 0.0
    %1451 = vmatpush2.msra.mxu0 0.0
    %1452 = vmatprep.subr.mxu0 0.0
    %1453 = vmatpush2.msra.mxu0 0.0
    %1454 = vmatprep.subr.mxu0 0.0
    %1455 = vmatpush2.msra.mxu0 0.0
    %1456 = vmatprep.subr.mxu0 0.0
    %1457 = vmatpush2.msra.mxu0 0.0
    %1458 = vmatprep.subr.mxu0 0.0
    %1459 = vmatpush2.msra.mxu0 0.0
    %1460 = vmatprep.mubr.f32.mxu0 0.0
    %1461 = vmatmul.mubr.f32.gmra.mxu0 %v101
    %v1462 = vpop.f32.mrf.mxu0
    %v1463 = vadd.f32 0.0, %v1462
    %v1464 = vpop.f32.mrf.mxu0
    %1465 = vmatprep.mubr.f32.mxu0 0.0
    %1466 = vmatmul.mubr.f32.gmra.mxu0 %v104
    %v1467 = vpop.f32.mrf.mxu0
    %v1468 = vadd.f32 0.0, %v1467
    %v1469 = vpop.f32.mrf.mxu0
    %1470 = vdwg.mxu0
    %s1471 = scalar_lea.vmem [#allocation7], 64
    %v1472 = vld [vmem:[%s1471] sm:$0xff]
    %v1473 = vld [vmem:[%s1471 + $0x8] sm:$0xff]
    %v1474 = vld [vmem:[%s1471 + $0x10] sm:$0xff]
    %v1475 = vld [vmem:[%s1471 + $0x18] sm:$0xff]
    %1476 = vmatprep.subr.mxu0 0.0
    %1477 = vmatpush1.msra.mxu0 0.0
    %1478 = vmatprep.subr.mxu0 0.0
    %1479 = vmatpush1.msra.mxu0 0.0
    %1480 = vmatprep.subr.mxu0 0.0
    %1481 = vmatpush1.msra.mxu0 0.0
    %1482 = vmatprep.subr.mxu0 0.0
    %1483 = vmatpush1.msra.mxu0 0.0
    %1484 = vmatprep.subr.mxu0 0.0
    %1485 = vmatpush1.msra.mxu0 0.0
    %1486 = vmatprep.subr.mxu0 0.0
    %1487 = vmatpush1.msra.mxu0 0.0
    %1488 = vmatprep.subr.mxu0 0.0
    %1489 = vmatpush1.msra.mxu0 0.0
    %1490 = vmatprep.subr.mxu0 0.0
    %1491 = vmatpush1.msra.mxu0 0.0
    %1492 = vmatprep.subr.mxu0 0.0
    %1493 = vmatpush1.msra.mxu0 0.0
    %1494 = vmatprep.subr.mxu0 0.0
    %1495 = vmatpush1.msra.mxu0 0.0
    %1496 = vmatprep.subr.mxu0 0.0
    %1497 = vmatpush1.msra.mxu0 0.0
    %1498 = vmatprep.subr.mxu0 0.0
    %1499 = vmatpush1.msra.mxu0 0.0
    %1500 = vmatprep.subr.mxu0 0.0
    %1501 = vmatpush1.msra.mxu0 %v1475
    %1502 = vmatprep.subr.mxu0 0.0
    %1503 = vmatpush1.msra.mxu0 %v1474
    %1504 = vmatprep.subr.mxu0 0.0
    %1505 = vmatpush1.msra.mxu0 %v1473
    %1506 = vmatprep.subr.mxu0 0.0
    %1507 = vmatpush1.msra.mxu0 %v1472
    %1508 = vmatprep.subr.mxu0 0.0
    %1509 = vmatpush2.msra.mxu0 0.0
    %1510 = vmatprep.subr.mxu0 0.0
    %1511 = vmatpush2.msra.mxu0 0.0
    %1512 = vmatprep.subr.mxu0 0.0
    %1513 = vmatpush2.msra.mxu0 0.0
    %1514 = vmatprep.subr.mxu0 0.0
    %1515 = vmatpush2.msra.mxu0 0.0
    %1516 = vmatprep.subr.mxu0 0.0
    %1517 = vmatpush2.msra.mxu0 0.0
    %1518 = vmatprep.subr.mxu0 0.0
    %1519 = vmatpush2.msra.mxu0 0.0
    %1520 = vmatprep.subr.mxu0 0.0
    %1521 = vmatpush2.msra.mxu0 0.0
    %1522 = vmatprep.subr.mxu0 0.0
    %1523 = vmatpush2.msra.mxu0 0.0
    %1524 = vmatprep.subr.mxu0 0.0
    %1525 = vmatpush2.msra.mxu0 0.0
    %1526 = vmatprep.subr.mxu0 0.0
    %1527 = vmatpush2.msra.mxu0 0.0
    %1528 = vmatprep.subr.mxu0 0.0
    %1529 = vmatpush2.msra.mxu0 0.0
    %1530 = vmatprep.subr.mxu0 0.0
    %1531 = vmatpush2.msra.mxu0 0.0
    %1532 = vmatprep.subr.mxu0 0.0
    %1533 = vmatpush2.msra.mxu0 0.0
    %1534 = vmatprep.subr.mxu0 0.0
    %1535 = vmatpush2.msra.mxu0 0.0
    %1536 = vmatprep.subr.mxu0 0.0
    %1537 = vmatpush2.msra.mxu0 0.0
    %1538 = vmatprep.subr.mxu0 0.0
    %1539 = vmatpush2.msra.mxu0 0.0
    %1540 = vmatprep.mubr.f32.mxu0 0.0
    %1541 = vmatmul.mubr.f32.gmra.mxu0 %v101
    %v1542 = vpop.f32.mrf.mxu0
    %v1543 = vadd.f32 0.0, %v1542
    %v1544 = vpop.f32.mrf.mxu0
    %1545 = vmatprep.mubr.f32.mxu0 0.0
    %1546 = vmatmul.mubr.f32.gmra.mxu0 %v104
    %v1547 = vpop.f32.mrf.mxu0
    %v1548 = vadd.f32 0.0, %v1547
    %v1549 = vpop.f32.mrf.mxu0
    %1550 = vdwg.mxu0
    %s1551 = scalar_lea.vmem [#allocation8], 64
    %v1552 = vld [vmem:[%s1551] sm:$0xff]
    %v1553 = vld [vmem:[%s1551 + $0x8] sm:$0xff]
    %v1554 = vld [vmem:[%s1551 + $0x10] sm:$0xff]
    %v1555 = vld [vmem:[%s1551 + $0x18] sm:$0xff]
    %1556 = vmatprep.subr.mxu0 0.0
    %1557 = vmatpush1.msra.mxu0 0.0
    %1558 = vmatprep.subr.mxu0 0.0
    %1559 = vmatpush1.msra.mxu0 0.0
    %1560 = vmatprep.subr.mxu0 0.0
    %1561 = vmatpush1.msra.mxu0 0.0
    %1562 = vmatprep.subr.mxu0 0.0
    %1563 = vmatpush1.msra.mxu0 0.0
    %1564 = vmatprep.subr.mxu0 0.0
    %1565 = vmatpush1.msra.mxu0 0.0
    %1566 = vmatprep.subr.mxu0 0.0
    %1567 = vmatpush1.msra.mxu0 0.0
    %1568 = vmatprep.subr.mxu0 0.0
    %1569 = vmatpush1.msra.mxu0 0.0
    %1570 = vmatprep.subr.mxu0 0.0
    %1571 = vmatpush1.msra.mxu0 0.0
    %1572 = vmatprep.subr.mxu0 0.0
    %1573 = vmatpush1.msra.mxu0 0.0
    %1574 = vmatprep.subr.mxu0 0.0
    %1575 = vmatpush1.msra.mxu0 0.0
    %1576 = vmatprep.subr.mxu0 0.0
    %1577 = vmatpush1.msra.mxu0 0.0
    %1578 = vmatprep.subr.mxu0 0.0
    %1579 = vmatpush1.msra.mxu0 0.0
    %1580 = vmatprep.subr.mxu0 0.0
    %1581 = vmatpush1.msra.mxu0 %v1555
    %1582 = vmatprep.subr.mxu0 0.0
    %1583 = vmatpush1.msra.mxu0 %v1554
    %1584 = vmatprep.subr.mxu0 0.0
    %1585 = vmatpush1.msra.mxu0 %v1553
    %1586 = vmatprep.subr.mxu0 0.0
    %1587 = vmatpush1.msra.mxu0 %v1552
    %1588 = vmatprep.subr.mxu0 0.0
    %1589 = vmatpush2.msra.mxu0 0.0
    %1590 = vmatprep.subr.mxu0 0.0
    %1591 = vmatpush2.msra.mxu0 0.0
    %1592 = vmatprep.subr.mxu0 0.0
    %1593 = vmatpush2.msra.mxu0 0.0
    %1594 = vmatprep.subr.mxu0 0.0
    %1595 = vmatpush2.msra.mxu0 0.0
    %1596 = vmatprep.subr.mxu0 0.0
    %1597 = vmatpush2.msra.mxu0 0.0
    %1598 = vmatprep.subr.mxu0 0.0
    %1599 = vmatpush2.msra.mxu0 0.0
    %1600 = vmatprep.subr.mxu0 0.0
    %1601 = vmatpush2.msra.mxu0 0.0
    %1602 = vmatprep.subr.mxu0 0.0
    %1603 = vmatpush2.msra.mxu0 0.0
    %1604 = vmatprep.subr.mxu0 0.0
    %1605 = vmatpush2.msra.mxu0 0.0
    %1606 = vmatprep.subr.mxu0 0.0
    %1607 = vmatpush2.msra.mxu0 0.0
    %1608 = vmatprep.subr.mxu0 0.0
    %1609 = vmatpush2.msra.mxu0 0.0
    %1610 = vmatprep.subr.mxu0 0.0
    %1611 = vmatpush2.msra.mxu0 0.0
    %1612 = vmatprep.subr.mxu0 0.0
    %1613 = vmatpush2.msra.mxu0 0.0
    %1614 = vmatprep.subr.mxu0 0.0
    %1615 = vmatpush2.msra.mxu0 0.0
    %1616 = vmatprep.subr.mxu0 0.0
    %1617 = vmatpush2.msra.mxu0 0.0
    %1618 = vmatprep.subr.mxu0 0.0
    %1619 = vmatpush2.msra.mxu0 0.0
    %1620 = vmatprep.mubr.f32.mxu0 0.0
    %1621 = vmatmul.mubr.f32.gmra.mxu0 %v101
    %v1622 = vpop.f32.mrf.mxu0
    %v1623 = vadd.f32 0.0, %v1622
    %v1624 = vpop.f32.mrf.mxu0
    %1625 = vmatprep.mubr.f32.mxu0 0.0
    %1626 = vmatmul.mubr.f32.gmra.mxu0 %v104
    %v1627 = vpop.f32.mrf.mxu0
    %v1628 = vadd.f32 0.0, %v1627
    %v1629 = vpop.f32.mrf.mxu0
    %1630 = vdwg.mxu0
    %v1632 = vsel %vm99, %v1463, 0
    %v1635 = vsel %vm99, %v1543, 0
    %1637 = vmatprep.subr.mxu0 0.0
    %1638 = vmatpush1.xpose.msra.mxu0 0.0
    %1639 = vmatprep.subr.mxu0 0.0
    %1640 = vmatpush1.xpose.msra.mxu0 0.0
    %1641 = vmatprep.subr.mxu0 0.0
    %1642 = vmatpush1.xpose.msra.mxu0 0.0
    %1643 = vmatprep.subr.mxu0 0.0
    %1644 = vmatpush1.xpose.msra.mxu0 0.0
    %1645 = vmatprep.subr.mxu0 0.0
    %1646 = vmatpush1.xpose.msra.mxu0 0.0
    %1647 = vmatprep.subr.mxu0 0.0
    %1648 = vmatpush1.xpose.msra.mxu0 0.0
    %1649 = vmatprep.subr.mxu0 0.0
    %1650 = vmatpush1.xpose.msra.mxu0 0.0
    %1651 = vmatprep.subr.mxu0 0.0
    %1652 = vmatpush1.xpose.msra.mxu0 0.0
    %1653 = vmatprep.subr.mxu0 0.0
    %1654 = vmatpush1.xpose.msra.mxu0 0.0
    %1655 = vmatprep.subr.mxu0 0.0
    %1656 = vmatpush1.xpose.msra.mxu0 0.0
    %1657 = vmatprep.subr.mxu0 0.0
    %1658 = vmatpush1.xpose.msra.mxu0 0.0
    %1659 = vmatprep.subr.mxu0 0.0
    %1660 = vmatpush1.xpose.msra.mxu0 0.0
    %1661 = vmatprep.subr.mxu0 0.0
    %1662 = vmatpush1.xpose.msra.mxu0 0.0
    %1663 = vmatprep.subr.mxu0 0.0
    %1664 = vmatpush1.xpose.msra.mxu0 0.0
    %1665 = vmatprep.subr.mxu0 0.0
    %1666 = vmatpush1.xpose.msra.mxu0 0.0
    %1667 = vmatprep.subr.mxu0 0.0
    %1668 = vmatpush1.xpose.msra.mxu0 %v1635
    %1669 = vmatprep.subr.mxu0 0.0
    %1670 = vmatpush2.xpose.msra.mxu0 0.0
    %1671 = vmatprep.subr.mxu0 0.0
    %1672 = vmatpush2.xpose.msra.mxu0 0.0
    %1673 = vmatprep.subr.mxu0 0.0
    %1674 = vmatpush2.xpose.msra.mxu0 0.0
    %1675 = vmatprep.subr.mxu0 0.0
    %1676 = vmatpush2.xpose.msra.mxu0 0.0
    %1677 = vmatprep.subr.mxu0 0.0
    %1678 = vmatpush2.xpose.msra.mxu0 0.0
    %1679 = vmatprep.subr.mxu0 0.0
    %1680 = vmatpush2.xpose.msra.mxu0 0.0
    %1681 = vmatprep.subr.mxu0 0.0
    %1682 = vmatpush2.xpose.msra.mxu0 0.0
    %1683 = vmatprep.subr.mxu0 0.0
    %1684 = vmatpush2.xpose.msra.mxu0 0.0
    %1685 = vmatprep.subr.mxu0 0.0
    %1686 = vmatpush2.xpose.msra.mxu0 0.0
    %1687 = vmatprep.subr.mxu0 0.0
    %1688 = vmatpush2.xpose.msra.mxu0 0.0
    %1689 = vmatprep.subr.mxu0 0.0
    %1690 = vmatpush2.xpose.msra.mxu0 0.0
    %1691 = vmatprep.subr.mxu0 0.0
    %1692 = vmatpush2.xpose.msra.mxu0 0.0
    %1693 = vmatprep.subr.mxu0 0.0
    %1694 = vmatpush2.xpose.msra.mxu0 0.0
    %1695 = vmatprep.subr.mxu0 0.0
    %1696 = vmatpush2.xpose.msra.mxu0 0.0
    %1697 = vmatprep.subr.mxu0 0.0
    %1698 = vmatpush2.xpose.msra.mxu0 0.0
    %1699 = vmatprep.subr.mxu0 0.0
    %1700 = vmatpush2.xpose.msra.mxu0 0.0
    %1701 = vmatprep.mubr.f32.mxu0 0.0
    %1702 = vmatmul.mubr.f32.gmra.mxu0 %v1632
    %v1703 = vpop.f32.mrf.mxu0
    %v1704 = vadd.f32 0.0, %v1703
    %v1705 = vpop.f32.mrf.mxu0
    %1706 = vdwg.mxu0
    %v1708 = vsel %vm99, %v1468, 0
    %v1711 = vsel %vm99, %v1548, 0
    %1713 = vmatprep.subr.mxu0 0.0
    %1714 = vmatpush1.xpose.msra.mxu0 0.0
    %1715 = vmatprep.subr.mxu0 0.0
    %1716 = vmatpush1.xpose.msra.mxu0 0.0
    %1717 = vmatprep.subr.mxu0 0.0
    %1718 = vmatpush1.xpose.msra.mxu0 0.0
    %1719 = vmatprep.subr.mxu0 0.0
    %1720 = vmatpush1.xpose.msra.mxu0 0.0
    %1721 = vmatprep.subr.mxu0 0.0
    %1722 = vmatpush1.xpose.msra.mxu0 0.0
    %1723 = vmatprep.subr.mxu0 0.0
    %1724 = vmatpush1.xpose.msra.mxu0 0.0
    %1725 = vmatprep.subr.mxu0 0.0
    %1726 = vmatpush1.xpose.msra.mxu0 0.0
    %1727 = vmatprep.subr.mxu0 0.0
    %1728 = vmatpush1.xpose.msra.mxu0 0.0
    %1729 = vmatprep.subr.mxu0 0.0
    %1730 = vmatpush1.xpose.msra.mxu0 0.0
    %1731 = vmatprep.subr.mxu0 0.0
    %1732 = vmatpush1.xpose.msra.mxu0 0.0
    %1733 = vmatprep.subr.mxu0 0.0
    %1734 = vmatpush1.xpose.msra.mxu0 0.0
    %1735 = vmatprep.subr.mxu0 0.0
    %1736 = vmatpush1.xpose.msra.mxu0 0.0
    %1737 = vmatprep.subr.mxu0 0.0
    %1738 = vmatpush1.xpose.msra.mxu0 0.0
    %1739 = vmatprep.subr.mxu0 0.0
    %1740 = vmatpush1.xpose.msra.mxu0 0.0
    %1741 = vmatprep.subr.mxu0 0.0
    %1742 = vmatpush1.xpose.msra.mxu0 0.0
    %1743 = vmatprep.subr.mxu0 0.0
    %1744 = vmatpush1.xpose.msra.mxu0 %v1711
    %1745 = vmatprep.subr.mxu0 0.0
    %1746 = vmatpush2.xpose.msra.mxu0 0.0
    %1747 = vmatprep.subr.mxu0 0.0
    %1748 = vmatpush2.xpose.msra.mxu0 0.0
    %1749 = vmatprep.subr.mxu0 0.0
    %1750 = vmatpush2.xpose.msra.mxu0 0.0
    %1751 = vmatprep.subr.mxu0 0.0
    %1752 = vmatpush2.xpose.msra.mxu0 0.0
    %1753 = vmatprep.subr.mxu0 0.0
    %1754 = vmatpush2.xpose.msra.mxu0 0.0
    %1755 = vmatprep.subr.mxu0 0.0
    %1756 = vmatpush2.xpose.msra.mxu0 0.0
    %1757 = vmatprep.subr.mxu0 0.0
    %1758 = vmatpush2.xpose.msra.mxu0 0.0
    %1759 = vmatprep.subr.mxu0 0.0
    %1760 = vmatpush2.xpose.msra.mxu0 0.0
    %1761 = vmatprep.subr.mxu0 0.0
    %1762 = vmatpush2.xpose.msra.mxu0 0.0
    %1763 = vmatprep.subr.mxu0 0.0
    %1764 = vmatpush2.xpose.msra.mxu0 0.0
    %1765 = vmatprep.subr.mxu0 0.0
    %1766 = vmatpush2.xpose.msra.mxu0 0.0
    %1767 = vmatprep.subr.mxu0 0.0
    %1768 = vmatpush2.xpose.msra.mxu0 0.0
    %1769 = vmatprep.subr.mxu0 0.0
    %1770 = vmatpush2.xpose.msra.mxu0 0.0
    %1771 = vmatprep.subr.mxu0 0.0
    %1772 = vmatpush2.xpose.msra.mxu0 0.0
    %1773 = vmatprep.subr.mxu0 0.0
    %1774 = vmatpush2.xpose.msra.mxu0 0.0
    %1775 = vmatprep.subr.mxu0 0.0
    %1776 = vmatpush2.xpose.msra.mxu0 0.0
    %1777 = vmatprep.mubr.f32.mxu0 0.0
    %1778 = vmatmul.mubr.f32.gmra.mxu0 %v1708
    %v1779 = vpop.f32.mrf.mxu0
    %v1780 = vadd.f32 0.0, %v1779
    %v1781 = vpop.f32.mrf.mxu0
    %1782 = vdwg.mxu0
    %v1783 = vsel %vm491, %v1704, -inf
    %1784 = vmax.xlane.f32.xlu0 %v1783
    %v1785 = vpop.xlane.xlu0 %1784
    %v1786 = vsel %vm491, %v1780, -inf
    %1787 = vmax.xlane.f32.xlu0 %v1786
    %v1788 = vpop.xlane.xlu0 %1787
    %v1789 = vsub.f32 %v1704, %v1785
    %v1790 = vsub.f32 %v1780, %v1788
    %v1791 = vmul.f32 %v1789, 1.442695
    %v1792 = vpow.pop %v1791
    %v1793 = vmul.f32 %v1790, 1.442695
    %v1794 = vpow.pop %v1793
    %v1795 = vsel %vm491, %v1792, 0.0
    %1796 = vadd.xlane.f32.xlu0 %v1795
    %v1797 = vpop.xlane.xlu0 %1796
    %v1798 = vsel %vm491, %v1794, 0.0
    %1799 = vadd.xlane.f32.xlu0 %v1798
    %v1800 = vpop.xlane.xlu0 %1799
    %v1801 = vrcp.pop %v1797
    %v1802 = vrcp.pop %v1800
    %v1803 = vmul.f32 %v1792, %v1801
    %v1804 = vmul.f32 %v1794, %v1802
    %v1806 = vsel %vm491, %v1803, 0
    %1808 = vmatprep.subr.mxu0 0.0
    %1809 = vmatpush1.msra.mxu0 0.0
    %1810 = vmatprep.subr.mxu0 0.0
    %1811 = vmatpush1.msra.mxu0 0.0
    %1812 = vmatprep.subr.mxu0 0.0
    %1813 = vmatpush1.msra.mxu0 0.0
    %1814 = vmatprep.subr.mxu0 0.0
    %1815 = vmatpush1.msra.mxu0 0.0
    %1816 = vmatprep.subr.mxu0 0.0
    %1817 = vmatpush1.msra.mxu0 0.0
    %1818 = vmatprep.subr.mxu0 0.0
    %1819 = vmatpush1.msra.mxu0 0.0
    %1820 = vmatprep.subr.mxu0 0.0
    %1821 = vmatpush1.msra.mxu0 0.0
    %1822 = vmatprep.subr.mxu0 0.0
    %1823 = vmatpush1.msra.mxu0 0.0
    %1824 = vmatprep.subr.mxu0 0.0
    %1825 = vmatpush1.msra.mxu0 0.0
    %1826 = vmatprep.subr.mxu0 0.0
    %1827 = vmatpush1.msra.mxu0 0.0
    %1828 = vmatprep.subr.mxu0 0.0
    %1829 = vmatpush1.msra.mxu0 0.0
    %1830 = vmatprep.subr.mxu0 0.0
    %1831 = vmatpush1.msra.mxu0 0.0
    %1832 = vmatprep.subr.mxu0 0.0
    %1833 = vmatpush1.msra.mxu0 0.0
    %1834 = vmatprep.subr.mxu0 0.0
    %1835 = vmatpush1.msra.mxu0 0.0
    %1836 = vmatprep.subr.mxu0 0.0
    %1837 = vmatpush1.msra.mxu0 0.0
    %1838 = vmatprep.subr.mxu0 0.0
    %1839 = vmatpush1.msra.mxu0 %v1623
    %1840 = vmatprep.subr.mxu0 0.0
    %1841 = vmatpush2.msra.mxu0 0.0
    %1842 = vmatprep.subr.mxu0 0.0
    %1843 = vmatpush2.msra.mxu0 0.0
    %1844 = vmatprep.subr.mxu0 0.0
    %1845 = vmatpush2.msra.mxu0 0.0
    %1846 = vmatprep.subr.mxu0 0.0
    %1847 = vmatpush2.msra.mxu0 0.0
    %1848 = vmatprep.subr.mxu0 0.0
    %1849 = vmatpush2.msra.mxu0 0.0
    %1850 = vmatprep.subr.mxu0 0.0
    %1851 = vmatpush2.msra.mxu0 0.0
    %1852 = vmatprep.subr.mxu0 0.0
    %1853 = vmatpush2.msra.mxu0 0.0
    %1854 = vmatprep.subr.mxu0 0.0
    %1855 = vmatpush2.msra.mxu0 0.0
    %1856 = vmatprep.subr.mxu0 0.0
    %1857 = vmatpush2.msra.mxu0 0.0
    %1858 = vmatprep.subr.mxu0 0.0
    %1859 = vmatpush2.msra.mxu0 0.0
    %1860 = vmatprep.subr.mxu0 0.0
    %1861 = vmatpush2.msra.mxu0 0.0
    %1862 = vmatprep.subr.mxu0 0.0
    %1863 = vmatpush2.msra.mxu0 0.0
    %1864 = vmatprep.subr.mxu0 0.0
    %1865 = vmatpush2.msra.mxu0 0.0
    %1866 = vmatprep.subr.mxu0 0.0
    %1867 = vmatpush2.msra.mxu0 0.0
    %1868 = vmatprep.subr.mxu0 0.0
    %1869 = vmatpush2.msra.mxu0 0.0
    %1870 = vmatprep.subr.mxu0 0.0
    %1871 = vmatpush2.msra.mxu0 0.0
    %1872 = vmatprep.mubr.f32.mxu0 0.0
    %1873 = vmatmul.mubr.f32.gmra.mxu0 %v1806
    %v1874 = vpop.f32.mrf.mxu0
    %v1875 = vadd.f32 0.0, %v1874
    %v1876 = vpop.f32.mrf.mxu0
    %1877 = vdwg.mxu0
    %v1879 = vsel %vm491, %v1804, 0
    %1881 = vmatprep.subr.mxu0 0.0
    %1882 = vmatpush1.msra.mxu0 0.0
    %1883 = vmatprep.subr.mxu0 0.0
    %1884 = vmatpush1.msra.mxu0 0.0
    %1885 = vmatprep.subr.mxu0 0.0
    %1886 = vmatpush1.msra.mxu0 0.0
    %1887 = vmatprep.subr.mxu0 0.0
    %1888 = vmatpush1.msra.mxu0 0.0
    %1889 = vmatprep.subr.mxu0 0.0
    %1890 = vmatpush1.msra.mxu0 0.0
    %1891 = vmatprep.subr.mxu0 0.0
    %1892 = vmatpush1.msra.mxu0 0.0
    %1893 = vmatprep.subr.mxu0 0.0
    %1894 = vmatpush1.msra.mxu0 0.0
    %1895 = vmatprep.subr.mxu0 0.0
    %1896 = vmatpush1.msra.mxu0 0.0
    %1897 = vmatprep.subr.mxu0 0.0
    %1898 = vmatpush1.msra.mxu0 0.0
    %1899 = vmatprep.subr.mxu0 0.0
    %1900 = vmatpush1.msra.mxu0 0.0
    %1901 = vmatprep.subr.mxu0 0.0
    %1902 = vmatpush1.msra.mxu0 0.0
    %1903 = vmatprep.subr.mxu0 0.0
    %1904 = vmatpush1.msra.mxu0 0.0
    %1905 = vmatprep.subr.mxu0 0.0
    %1906 = vmatpush1.msra.mxu0 0.0
    %1907 = vmatprep.subr.mxu0 0.0
    %1908 = vmatpush1.msra.mxu0 0.0
    %1909 = vmatprep.subr.mxu0 0.0
    %1910 = vmatpush1.msra.mxu0 0.0
    %1911 = vmatprep.subr.mxu0 0.0
    %1912 = vmatpush1.msra.mxu0 %v1628
    %1913 = vmatprep.subr.mxu0 0.0
    %1914 = vmatpush2.msra.mxu0 0.0
    %1915 = vmatprep.subr.mxu0 0.0
    %1916 = vmatpush2.msra.mxu0 0.0
    %1917 = vmatprep.subr.mxu0 0.0
    %1918 = vmatpush2.msra.mxu0 0.0
    %1919 = vmatprep.subr.mxu0 0.0
    %1920 = vmatpush2.msra.mxu0 0.0
    %1921 = vmatprep.subr.mxu0 0.0
    %1922 = vmatpush2.msra.mxu0 0.0
    %1923 = vmatprep.subr.mxu0 0.0
    %1924 = vmatpush2.msra.mxu0 0.0
    %1925 = vmatprep.subr.mxu0 0.0
    %1926 = vmatpush2.msra.mxu0 0.0
    %1927 = vmatprep.subr.mxu0 0.0
    %1928 = vmatpush2.msra.mxu0 0.0
    %1929 = vmatprep.subr.mxu0 0.0
    %1930 = vmatpush2.msra.mxu0 0.0
    %1931 = vmatprep.subr.mxu0 0.0
    %1932 = vmatpush2.msra.mxu0 0.0
    %1933 = vmatprep.subr.mxu0 0.0
    %1934 = vmatpush2.msra.mxu0 0.0
    %1935 = vmatprep.subr.mxu0 0.0
    %1936 = vmatpush2.msra.mxu0 0.0
    %1937 = vmatprep.subr.mxu0 0.0
    %1938 = vmatpush2.msra.mxu0 0.0
    %1939 = vmatprep.subr.mxu0 0.0
    %1940 = vmatpush2.msra.mxu0 0.0
    %1941 = vmatprep.subr.mxu0 0.0
    %1942 = vmatpush2.msra.mxu0 0.0
    %1943 = vmatprep.subr.mxu0 0.0
    %1944 = vmatpush2.msra.mxu0 0.0
    %1945 = vmatprep.mubr.f32.mxu0 0.0
    %1946 = vmatmul.mubr.f32.gmra.mxu0 %v1879
    %v1947 = vpop.f32.mrf.mxu0
    %v1948 = vadd.f32 0.0, %v1947
    %v1949 = vpop.f32.mrf.mxu0
    %1950 = vdwg.mxu0
    %s1951 = scalar_lea.vmem [#allocation10], 64
    %v1952 = vld [vmem:[%s1951] sm:$0xff]
    %v1953 = vld [vmem:[%s1951 + $0x8] sm:$0xff]
    %v1954 = vld [vmem:[%s1951 + $0x10] sm:$0xff]
    %v1955 = vld [vmem:[%s1951 + $0x18] sm:$0xff]
    %v1957 = vsel %vm99, %v1875, 0
    %v1960 = vsel %vm99, %v1948, 0
    %1962 = vmatprep.subr.mxu0 0.0
    %1963 = vmatpush1.msra.mxu0 0.0
    %1964 = vmatprep.subr.mxu0 0.0
    %1965 = vmatpush1.msra.mxu0 0.0
    %1966 = vmatprep.subr.mxu0 0.0
    %1967 = vmatpush1.msra.mxu0 0.0
    %1968 = vmatprep.subr.mxu0 0.0
    %1969 = vmatpush1.msra.mxu0 0.0
    %1970 = vmatprep.subr.mxu0 0.0
    %1971 = vmatpush1.msra.mxu0 0.0
    %1972 = vmatprep.subr.mxu0 0.0
    %1973 = vmatpush1.msra.mxu0 0.0
    %1974 = vmatprep.subr.mxu0 0.0
    %1975 = vmatpush1.msra.mxu0 0.0
    %1976 = vmatprep.subr.mxu0 0.0
    %1977 = vmatpush1.msra.mxu0 0.0
    %1978 = vmatprep.subr.mxu0 0.0
    %1979 = vmatpush1.msra.mxu0 0.0
    %1980 = vmatprep.subr.mxu0 0.0
    %1981 = vmatpush1.msra.mxu0 0.0
    %1982 = vmatprep.subr.mxu0 0.0
    %1983 = vmatpush1.msra.mxu0 0.0
    %1984 = vmatprep.subr.mxu0 0.0
    %1985 = vmatpush1.msra.mxu0 0.0
    %1986 = vmatprep.subr.mxu0 0.0
    %1987 = vmatpush1.msra.mxu0 %v1955
    %1988 = vmatprep.subr.mxu0 0.0
    %1989 = vmatpush1.msra.mxu0 %v1954
    %1990 = vmatprep.subr.mxu0 0.0
    %1991 = vmatpush1.msra.mxu0 %v1953
    %1992 = vmatprep.subr.mxu0 0.0
    %1993 = vmatpush1.msra.mxu0 %v1952
    %1994 = vmatprep.subr.mxu0 0.0
    %1995 = vmatpush2.msra.mxu0 0.0
    %1996 = vmatprep.subr.mxu0 0.0
    %1997 = vmatpush2.msra.mxu0 0.0
    %1998 = vmatprep.subr.mxu0 0.0
    %1999 = vmatpush2.msra.mxu0 0.0
    %2000 = vmatprep.subr.mxu0 0.0
    %2001 = vmatpush2.msra.mxu0 0.0
    %2002 = vmatprep.subr.mxu0 0.0
    %2003 = vmatpush2.msra.mxu0 0.0
    %2004 = vmatprep.subr.mxu0 0.0
    %2005 = vmatpush2.msra.mxu0 0.0
    %2006 = vmatprep.subr.mxu0 0.0
    %2007 = vmatpush2.msra.mxu0 0.0
    %2008 = vmatprep.subr.mxu0 0.0
    %2009 = vmatpush2.msra.mxu0 0.0
    %2010 = vmatprep.subr.mxu0 0.0
    %2011 = vmatpush2.msra.mxu0 0.0
    %2012 = vmatprep.subr.mxu0 0.0
    %2013 = vmatpush2.msra.mxu0 0.0
    %2014 = vmatprep.subr.mxu0 0.0
    %2015 = vmatpush2.msra.mxu0 0.0
    %2016 = vmatprep.subr.mxu0 0.0
    %2017 = vmatpush2.msra.mxu0 0.0
    %2018 = vmatprep.subr.mxu0 0.0
    %2019 = vmatpush2.msra.mxu0 0.0
    %2020 = vmatprep.subr.mxu0 0.0
    %2021 = vmatpush2.msra.mxu0 0.0
    %2022 = vmatprep.subr.mxu0 0.0
    %2023 = vmatpush2.msra.mxu0 0.0
    %2024 = vmatprep.subr.mxu0 0.0
    %2025 = vmatpush2.msra.mxu0 0.0
    %2026 = vmatprep.mubr.f32.mxu0 0.0
    %2027 = vmatmul.mubr.f32.gmra.mxu0 %v1957
    %v2028 = vpop.f32.mrf.mxu0
    %v2029 = vadd.f32 0.0, %v2028
    %v2030 = vpop.f32.mrf.mxu0
    %2031 = vmatprep.mubr.f32.mxu0 0.0
    %2032 = vmatmul.mubr.f32.gmra.mxu0 %v1960
    %v2033 = vpop.f32.mrf.mxu0
    %v2034 = vadd.f32 0.0, %v2033
    %v2035 = vpop.f32.mrf.mxu0
    %2036 = vdwg.mxu0
    %v2037 = vadd.f32 %v1383, %v2029
    %v2038 = vadd.f32 %v1388, %v2034
    %s2039 = scalar_lea.vmem [#allocation5], 96
    %v2040 = vld [vmem:[%s2039] sm:$0xff]
    %v2041 = vld [vmem:[%s2039 + $0x8] sm:$0xff]
    %v2042 = vld [vmem:[%s2039 + $0x10] sm:$0xff]
    %v2043 = vld [vmem:[%s2039 + $0x18] sm:$0xff]
    %2044 = vmatprep.subr.mxu0 0.0
    %2045 = vmatpush1.msra.mxu0 0.0
    %2046 = vmatprep.subr.mxu0 0.0
    %2047 = vmatpush1.msra.mxu0 0.0
    %2048 = vmatprep.subr.mxu0 0.0
    %2049 = vmatpush1.msra.mxu0 0.0
    %2050 = vmatprep.subr.mxu0 0.0
    %2051 = vmatpush1.msra.mxu0 0.0
    %2052 = vmatprep.subr.mxu0 0.0
    %2053 = vmatpush1.msra.mxu0 0.0
    %2054 = vmatprep.subr.mxu0 0.0
    %2055 = vmatpush1.msra.mxu0 0.0
    %2056 = vmatprep.subr.mxu0 0.0
    %2057 = vmatpush1.msra.mxu0 0.0
    %2058 = vmatprep.subr.mxu0 0.0
    %2059 = vmatpush1.msra.mxu0 0.0
    %2060 = vmatprep.subr.mxu0 0.0
    %2061 = vmatpush1.msra.mxu0 0.0
    %2062 = vmatprep.subr.mxu0 0.0
    %2063 = vmatpush1.msra.mxu0 0.0
    %2064 = vmatprep.subr.mxu0 0.0
    %2065 = vmatpush1.msra.mxu0 0.0
    %2066 = vmatprep.subr.mxu0 0.0
    %2067 = vmatpush1.msra.mxu0 0.0
    %2068 = vmatprep.subr.mxu0 0.0
    %2069 = vmatpush1.msra.mxu0 %v2043
    %2070 = vmatprep.subr.mxu0 0.0
    %2071 = vmatpush1.msra.mxu0 %v2042
    %2072 = vmatprep.subr.mxu0 0.0
    %2073 = vmatpush1.msra.mxu0 %v2041
    %2074 = vmatprep.subr.mxu0 0.0
    %2075 = vmatpush1.msra.mxu0 %v2040
    %2076 = vmatprep.subr.mxu0 0.0
    %2077 = vmatpush2.msra.mxu0 0.0
    %2078 = vmatprep.subr.mxu0 0.0
    %2079 = vmatpush2.msra.mxu0 0.0
    %2080 = vmatprep.subr.mxu0 0.0
    %2081 = vmatpush2.msra.mxu0 0.0
    %2082 = vmatprep.subr.mxu0 0.0
    %2083 = vmatpush2.msra.mxu0 0.0
    %2084 = vmatprep.subr.mxu0 0.0
    %2085 = vmatpush2.msra.mxu0 0.0
    %2086 = vmatprep.subr.mxu0 0.0
    %2087 = vmatpush2.msra.mxu0 0.0
    %2088 = vmatprep.subr.mxu0 0.0
    %2089 = vmatpush2.msra.mxu0 0.0
    %2090 = vmatprep.subr.mxu0 0.0
    %2091 = vmatpush2.msra.mxu0 0.0
    %2092 = vmatprep.subr.mxu0 0.0
    %2093 = vmatpush2.msra.mxu0 0.0
    %2094 = vmatprep.subr.mxu0 0.0
    %2095 = vmatpush2.msra.mxu0 0.0
    %2096 = vmatprep.subr.mxu0 0.0
    %2097 = vmatpush2.msra.mxu0 0.0
    %2098 = vmatprep.subr.mxu0 0.0
    %2099 = vmatpush2.msra.mxu0 0.0
    %2100 = vmatprep.subr.mxu0 0.0
    %2101 = vmatpush2.msra.mxu0 0.0
    %2102 = vmatprep.subr.mxu0 0.0
    %2103 = vmatpush2.msra.mxu0 0.0
    %2104 = vmatprep.subr.mxu0 0.0
    %2105 = vmatpush2.msra.mxu0 0.0
    %2106 = vmatprep.subr.mxu0 0.0
    %2107 = vmatpush2.msra.mxu0 0.0
    %2108 = vmatprep.mubr.f32.mxu0 0.0
    %2109 = vmatmul.mubr.f32.gmra.mxu0 %v101
    %v2110 = vpop.f32.mrf.mxu0
    %v2111 = vadd.f32 0.0, %v2110
    %v2112 = vpop.f32.mrf.mxu0
    %2113 = vmatprep.mubr.f32.mxu0 0.0
    %2114 = vmatmul.mubr.f32.gmra.mxu0 %v104
    %v2115 = vpop.f32.mrf.mxu0
    %v2116 = vadd.f32 0.0, %v2115
    %v2117 = vpop.f32.mrf.mxu0
    %2118 = vdwg.mxu0
    %s2119 = scalar_lea.vmem [#allocation7], 96
    %v2120 = vld [vmem:[%s2119] sm:$0xff]
    %v2121 = vld [vmem:[%s2119 + $0x8] sm:$0xff]
    %v2122 = vld [vmem:[%s2119 + $0x10] sm:$0xff]
    %v2123 = vld [vmem:[%s2119 + $0x18] sm:$0xff]
    %2124 = vmatprep.subr.mxu0 0.0
    %2125 = vmatpush1.msra.mxu0 0.0
    %2126 = vmatprep.subr.mxu0 0.0
    %2127 = vmatpush1.msra.mxu0 0.0
    %2128 = vmatprep.subr.mxu0 0.0
    %2129 = vmatpush1.msra.mxu0 0.0
    %2130 = vmatprep.subr.mxu0 0.0
    %2131 = vmatpush1.msra.mxu0 0.0
    %2132 = vmatprep.subr.mxu0 0.0
    %2133 = vmatpush1.msra.mxu0 0.0
    %2134 = vmatprep.subr.mxu0 0.0
    %2135 = vmatpush1.msra.mxu0 0.0
    %2136 = vmatprep.subr.mxu0 0.0
    %2137 = vmatpush1.msra.mxu0 0.0
    %2138 = vmatprep.subr.mxu0 0.0
    %2139 = vmatpush1.msra.mxu0 0.0
    %2140 = vmatprep.subr.mxu0 0.0
    %2141 = vmatpush1.msra.mxu0 0.0
    %2142 = vmatprep.subr.mxu0 0.0
    %2143 = vmatpush1.msra.mxu0 0.0
    %2144 = vmatprep.subr.mxu0 0.0
    %2145 = vmatpush1.msra.mxu0 0.0
    %2146 = vmatprep.subr.mxu0 0.0
    %2147 = vmatpush1.msra.mxu0 0.0
    %2148 = vmatprep.subr.mxu0 0.0
    %2149 = vmatpush1.msra.mxu0 %v2123
    %2150 = vmatprep.subr.mxu0 0.0
    %2151 = vmatpush1.msra.mxu0 %v2122
    %2152 = vmatprep.subr.mxu0 0.0
    %2153 = vmatpush1.msra.mxu0 %v2121
    %2154 = vmatprep.subr.mxu0 0.0
    %2155 = vmatpush1.msra.mxu0 %v2120
    %2156 = vmatprep.subr.mxu0 0.0
    %2157 = vmatpush2.msra.mxu0 0.0
    %2158 = vmatprep.subr.mxu0 0.0
    %2159 = vmatpush2.msra.mxu0 0.0
    %2160 = vmatprep.subr.mxu0 0.0
    %2161 = vmatpush2.msra.mxu0 0.0
    %2162 = vmatprep.subr.mxu0 0.0
    %2163 = vmatpush2.msra.mxu0 0.0
    %2164 = vmatprep.subr.mxu0 0.0
    %2165 = vmatpush2.msra.mxu0 0.0
    %2166 = vmatprep.subr.mxu0 0.0
    %2167 = vmatpush2.msra.mxu0 0.0
    %2168 = vmatprep.subr.mxu0 0.0
    %2169 = vmatpush2.msra.mxu0 0.0
    %2170 = vmatprep.subr.mxu0 0.0
    %2171 = vmatpush2.msra.mxu0 0.0
    %2172 = vmatprep.subr.mxu0 0.0
    %2173 = vmatpush2.msra.mxu0 0.0
    %2174 = vmatprep.subr.mxu0 0.0
    %2175 = vmatpush2.msra.mxu0 0.0
    %2176 = vmatprep.subr.mxu0 0.0
    %2177 = vmatpush2.msra.mxu0 0.0
    %2178 = vmatprep.subr.mxu0 0.0
    %2179 = vmatpush2.msra.mxu0 0.0
    %2180 = vmatprep.subr.mxu0 0.0
    %2181 = vmatpush2.msra.mxu0 0.0
    %2182 = vmatprep.subr.mxu0 0.0
    %2183 = vmatpush2.msra.mxu0 0.0
    %2184 = vmatprep.subr.mxu0 0.0
    %2185 = vmatpush2.msra.mxu0 0.0
    %2186 = vmatprep.subr.mxu0 0.0
    %2187 = vmatpush2.msra.mxu0 0.0
    %2188 = vmatprep.mubr.f32.mxu0 0.0
    %2189 = vmatmul.mubr.f32.gmra.mxu0 %v101
    %v2190 = vpop.f32.mrf.mxu0
    %v2191 = vadd.f32 0.0, %v2190
    %v2192 = vpop.f32.mrf.mxu0
    %2193 = vmatprep.mubr.f32.mxu0 0.0
    %2194 = vmatmul.mubr.f32.gmra.mxu0 %v104
    %v2195 = vpop.f32.mrf.mxu0
    %v2196 = vadd.f32 0.0, %v2195
    %v2197 = vpop.f32.mrf.mxu0
    %2198 = vdwg.mxu0
    %s2199 = scalar_lea.vmem [#allocation8], 96
    %v2200 = vld [vmem:[%s2199] sm:$0xff]
    %v2201 = vld [vmem:[%s2199 + $0x8] sm:$0xff]
    %v2202 = vld [vmem:[%s2199 + $0x10] sm:$0xff]
    %v2203 = vld [vmem:[%s2199 + $0x18] sm:$0xff]
    %2204 = vmatprep.subr.mxu0 0.0
    %2205 = vmatpush1.msra.mxu0 0.0
    %2206 = vmatprep.subr.mxu0 0.0
    %2207 = vmatpush1.msra.mxu0 0.0
    %2208 = vmatprep.subr.mxu0 0.0
    %2209 = vmatpush1.msra.mxu0 0.0
    %2210 = vmatprep.subr.mxu0 0.0
    %2211 = vmatpush1.msra.mxu0 0.0
    %2212 = vmatprep.subr.mxu0 0.0
    %2213 = vmatpush1.msra.mxu0 0.0
    %2214 = vmatprep.subr.mxu0 0.0
    %2215 = vmatpush1.msra.mxu0 0.0
    %2216 = vmatprep.subr.mxu0 0.0
    %2217 = vmatpush1.msra.mxu0 0.0
    %2218 = vmatprep.subr.mxu0 0.0
    %2219 = vmatpush1.msra.mxu0 0.0
    %2220 = vmatprep.subr.mxu0 0.0
    %2221 = vmatpush1.msra.mxu0 0.0
    %2222 = vmatprep.subr.mxu0 0.0
    %2223 = vmatpush1.msra.mxu0 0.0
    %2224 = vmatprep.subr.mxu0 0.0
    %2225 = vmatpush1.msra.mxu0 0.0
    %2226 = vmatprep.subr.mxu0 0.0
    %2227 = vmatpush1.msra.mxu0 0.0
    %2228 = vmatprep.subr.mxu0 0.0
    %2229 = vmatpush1.msra.mxu0 %v2203
    %2230 = vmatprep.subr.mxu0 0.0
    %2231 = vmatpush1.msra.mxu0 %v2202
    %2232 = vmatprep.subr.mxu0 0.0
    %2233 = vmatpush1.msra.mxu0 %v2201
    %2234 = vmatprep.subr.mxu0 0.0
    %2235 = vmatpush1.msra.mxu0 %v2200
    %2236 = vmatprep.subr.mxu0 0.0
    %2237 = vmatpush2.msra.mxu0 0.0
    %2238 = vmatprep.subr.mxu0 0.0
    %2239 = vmatpush2.msra.mxu0 0.0
    %2240 = vmatprep.subr.mxu0 0.0
    %2241 = vmatpush2.msra.mxu0 0.0
    %2242 = vmatprep.subr.mxu0 0.0
    %2243 = vmatpush2.msra.mxu0 0.0
    %2244 = vmatprep.subr.mxu0 0.0
    %2245 = vmatpush2.msra.mxu0 0.0
    %2246 = vmatprep.subr.mxu0 0.0
    %2247 = vmatpush2.msra.mxu0 0.0
    %2248 = vmatprep.subr.mxu0 0.0
    %2249 = vmatpush2.msra.mxu0 0.0
    %2250 = vmatprep.subr.mxu0 0.0
    %2251 = vmatpush2.msra.mxu0 0.0
    %2252 = vmatprep.subr.mxu0 0.0
    %2253 = vmatpush2.msra.mxu0 0.0
    %2254 = vmatprep.subr.mxu0 0.0
    %2255 = vmatpush2.msra.mxu0 0.0
    %2256 = vmatprep.subr.mxu0 0.0
    %2257 = vmatpush2.msra.mxu0 0.0
    %2258 = vmatprep.subr.mxu0 0.0
    %2259 = vmatpush2.msra.mxu0 0.0
    %2260 = vmatprep.subr.mxu0 0.0
    %2261 = vmatpush2.msra.mxu0 0.0
    %2262 = vmatprep.subr.mxu0 0.0
    %2263 = vmatpush2.msra.mxu0 0.0
    %2264 = vmatprep.subr.mxu0 0.0
    %2265 = vmatpush2.msra.mxu0 0.0
    %2266 = vmatprep.subr.mxu0 0.0
    %2267 = vmatpush2.msra.mxu0 0.0
    %2268 = vmatprep.mubr.f32.mxu0 0.0
    %2269 = vmatmul.mubr.f32.gmra.mxu0 %v101
    %v2270 = vpop.f32.mrf.mxu0
    %v2271 = vadd.f32 0.0, %v2270
    %v2272 = vpop.f32.mrf.mxu0
    %2273 = vmatprep.mubr.f32.mxu0 0.0
    %2274 = vmatmul.mubr.f32.gmra.mxu0 %v104
    %v2275 = vpop.f32.mrf.mxu0
    %v2276 = vadd.f32 0.0, %v2275
    %v2277 = vpop.f32.mrf.mxu0
    %2278 = vdwg.mxu0
    %v2280 = vsel %vm99, %v2111, 0
    %v2283 = vsel %vm99, %v2191, 0
    %2285 = vmatprep.subr.mxu0 0.0
    %2286 = vmatpush1.xpose.msra.mxu0 0.0
    %2287 = vmatprep.subr.mxu0 0.0
    %2288 = vmatpush1.xpose.msra.mxu0 0.0
    %2289 = vmatprep.subr.mxu0 0.0
    %2290 = vmatpush1.xpose.msra.mxu0 0.0
    %2291 = vmatprep.subr.mxu0 0.0
    %2292 = vmatpush1.xpose.msra.mxu0 0.0
    %2293 = vmatprep.subr.mxu0 0.0
    %2294 = vmatpush1.xpose.msra.mxu0 0.0
    %2295 = vmatprep.subr.mxu0 0.0
    %2296 = vmatpush1.xpose.msra.mxu0 0.0
    %2297 = vmatprep.subr.mxu0 0.0
    %2298 = vmatpush1.xpose.msra.mxu0 0.0
    %2299 = vmatprep.subr.mxu0 0.0
    %2300 = vmatpush1.xpose.msra.mxu0 0.0
    %2301 = vmatprep.subr.mxu0 0.0
    %2302 = vmatpush1.xpose.msra.mxu0 0.0
    %2303 = vmatprep.subr.mxu0 0.0
    %2304 = vmatpush1.xpose.msra.mxu0 0.0
    %2305 = vmatprep.subr.mxu0 0.0
    %2306 = vmatpush1.xpose.msra.mxu0 0.0
    %2307 = vmatprep.subr.mxu0 0.0
    %2308 = vmatpush1.xpose.msra.mxu0 0.0
    %2309 = vmatprep.subr.mxu0 0.0
    %2310 = vmatpush1.xpose.msra.mxu0 0.0
    %2311 = vmatprep.subr.mxu0 0.0
    %2312 = vmatpush1.xpose.msra.mxu0 0.0
    %2313 = vmatprep.subr.mxu0 0.0
    %2314 = vmatpush1.xpose.msra.mxu0 0.0
    %2315 = vmatprep.subr.mxu0 0.0
    %2316 = vmatpush1.xpose.msra.mxu0 %v2283
    %2317 = vmatprep.subr.mxu0 0.0
    %2318 = vmatpush2.xpose.msra.mxu0 0.0
    %2319 = vmatprep.subr.mxu0 0.0
    %2320 = vmatpush2.xpose.msra.mxu0 0.0
    %2321 = vmatprep.subr.mxu0 0.0
    %2322 = vmatpush2.xpose.msra.mxu0 0.0
    %2323 = vmatprep.subr.mxu0 0.0
    %2324 = vmatpush2.xpose.msra.mxu0 0.0
    %2325 = vmatprep.subr.mxu0 0.0
    %2326 = vmatpush2.xpose.msra.mxu0 0.0
    %2327 = vmatprep.subr.mxu0 0.0
    %2328 = vmatpush2.xpose.msra.mxu0 0.0
    %2329 = vmatprep.subr.mxu0 0.0
    %2330 = vmatpush2.xpose.msra.mxu0 0.0
    %2331 = vmatprep.subr.mxu0 0.0
    %2332 = vmatpush2.xpose.msra.mxu0 0.0
    %2333 = vmatprep.subr.mxu0 0.0
    %2334 = vmatpush2.xpose.msra.mxu0 0.0
    %2335 = vmatprep.subr.mxu0 0.0
    %2336 = vmatpush2.xpose.msra.mxu0 0.0
    %2337 = vmatprep.subr.mxu0 0.0
    %2338 = vmatpush2.xpose.msra.mxu0 0.0
    %2339 = vmatprep.subr.mxu0 0.0
    %2340 = vmatpush2.xpose.msra.mxu0 0.0
    %2341 = vmatprep.subr.mxu0 0.0
    %2342 = vmatpush2.xpose.msra.mxu0 0.0
    %2343 = vmatprep.subr.mxu0 0.0
    %2344 = vmatpush2.xpose.msra.mxu0 0.0
    %2345 = vmatprep.subr.mxu0 0.0
    %2346 = vmatpush2.xpose.msra.mxu0 0.0
    %2347 = vmatprep.subr.mxu0 0.0
    %2348 = vmatpush2.xpose.msra.mxu0 0.0
    %2349 = vmatprep.mubr.f32.mxu0 0.0
    %2350 = vmatmul.mubr.f32.gmra.mxu0 %v2280
    %v2351 = vpop.f32.mrf.mxu0
    %v2352 = vadd.f32 0.0, %v2351
    %v2353 = vpop.f32.mrf.mxu0
    %2354 = vdwg.mxu0
    %v2356 = vsel %vm99, %v2116, 0
    %v2359 = vsel %vm99, %v2196, 0
    %2361 = vmatprep.subr.mxu0 0.0
    %2362 = vmatpush1.xpose.msra.mxu0 0.0
    %2363 = vmatprep.subr.mxu0 0.0
    %2364 = vmatpush1.xpose.msra.mxu0 0.0
    %2365 = vmatprep.subr.mxu0 0.0
    %2366 = vmatpush1.xpose.msra.mxu0 0.0
    %2367 = vmatprep.subr.mxu0 0.0
    %2368 = vmatpush1.xpose.msra.mxu0 0.0
    %2369 = vmatprep.subr.mxu0 0.0
    %2370 = vmatpush1.xpose.msra.mxu0 0.0
    %2371 = vmatprep.subr.mxu0 0.0
    %2372 = vmatpush1.xpose.msra.mxu0 0.0
    %2373 = vmatprep.subr.mxu0 0.0
    %2374 = vmatpush1.xpose.msra.mxu0 0.0
    %2375 = vmatprep.subr.mxu0 0.0
    %2376 = vmatpush1.xpose.msra.mxu0 0.0
    %2377 = vmatprep.subr.mxu0 0.0
    %2378 = vmatpush1.xpose.msra.mxu0 0.0
    %2379 = vmatprep.subr.mxu0 0.0
    %2380 = vmatpush1.xpose.msra.mxu0 0.0
    %2381 = vmatprep.subr.mxu0 0.0
    %2382 = vmatpush1.xpose.msra.mxu0 0.0
    %2383 = vmatprep.subr.mxu0 0.0
    %2384 = vmatpush1.xpose.msra.mxu0 0.0
    %2385 = vmatprep.subr.mxu0 0.0
    %2386 = vmatpush1.xpose.msra.mxu0 0.0
    %2387 = vmatprep.subr.mxu0 0.0
    %2388 = vmatpush1.xpose.msra.mxu0 0.0
    %2389 = vmatprep.subr.mxu0 0.0
    %2390 = vmatpush1.xpose.msra.mxu0 0.0
    %2391 = vmatprep.subr.mxu0 0.0
    %2392 = vmatpush1.xpose.msra.mxu0 %v2359
    %2393 = vmatprep.subr.mxu0 0.0
    %2394 = vmatpush2.xpose.msra.mxu0 0.0
    %2395 = vmatprep.subr.mxu0 0.0
    %2396 = vmatpush2.xpose.msra.mxu0 0.0
    %2397 = vmatprep.subr.mxu0 0.0
    %2398 = vmatpush2.xpose.msra.mxu0 0.0
    %2399 = vmatprep.subr.mxu0 0.0
    %2400 = vmatpush2.xpose.msra.mxu0 0.0
    %2401 = vmatprep.subr.mxu0 0.0
    %2402 = vmatpush2.xpose.msra.mxu0 0.0
    %2403 = vmatprep.subr.mxu0 0.0
    %2404 = vmatpush2.xpose.msra.mxu0 0.0
    %2405 = vmatprep.subr.mxu0 0.0
    %2406 = vmatpush2.xpose.msra.mxu0 0.0
    %2407 = vmatprep.subr.mxu0 0.0
    %2408 = vmatpush2.xpose.msra.mxu0 0.0
    %2409 = vmatprep.subr.mxu0 0.0
    %2410 = vmatpush2.xpose.msra.mxu0 0.0
    %2411 = vmatprep.subr.mxu0 0.0
    %2412 = vmatpush2.xpose.msra.mxu0 0.0
    %2413 = vmatprep.subr.mxu0 0.0
    %2414 = vmatpush2.xpose.msra.mxu0 0.0
    %2415 = vmatprep.subr.mxu0 0.0
    %2416 = vmatpush2.xpose.msra.mxu0 0.0
    %2417 = vmatprep.subr.mxu0 0.0
    %2418 = vmatpush2.xpose.msra.mxu0 0.0
    %2419 = vmatprep.subr.mxu0 0.0
    %2420 = vmatpush2.xpose.msra.mxu0 0.0
    %2421 = vmatprep.subr.mxu0 0.0
    %2422 = vmatpush2.xpose.msra.mxu0 0.0
    %2423 = vmatprep.subr.mxu0 0.0
    %2424 = vmatpush2.xpose.msra.mxu0 0.0
    %2425 = vmatprep.mubr.f32.mxu0 0.0
    %2426 = vmatmul.mubr.f32.gmra.mxu0 %v2356
    %v2427 = vpop.f32.mrf.mxu0
    %v2428 = vadd.f32 0.0, %v2427
    %v2429 = vpop.f32.mrf.mxu0
    %2430 = vdwg.mxu0
    %v2431 = vsel %vm491, %v2352, -inf
    %2432 = vmax.xlane.f32.xlu0 %v2431
    %v2433 = vpop.xlane.xlu0 %2432
    %v2434 = vsel %vm491, %v2428, -inf
    %2435 = vmax.xlane.f32.xlu0 %v2434
    %v2436 = vpop.xlane.xlu0 %2435
    %v2437 = vsub.f32 %v2352, %v2433
    %v2438 = vsub.f32 %v2428, %v2436
    %v2439 = vmul.f32 %v2437, 1.442695
    %v2440 = vpow.pop %v2439
    %v2441 = vmul.f32 %v2438, 1.442695
    %v2442 = vpow.pop %v2441
    %v2443 = vsel %vm491, %v2440, 0.0
    %2444 = vadd.xlane.f32.xlu0 %v2443
    %v2445 = vpop.xlane.xlu0 %2444
    %v2446 = vsel %vm491, %v2442, 0.0
    %2447 = vadd.xlane.f32.xlu0 %v2446
    %v2448 = vpop.xlane.xlu0 %2447
    %v2449 = vrcp.pop %v2445
    %v2450 = vrcp.pop %v2448
    %v2451 = vmul.f32 %v2440, %v2449
    %v2452 = vmul.f32 %v2442, %v2450
    %v2454 = vsel %vm491, %v2451, 0
    %2456 = vmatprep.subr.mxu0 0.0
    %2457 = vmatpush1.msra.mxu0 0.0
    %2458 = vmatprep.subr.mxu0 0.0
    %2459 = vmatpush1.msra.mxu0 0.0
    %2460 = vmatprep.subr.mxu0 0.0
    %2461 = vmatpush1.msra.mxu0 0.0
    %2462 = vmatprep.subr.mxu0 0.0
    %2463 = vmatpush1.msra.mxu0 0.0
    %2464 = vmatprep.subr.mxu0 0.0
    %2465 = vmatpush1.msra.mxu0 0.0
    %2466 = vmatprep.subr.mxu0 0.0
    %2467 = vmatpush1.msra.mxu0 0.0
    %2468 = vmatprep.subr.mxu0 0.0
    %2469 = vmatpush1.msra.mxu0 0.0
    %2470 = vmatprep.subr.mxu0 0.0
    %2471 = vmatpush1.msra.mxu0 0.0
    %2472 = vmatprep.subr.mxu0 0.0
    %2473 = vmatpush1.msra.mxu0 0.0
    %2474 = vmatprep.subr.mxu0 0.0
    %2475 = vmatpush1.msra.mxu0 0.0
    %2476 = vmatprep.subr.mxu0 0.0
    %2477 = vmatpush1.msra.mxu0 0.0
    %2478 = vmatprep.subr.mxu0 0.0
    %2479 = vmatpush1.msra.mxu0 0.0
    %2480 = vmatprep.subr.mxu0 0.0
    %2481 = vmatpush1.msra.mxu0 0.0
    %2482 = vmatprep.subr.mxu0 0.0
    %2483 = vmatpush1.msra.mxu0 0.0
    %2484 = vmatprep.subr.mxu0 0.0
    %2485 = vmatpush1.msra.mxu0 0.0
    %2486 = vmatprep.subr.mxu0 0.0
    %2487 = vmatpush1.msra.mxu0 %v2271
    %2488 = vmatprep.subr.mxu0 0.0
    %2489 = vmatpush2.msra.mxu0 0.0
    %2490 = vmatprep.subr.mxu0 0.0
    %2491 = vmatpush2.msra.mxu0 0.0
    %2492 = vmatprep.subr.mxu0 0.0
    %2493 = vmatpush2.msra.mxu0 0.0
    %2494 = vmatprep.subr.mxu0 0.0
    %2495 = vmatpush2.msra.mxu0 0.0
    %2496 = vmatprep.subr.mxu0 0.0
    %2497 = vmatpush2.msra.mxu0 0.0
    %2498 = vmatprep.subr.mxu0 0.0
    %2499 = vmatpush2.msra.mxu0 0.0
    %2500 = vmatprep.subr.mxu0 0.0
    %2501 = vmatpush2.msra.mxu0 0.0
    %2502 = vmatprep.subr.mxu0 0.0
    %2503 = vmatpush2.msra.mxu0 0.0
    %2504 = vmatprep.subr.mxu0 0.0
    %2505 = vmatpush2.msra.mxu0 0.0
    %2506 = vmatprep.subr.mxu0 0.0
    %2507 = vmatpush2.msra.mxu0 0.0
    %2508 = vmatprep.subr.mxu0 0.0
    %2509 = vmatpush2.msra.mxu0 0.0
    %2510 = vmatprep.subr.mxu0 0.0
    %2511 = vmatpush2.msra.mxu0 0.0
    %2512 = vmatprep.subr.mxu0 0.0
    %2513 = vmatpush2.msra.mxu0 0.0
    %2514 = vmatprep.subr.mxu0 0.0
    %2515 = vmatpush2.msra.mxu0 0.0
    %2516 = vmatprep.subr.mxu0 0.0
    %2517 = vmatpush2.msra.mxu0 0.0
    %2518 = vmatprep.subr.mxu0 0.0
    %2519 = vmatpush2.msra.mxu0 0.0
    %2520 = vmatprep.mubr.f32.mxu0 0.0
    %2521 = vmatmul.mubr.f32.gmra.mxu0 %v2454
    %v2522 = vpop.f32.mrf.mxu0
    %v2523 = vadd.f32 0.0, %v2522
    %v2524 = vpop.f32.mrf.mxu0
    %2525 = vdwg.mxu0
    %v2527 = vsel %vm491, %v2452, 0
    %2529 = vmatprep.subr.mxu0 0.0
    %2530 = vmatpush1.msra.mxu0 0.0
    %2531 = vmatprep.subr.mxu0 0.0
    %2532 = vmatpush1.msra.mxu0 0.0
    %2533 = vmatprep.subr.mxu0 0.0
    %2534 = vmatpush1.msra.mxu0 0.0
    %2535 = vmatprep.subr.mxu0 0.0
    %2536 = vmatpush1.msra.mxu0 0.0
    %2537 = vmatprep.subr.mxu0 0.0
    %2538 = vmatpush1.msra.mxu0 0.0
    %2539 = vmatprep.subr.mxu0 0.0
    %2540 = vmatpush1.msra.mxu0 0.0
    %2541 = vmatprep.subr.mxu0 0.0
    %2542 = vmatpush1.msra.mxu0 0.0
    %2543 = vmatprep.subr.mxu0 0.0
    %2544 = vmatpush1.msra.mxu0 0.0
    %2545 = vmatprep.subr.mxu0 0.0
    %2546 = vmatpush1.msra.mxu0 0.0
    %2547 = vmatprep.subr.mxu0 0.0
    %2548 = vmatpush1.msra.mxu0 0.0
    %2549 = vmatprep.subr.mxu0 0.0
    %2550 = vmatpush1.msra.mxu0 0.0
    %2551 = vmatprep.subr.mxu0 0.0
    %2552 = vmatpush1.msra.mxu0 0.0
    %2553 = vmatprep.subr.mxu0 0.0
    %2554 = vmatpush1.msra.mxu0 0.0
    %2555 = vmatprep.subr.mxu0 0.0
    %2556 = vmatpush1.msra.mxu0 0.0
    %2557 = vmatprep.subr.mxu0 0.0
    %2558 = vmatpush1.msra.mxu0 0.0
    %2559 = vmatprep.subr.mxu0 0.0
    %2560 = vmatpush1.msra.mxu0 %v2276
    %2561 = vmatprep.subr.mxu0 0.0
    %2562 = vmatpush2.msra.mxu0 0.0
    %2563 = vmatprep.subr.mxu0 0.0
    %2564 = vmatpush2.msra.mxu0 0.0
    %2565 = vmatprep.subr.mxu0 0.0
    %2566 = vmatpush2.msra.mxu0 0.0
    %2567 = vmatprep.subr.mxu0 0.0
    %2568 = vmatpush2.msra.mxu0 0.0
    %2569 = vmatprep.subr.mxu0 0.0
    %2570 = vmatpush2.msra.mxu0 0.0
    %2571 = vmatprep.subr.mxu0 0.0
    %2572 = vmatpush2.msra.mxu0 0.0
    %2573 = vmatprep.subr.mxu0 0.0
    %2574 = vmatpush2.msra.mxu0 0.0
    %2575 = vmatprep.subr.mxu0 0.0
    %2576 = vmatpush2.msra.mxu0 0.0
    %2577 = vmatprep.subr.mxu0 0.0
    %2578 = vmatpush2.msra.mxu0 0.0
    %2579 = vmatprep.subr.mxu0 0.0
    %2580 = vmatpush2.msra.mxu0 0.0
    %2581 = vmatprep.subr.mxu0 0.0
    %2582 = vmatpush2.msra.mxu0 0.0
    %2583 = vmatprep.subr.mxu0 0.0
    %2584 = vmatpush2.msra.mxu0 0.0
    %2585 = vmatprep.subr.mxu0 0.0
    %2586 = vmatpush2.msra.mxu0 0.0
    %2587 = vmatprep.subr.mxu0 0.0
    %2588 = vmatpush2.msra.mxu0 0.0
    %2589 = vmatprep.subr.mxu0 0.0
    %2590 = vmatpush2.msra.mxu0 0.0
    %2591 = vmatprep.subr.mxu0 0.0
    %2592 = vmatpush2.msra.mxu0 0.0
    %2593 = vmatprep.mubr.f32.mxu0 0.0
    %2594 = vmatmul.mubr.f32.gmra.mxu0 %v2527
    %v2595 = vpop.f32.mrf.mxu0
    %v2596 = vadd.f32 0.0, %v2595
    %v2597 = vpop.f32.mrf.mxu0
    %2598 = vdwg.mxu0
    %s2599 = scalar_lea.vmem [#allocation10], 96
    %v2600 = vld [vmem:[%s2599] sm:$0xff]
    %v2601 = vld [vmem:[%s2599 + $0x8] sm:$0xff]
    %v2602 = vld [vmem:[%s2599 + $0x10] sm:$0xff]
    %v2603 = vld [vmem:[%s2599 + $0x18] sm:$0xff]
    %v2605 = vsel %vm99, %v2523, 0
    %v2608 = vsel %vm99, %v2596, 0
    %2610 = vmatprep.subr.mxu0 0.0
    %2611 = vmatpush1.msra.mxu0 0.0
    %2612 = vmatprep.subr.mxu0 0.0
    %2613 = vmatpush1.msra.mxu0 0.0
    %2614 = vmatprep.subr.mxu0 0.0
    %2615 = vmatpush1.msra.mxu0 0.0
    %2616 = vmatprep.subr.mxu0 0.0
    %2617 = vmatpush1.msra.mxu0 0.0
    %2618 = vmatprep.subr.mxu0 0.0
    %2619 = vmatpush1.msra.mxu0 0.0
    %2620 = vmatprep.subr.mxu0 0.0
    %2621 = vmatpush1.msra.mxu0 0.0
    %2622 = vmatprep.subr.mxu0 0.0
    %2623 = vmatpush1.msra.mxu0 0.0
    %2624 = vmatprep.subr.mxu0 0.0
    %2625 = vmatpush1.msra.mxu0 0.0
    %2626 = vmatprep.subr.mxu0 0.0
    %2627 = vmatpush1.msra.mxu0 0.0
    %2628 = vmatprep.subr.mxu0 0.0
    %2629 = vmatpush1.msra.mxu0 0.0
    %2630 = vmatprep.subr.mxu0 0.0
    %2631 = vmatpush1.msra.mxu0 0.0
    %2632 = vmatprep.subr.mxu0 0.0
    %2633 = vmatpush1.msra.mxu0 0.0
    %2634 = vmatprep.subr.mxu0 0.0
    %2635 = vmatpush1.msra.mxu0 %v2603
    %2636 = vmatprep.subr.mxu0 0.0
    %2637 = vmatpush1.msra.mxu0 %v2602
    %2638 = vmatprep.subr.mxu0 0.0
    %2639 = vmatpush1.msra.mxu0 %v2601
    %2640 = vmatprep.subr.mxu0 0.0
    %2641 = vmatpush1.msra.mxu0 %v2600
    %2642 = vmatprep.subr.mxu0 0.0
    %2643 = vmatpush2.msra.mxu0 0.0
    %2644 = vmatprep.subr.mxu0 0.0
    %2645 = vmatpush2.msra.mxu0 0.0
    %2646 = vmatprep.subr.mxu0 0.0
    %2647 = vmatpush2.msra.mxu0 0.0
    %2648 = vmatprep.subr.mxu0 0.0
    %2649 = vmatpush2.msra.mxu0 0.0
    %2650 = vmatprep.subr.mxu0 0.0
    %2651 = vmatpush2.msra.mxu0 0.0
    %2652 = vmatprep.subr.mxu0 0.0
    %2653 = vmatpush2.msra.mxu0 0.0
    %2654 = vmatprep.subr.mxu0 0.0
    %2655 = vmatpush2.msra.mxu0 0.0
    %2656 = vmatprep.subr.mxu0 0.0
    %2657 = vmatpush2.msra.mxu0 0.0
    %2658 = vmatprep.subr.mxu0 0.0
    %2659 = vmatpush2.msra.mxu0 0.0
    %2660 = vmatprep.subr.mxu0 0.0
    %2661 = vmatpush2.msra.mxu0 0.0
    %2662 = vmatprep.subr.mxu0 0.0
    %2663 = vmatpush2.msra.mxu0 0.0
    %2664 = vmatprep.subr.mxu0 0.0
    %2665 = vmatpush2.msra.mxu0 0.0
    %2666 = vmatprep.subr.mxu0 0.0
    %2667 = vmatpush2.msra.mxu0 0.0
    %2668 = vmatprep.subr.mxu0 0.0
    %2669 = vmatpush2.msra.mxu0 0.0
    %2670 = vmatprep.subr.mxu0 0.0
    %2671 = vmatpush2.msra.mxu0 0.0
    %2672 = vmatprep.subr.mxu0 0.0
    %2673 = vmatpush2.msra.mxu0 0.0
    %2674 = vmatprep.mubr.f32.mxu0 0.0
    %2675 = vmatmul.mubr.f32.gmra.mxu0 %v2605
    %v2676 = vpop.f32.mrf.mxu0
    %v2677 = vadd.f32 0.0, %v2676
    %v2678 = vpop.f32.mrf.mxu0
    %2679 = vmatprep.mubr.f32.mxu0 0.0
    %2680 = vmatmul.mubr.f32.gmra.mxu0 %v2608
    %v2681 = vpop.f32.mrf.mxu0
    %v2682 = vadd.f32 0.0, %v2681
    %v2683 = vpop.f32.mrf.mxu0
    %2684 = vdwg.mxu0
    %v2685 = vadd.f32 %v2037, %v2677
    %v2686 = vadd.f32 %v2038, %v2682
    %s2687 = scalar_lea.vmem [#allocation5], 128
    %v2688 = vld [vmem:[%s2687] sm:$0xff]
    %v2689 = vld [vmem:[%s2687 + $0x8] sm:$0xff]
    %v2690 = vld [vmem:[%s2687 + $0x10] sm:$0xff]
    %v2691 = vld [vmem:[%s2687 + $0x18] sm:$0xff]
    %2692 = vmatprep.subr.mxu0 0.0
    %2693 = vmatpush1.msra.mxu0 0.0
    %2694 = vmatprep.subr.mxu0 0.0
    %2695 = vmatpush1.msra.mxu0 0.0
    %2696 = vmatprep.subr.mxu0 0.0
    %2697 = vmatpush1.msra.mxu0 0.0
    %2698 = vmatprep.subr.mxu0 0.0
    %2699 = vmatpush1.msra.mxu0 0.0
    %2700 = vmatprep.subr.mxu0 0.0
    %2701 = vmatpush1.msra.mxu0 0.0
    %2702 = vmatprep.subr.mxu0 0.0
    %2703 = vmatpush1.msra.mxu0 0.0
    %2704 = vmatprep.subr.mxu0 0.0
    %2705 = vmatpush1.msra.mxu0 0.0
    %2706 = vmatprep.subr.mxu0 0.0
    %2707 = vmatpush1.msra.mxu0 0.0
    %2708 = vmatprep.subr.mxu0 0.0
    %2709 = vmatpush1.msra.mxu0 0.0
    %2710 = vmatprep.subr.mxu0 0.0
    %2711 = vmatpush1.msra.mxu0 0.0
    %2712 = vmatprep.subr.mxu0 0.0
    %2713 = vmatpush1.msra.mxu0 0.0
    %2714 = vmatprep.subr.mxu0 0.0
    %2715 = vmatpush1.msra.mxu0 0.0
    %2716 = vmatprep.subr.mxu0 0.0
    %2717 = vmatpush1.msra.mxu0 %v2691
    %2718 = vmatprep.subr.mxu0 0.0
    %2719 = vmatpush1.msra.mxu0 %v2690
    %2720 = vmatprep.subr.mxu0 0.0
    %2721 = vmatpush1.msra.mxu0 %v2689
    %2722 = vmatprep.subr.mxu0 0.0
    %2723 = vmatpush1.msra.mxu0 %v2688
    %2724 = vmatprep.subr.mxu0 0.0
    %2725 = vmatpush2.msra.mxu0 0.0
    %2726 = vmatprep.subr.mxu0 0.0
    %2727 = vmatpush2.msra.mxu0 0.0
    %2728 = vmatprep.subr.mxu0 0.0
    %2729 = vmatpush2.msra.mxu0 0.0
    %2730 = vmatprep.subr.mxu0 0.0
    %2731 = vmatpush2.msra.mxu0 0.0
    %2732 = vmatprep.subr.mxu0 0.0
    %2733 = vmatpush2.msra.mxu0 0.0
    %2734 = vmatprep.subr.mxu0 0.0
    %2735 = vmatpush2.msra.mxu0 0.0
    %2736 = vmatprep.subr.mxu0 0.0
    %2737 = vmatpush2.msra.mxu0 0.0
    %2738 = vmatprep.subr.mxu0 0.0
    %2739 = vmatpush2.msra.mxu0 0.0
    %2740 = vmatprep.subr.mxu0 0.0
    %2741 = vmatpush2.msra.mxu0 0.0
    %2742 = vmatprep.subr.mxu0 0.0
    %2743 = vmatpush2.msra.mxu0 0.0
    %2744 = vmatprep.subr.mxu0 0.0
    %2745 = vmatpush2.msra.mxu0 0.0
    %2746 = vmatprep.subr.mxu0 0.0
    %2747 = vmatpush2.msra.mxu0 0.0
    %2748 = vmatprep.subr.mxu0 0.0
    %2749 = vmatpush2.msra.mxu0 0.0
    %2750 = vmatprep.subr.mxu0 0.0
    %2751 = vmatpush2.msra.mxu0 0.0
    %2752 = vmatprep.subr.mxu0 0.0
    %2753 = vmatpush2.msra.mxu0 0.0
    %2754 = vmatprep.subr.mxu0 0.0
    %2755 = vmatpush2.msra.mxu0 0.0
    %2756 = vmatprep.mubr.f32.mxu0 0.0
    %2757 = vmatmul.mubr.f32.gmra.mxu0 %v101
    %v2758 = vpop.f32.mrf.mxu0
    %v2759 = vadd.f32 0.0, %v2758
    %v2760 = vpop.f32.mrf.mxu0
    %2761 = vmatprep.mubr.f32.mxu0 0.0
    %2762 = vmatmul.mubr.f32.gmra.mxu0 %v104
    %v2763 = vpop.f32.mrf.mxu0
    %v2764 = vadd.f32 0.0, %v2763
    %v2765 = vpop.f32.mrf.mxu0
    %2766 = vdwg.mxu0
    %s2767 = scalar_lea.vmem [#allocation7], 128
    %v2768 = vld [vmem:[%s2767] sm:$0xff]
    %v2769 = vld [vmem:[%s2767 + $0x8] sm:$0xff]
    %v2770 = vld [vmem:[%s2767 + $0x10] sm:$0xff]
    %v2771 = vld [vmem:[%s2767 + $0x18] sm:$0xff]
    %2772 = vmatprep.subr.mxu0 0.0
    %2773 = vmatpush1.msra.mxu0 0.0
    %2774 = vmatprep.subr.mxu0 0.0
    %2775 = vmatpush1.msra.mxu0 0.0
    %2776 = vmatprep.subr.mxu0 0.0
    %2777 = vmatpush1.msra.mxu0 0.0
    %2778 = vmatprep.subr.mxu0 0.0
    %2779 = vmatpush1.msra.mxu0 0.0
    %2780 = vmatprep.subr.mxu0 0.0
    %2781 = vmatpush1.msra.mxu0 0.0
    %2782 = vmatprep.subr.mxu0 0.0
    %2783 = vmatpush1.msra.mxu0 0.0
    %2784 = vmatprep.subr.mxu0 0.0
    %2785 = vmatpush1.msra.mxu0 0.0
    %2786 = vmatprep.subr.mxu0 0.0
    %2787 = vmatpush1.msra.mxu0 0.0
    %2788 = vmatprep.subr.mxu0 0.0
    %2789 = vmatpush1.msra.mxu0 0.0
    %2790 = vmatprep.subr.mxu0 0.0
    %2791 = vmatpush1.msra.mxu0 0.0
    %2792 = vmatprep.subr.mxu0 0.0
    %2793 = vmatpush1.msra.mxu0 0.0
    %2794 = vmatprep.subr.mxu0 0.0
    %2795 = vmatpush1.msra.mxu0 0.0
    %2796 = vmatprep.subr.mxu0 0.0
    %2797 = vmatpush1.msra.mxu0 %v2771
    %2798 = vmatprep.subr.mxu0 0.0
    %2799 = vmatpush1.msra.mxu0 %v2770
    %2800 = vmatprep.subr.mxu0 0.0
    %2801 = vmatpush1.msra.mxu0 %v2769
    %2802 = vmatprep.subr.mxu0 0.0
    %2803 = vmatpush1.msra.mxu0 %v2768
    %2804 = vmatprep.subr.mxu0 0.0
    %2805 = vmatpush2.msra.mxu0 0.0
    %2806 = vmatprep.subr.mxu0 0.0
    %2807 = vmatpush2.msra.mxu0 0.0
    %2808 = vmatprep.subr.mxu0 0.0
    %2809 = vmatpush2.msra.mxu0 0.0
    %2810 = vmatprep.subr.mxu0 0.0
    %2811 = vmatpush2.msra.mxu0 0.0
    %2812 = vmatprep.subr.mxu0 0.0
    %2813 = vmatpush2.msra.mxu0 0.0
    %2814 = vmatprep.subr.mxu0 0.0
    %2815 = vmatpush2.msra.mxu0 0.0
    %2816 = vmatprep.subr.mxu0 0.0
    %2817 = vmatpush2.msra.mxu0 0.0
    %2818 = vmatprep.subr.mxu0 0.0
    %2819 = vmatpush2.msra.mxu0 0.0
    %2820 = vmatprep.subr.mxu0 0.0
    %2821 = vmatpush2.msra.mxu0 0.0
    %2822 = vmatprep.subr.mxu0 0.0
    %2823 = vmatpush2.msra.mxu0 0.0
    %2824 = vmatprep.subr.mxu0 0.0
    %2825 = vmatpush2.msra.mxu0 0.0
    %2826 = vmatprep.subr.mxu0 0.0
    %2827 = vmatpush2.msra.mxu0 0.0
    %2828 = vmatprep.subr.mxu0 0.0
    %2829 = vmatpush2.msra.mxu0 0.0
    %2830 = vmatprep.subr.mxu0 0.0
    %2831 = vmatpush2.msra.mxu0 0.0
    %2832 = vmatprep.subr.mxu0 0.0
    %2833 = vmatpush2.msra.mxu0 0.0
    %2834 = vmatprep.subr.mxu0 0.0
    %2835 = vmatpush2.msra.mxu0 0.0
    %2836 = vmatprep.mubr.f32.mxu0 0.0
    %2837 = vmatmul.mubr.f32.gmra.mxu0 %v101
    %v2838 = vpop.f32.mrf.mxu0
    %v2839 = vadd.f32 0.0, %v2838
    %v2840 = vpop.f32.mrf.mxu0
    %2841 = vmatprep.mubr.f32.mxu0 0.0
    %2842 = vmatmul.mubr.f32.gmra.mxu0 %v104
    %v2843 = vpop.f32.mrf.mxu0
    %v2844 = vadd.f32 0.0, %v2843
    %v2845 = vpop.f32.mrf.mxu0
    %2846 = vdwg.mxu0
    %s2847 = scalar_lea.vmem [#allocation8], 128
    %v2848 = vld [vmem:[%s2847] sm:$0xff]
    %v2849 = vld [vmem:[%s2847 + $0x8] sm:$0xff]
    %v2850 = vld [vmem:[%s2847 + $0x10] sm:$0xff]
    %v2851 = vld [vmem:[%s2847 + $0x18] sm:$0xff]
    %2852 = vmatprep.subr.mxu0 0.0
    %2853 = vmatpush1.msra.mxu0 0.0
    %2854 = vmatprep.subr.mxu0 0.0
    %2855 = vmatpush1.msra.mxu0 0.0
    %2856 = vmatprep.subr.mxu0 0.0
    %2857 = vmatpush1.msra.mxu0 0.0
    %2858 = vmatprep.subr.mxu0 0.0
    %2859 = vmatpush1.msra.mxu0 0.0
    %2860 = vmatprep.subr.mxu0 0.0
    %2861 = vmatpush1.msra.mxu0 0.0
    %2862 = vmatprep.subr.mxu0 0.0
    %2863 = vmatpush1.msra.mxu0 0.0
    %2864 = vmatprep.subr.mxu0 0.0
    %2865 = vmatpush1.msra.mxu0 0.0
    %2866 = vmatprep.subr.mxu0 0.0
    %2867 = vmatpush1.msra.mxu0 0.0
    %2868 = vmatprep.subr.mxu0 0.0
    %2869 = vmatpush1.msra.mxu0 0.0
    %2870 = vmatprep.subr.mxu0 0.0
    %2871 = vmatpush1.msra.mxu0 0.0
    %2872 = vmatprep.subr.mxu0 0.0
    %2873 = vmatpush1.msra.mxu0 0.0
    %2874 = vmatprep.subr.mxu0 0.0
    %2875 = vmatpush1.msra.mxu0 0.0
    %2876 = vmatprep.subr.mxu0 0.0
    %2877 = vmatpush1.msra.mxu0 %v2851
    %2878 = vmatprep.subr.mxu0 0.0
    %2879 = vmatpush1.msra.mxu0 %v2850
    %2880 = vmatprep.subr.mxu0 0.0
    %2881 = vmatpush1.msra.mxu0 %v2849
    %2882 = vmatprep.subr.mxu0 0.0
    %2883 = vmatpush1.msra.mxu0 %v2848
    %2884 = vmatprep.subr.mxu0 0.0
    %2885 = vmatpush2.msra.mxu0 0.0
    %2886 = vmatprep.subr.mxu0 0.0
    %2887 = vmatpush2.msra.mxu0 0.0
    %2888 = vmatprep.subr.mxu0 0.0
    %2889 = vmatpush2.msra.mxu0 0.0
    %2890 = vmatprep.subr.mxu0 0.0
    %2891 = vmatpush2.msra.mxu0 0.0
    %2892 = vmatprep.subr.mxu0 0.0
    %2893 = vmatpush2.msra.mxu0 0.0
    %2894 = vmatprep.subr.mxu0 0.0
    %2895 = vmatpush2.msra.mxu0 0.0
    %2896 = vmatprep.subr.mxu0 0.0
    %2897 = vmatpush2.msra.mxu0 0.0
    %2898 = vmatprep.subr.mxu0 0.0
    %2899 = vmatpush2.msra.mxu0 0.0
    %2900 = vmatprep.subr.mxu0 0.0
    %2901 = vmatpush2.msra.mxu0 0.0
    %2902 = vmatprep.subr.mxu0 0.0
    %2903 = vmatpush2.msra.mxu0 0.0
    %2904 = vmatprep.subr.mxu0 0.0
    %2905 = vmatpush2.msra.mxu0 0.0
    %2906 = vmatprep.subr.mxu0 0.0
    %2907 = vmatpush2.msra.mxu0 0.0
    %2908 = vmatprep.subr.mxu0 0.0
    %2909 = vmatpush2.msra.mxu0 0.0
    %2910 = vmatprep.subr.mxu0 0.0
    %2911 = vmatpush2.msra.mxu0 0.0
    %2912 = vmatprep.subr.mxu0 0.0
    %2913 = vmatpush2.msra.mxu0 0.0
    %2914 = vmatprep.subr.mxu0 0.0
    %2915 = vmatpush2.msra.mxu0 0.0
    %2916 = vmatprep.mubr.f32.mxu0 0.0
    %2917 = vmatmul.mubr.f32.gmra.mxu0 %v101
    %v2918 = vpop.f32.mrf.mxu0
    %v2919 = vadd.f32 0.0, %v2918
    %v2920 = vpop.f32.mrf.mxu0
    %2921 = vmatprep.mubr.f32.mxu0 0.0
    %2922 = vmatmul.mubr.f32.gmra.mxu0 %v104
    %v2923 = vpop.f32.mrf.mxu0
    %v2924 = vadd.f32 0.0, %v2923
    %v2925 = vpop.f32.mrf.mxu0
    %2926 = vdwg.mxu0
    %v2928 = vsel %vm99, %v2759, 0
    %v2931 = vsel %vm99, %v2839, 0
    %2933 = vmatprep.subr.mxu0 0.0
    %2934 = vmatpush1.xpose.msra.mxu0 0.0
    %2935 = vmatprep.subr.mxu0 0.0
    %2936 = vmatpush1.xpose.msra.mxu0 0.0
    %2937 = vmatprep.subr.mxu0 0.0
    %2938 = vmatpush1.xpose.msra.mxu0 0.0
    %2939 = vmatprep.subr.mxu0 0.0
    %2940 = vmatpush1.xpose.msra.mxu0 0.0
    %2941 = vmatprep.subr.mxu0 0.0
    %2942 = vmatpush1.xpose.msra.mxu0 0.0
    %2943 = vmatprep.subr.mxu0 0.0
    %2944 = vmatpush1.xpose.msra.mxu0 0.0
    %2945 = vmatprep.subr.mxu0 0.0
    %2946 = vmatpush1.xpose.msra.mxu0 0.0
    %2947 = vmatprep.subr.mxu0 0.0
    %2948 = vmatpush1.xpose.msra.mxu0 0.0
    %2949 = vmatprep.subr.mxu0 0.0
    %2950 = vmatpush1.xpose.msra.mxu0 0.0
    %2951 = vmatprep.subr.mxu0 0.0
    %2952 = vmatpush1.xpose.msra.mxu0 0.0
    %2953 = vmatprep.subr.mxu0 0.0
    %2954 = vmatpush1.xpose.msra.mxu0 0.0
    %2955 = vmatprep.subr.mxu0 0.0
    %2956 = vmatpush1.xpose.msra.mxu0 0.0
    %2957 = vmatprep.subr.mxu0 0.0
    %2958 = vmatpush1.xpose.msra.mxu0 0.0
    %2959 = vmatprep.subr.mxu0 0.0
    %2960 = vmatpush1.xpose.msra.mxu0 0.0
    %2961 = vmatprep.subr.mxu0 0.0
    %2962 = vmatpush1.xpose.msra.mxu0 0.0
    %2963 = vmatprep.subr.mxu0 0.0
    %2964 = vmatpush1.xpose.msra.mxu0 %v2931
    %2965 = vmatprep.subr.mxu0 0.0
    %2966 = vmatpush2.xpose.msra.mxu0 0.0
    %2967 = vmatprep.subr.mxu0 0.0
    %2968 = vmatpush2.xpose.msra.mxu0 0.0
    %2969 = vmatprep.subr.mxu0 0.0
    %2970 = vmatpush2.xpose.msra.mxu0 0.0
    %2971 = vmatprep.subr.mxu0 0.0
    %2972 = vmatpush2.xpose.msra.mxu0 0.0
    %2973 = vmatprep.subr.mxu0 0.0
    %2974 = vmatpush2.xpose.msra.mxu0 0.0
    %2975 = vmatprep.subr.mxu0 0.0
    %2976 = vmatpush2.xpose.msra.mxu0 0.0
    %2977 = vmatprep.subr.mxu0 0.0
    %2978 = vmatpush2.xpose.msra.mxu0 0.0
    %2979 = vmatprep.subr.mxu0 0.0
    %2980 = vmatpush2.xpose.msra.mxu0 0.0
    %2981 = vmatprep.subr.mxu0 0.0
    %2982 = vmatpush2.xpose.msra.mxu0 0.0
    %2983 = vmatprep.subr.mxu0 0.0
    %2984 = vmatpush2.xpose.msra.mxu0 0.0
    %2985 = vmatprep.subr.mxu0 0.0
    %2986 = vmatpush2.xpose.msra.mxu0 0.0
    %2987 = vmatprep.subr.mxu0 0.0
    %2988 = vmatpush2.xpose.msra.mxu0 0.0
    %2989 = vmatprep.subr.mxu0 0.0
    %2990 = vmatpush2.xpose.msra.mxu0 0.0
    %2991 = vmatprep.subr.mxu0 0.0
    %2992 = vmatpush2.xpose.msra.mxu0 0.0
    %2993 = vmatprep.subr.mxu0 0.0
    %2994 = vmatpush2.xpose.msra.mxu0 0.0
    %2995 = vmatprep.subr.mxu0 0.0
    %2996 = vmatpush2.xpose.msra.mxu0 0.0
    %2997 = vmatprep.mubr.f32.mxu0 0.0
    %2998 = vmatmul.mubr.f32.gmra.mxu0 %v2928
    %v2999 = vpop.f32.mrf.mxu0
    %v3000 = vadd.f32 0.0, %v2999
    %v3001 = vpop.f32.mrf.mxu0
    %3002 = vdwg.mxu0
    %v3004 = vsel %vm99, %v2764, 0
    %v3007 = vsel %vm99, %v2844, 0
    %3009 = vmatprep.subr.mxu0 0.0
    %3010 = vmatpush1.xpose.msra.mxu0 0.0
    %3011 = vmatprep.subr.mxu0 0.0
    %3012 = vmatpush1.xpose.msra.mxu0 0.0
    %3013 = vmatprep.subr.mxu0 0.0
    %3014 = vmatpush1.xpose.msra.mxu0 0.0
    %3015 = vmatprep.subr.mxu0 0.0
    %3016 = vmatpush1.xpose.msra.mxu0 0.0
    %3017 = vmatprep.subr.mxu0 0.0
    %3018 = vmatpush1.xpose.msra.mxu0 0.0
    %3019 = vmatprep.subr.mxu0 0.0
    %3020 = vmatpush1.xpose.msra.mxu0 0.0
    %3021 = vmatprep.subr.mxu0 0.0
    %3022 = vmatpush1.xpose.msra.mxu0 0.0
    %3023 = vmatprep.subr.mxu0 0.0
    %3024 = vmatpush1.xpose.msra.mxu0 0.0
    %3025 = vmatprep.subr.mxu0 0.0
    %3026 = vmatpush1.xpose.msra.mxu0 0.0
    %3027 = vmatprep.subr.mxu0 0.0
    %3028 = vmatpush1.xpose.msra.mxu0 0.0
    %3029 = vmatprep.subr.mxu0 0.0
    %3030 = vmatpush1.xpose.msra.mxu0 0.0
    %3031 = vmatprep.subr.mxu0 0.0
    %3032 = vmatpush1.xpose.msra.mxu0 0.0
    %3033 = vmatprep.subr.mxu0 0.0
    %3034 = vmatpush1.xpose.msra.mxu0 0.0
    %3035 = vmatprep.subr.mxu0 0.0
    %3036 = vmatpush1.xpose.msra.mxu0 0.0
    %3037 = vmatprep.subr.mxu0 0.0
    %3038 = vmatpush1.xpose.msra.mxu0 0.0
    %3039 = vmatprep.subr.mxu0 0.0
    %3040 = vmatpush1.xpose.msra.mxu0 %v3007
    %3041 = vmatprep.subr.mxu0 0.0
    %3042 = vmatpush2.xpose.msra.mxu0 0.0
    %3043 = vmatprep.subr.mxu0 0.0
    %3044 = vmatpush2.xpose.msra.mxu0 0.0
    %3045 = vmatprep.subr.mxu0 0.0
    %3046 = vmatpush2.xpose.msra.mxu0 0.0
    %3047 = vmatprep.subr.mxu0 0.0
    %3048 = vmatpush2.xpose.msra.mxu0 0.0
    %3049 = vmatprep.subr.mxu0 0.0
    %3050 = vmatpush2.xpose.msra.mxu0 0.0
    %3051 = vmatprep.subr.mxu0 0.0
    %3052 = vmatpush2.xpose.msra.mxu0 0.0
    %3053 = vmatprep.subr.mxu0 0.0
    %3054 = vmatpush2.xpose.msra.mxu0 0.0
    %3055 = vmatprep.subr.mxu0 0.0
    %3056 = vmatpush2.xpose.msra.mxu0 0.0
    %3057 = vmatprep.subr.mxu0 0.0
    %3058 = vmatpush2.xpose.msra.mxu0 0.0
    %3059 = vmatprep.subr.mxu0 0.0
    %3060 = vmatpush2.xpose.msra.mxu0 0.0
    %3061 = vmatprep.subr.mxu0 0.0
    %3062 = vmatpush2.xpose.msra.mxu0 0.0
    %3063 = vmatprep.subr.mxu0 0.0
    %3064 = vmatpush2.xpose.msra.mxu0 0.0
    %3065 = vmatprep.subr.mxu0 0.0
    %3066 = vmatpush2.xpose.msra.mxu0 0.0
    %3067 = vmatprep.subr.mxu0 0.0
    %3068 = vmatpush2.xpose.msra.mxu0 0.0
    %3069 = vmatprep.subr.mxu0 0.0
    %3070 = vmatpush2.xpose.msra.mxu0 0.0
    %3071 = vmatprep.subr.mxu0 0.0
    %3072 = vmatpush2.xpose.msra.mxu0 0.0
    %3073 = vmatprep.mubr.f32.mxu0 0.0
    %3074 = vmatmul.mubr.f32.gmra.mxu0 %v3004
    %v3075 = vpop.f32.mrf.mxu0
    %v3076 = vadd.f32 0.0, %v3075
    %v3077 = vpop.f32.mrf.mxu0
    %3078 = vdwg.mxu0
    %v3079 = vsel %vm491, %v3000, -inf
    %3080 = vmax.xlane.f32.xlu0 %v3079
    %v3081 = vpop.xlane.xlu0 %3080
    %v3082 = vsel %vm491, %v3076, -inf
    %3083 = vmax.xlane.f32.xlu0 %v3082
    %v3084 = vpop.xlane.xlu0 %3083
    %v3085 = vsub.f32 %v3000, %v3081
    %v3086 = vsub.f32 %v3076, %v3084
    %v3087 = vmul.f32 %v3085, 1.442695
    %v3088 = vpow.pop %v3087
    %v3089 = vmul.f32 %v3086, 1.442695
    %v3090 = vpow.pop %v3089
    %v3091 = vsel %vm491, %v3088, 0.0
    %3092 = vadd.xlane.f32.xlu0 %v3091
    %v3093 = vpop.xlane.xlu0 %3092
    %v3094 = vsel %vm491, %v3090, 0.0
    %3095 = vadd.xlane.f32.xlu0 %v3094
    %v3096 = vpop.xlane.xlu0 %3095
    %v3097 = vrcp.pop %v3093
    %v3098 = vrcp.pop %v3096
    %v3099 = vmul.f32 %v3088, %v3097
    %v3100 = vmul.f32 %v3090, %v3098
    %v3102 = vsel %vm491, %v3099, 0
    %3104 = vmatprep.subr.mxu0 0.0
    %3105 = vmatpush1.msra.mxu0 0.0
    %3106 = vmatprep.subr.mxu0 0.0
    %3107 = vmatpush1.msra.mxu0 0.0
    %3108 = vmatprep.subr.mxu0 0.0
    %3109 = vmatpush1.msra.mxu0 0.0
    %3110 = vmatprep.subr.mxu0 0.0
    %3111 = vmatpush1.msra.mxu0 0.0
    %3112 = vmatprep.subr.mxu0 0.0
    %3113 = vmatpush1.msra.mxu0 0.0
    %3114 = vmatprep.subr.mxu0 0.0
    %3115 = vmatpush1.msra.mxu0 0.0
    %3116 = vmatprep.subr.mxu0 0.0
    %3117 = vmatpush1.msra.mxu0 0.0
    %3118 = vmatprep.subr.mxu0 0.0
    %3119 = vmatpush1.msra.mxu0 0.0
    %3120 = vmatprep.subr.mxu0 0.0
    %3121 = vmatpush1.msra.mxu0 0.0
    %3122 = vmatprep.subr.mxu0 0.0
    %3123 = vmatpush1.msra.mxu0 0.0
    %3124 = vmatprep.subr.mxu0 0.0
    %3125 = vmatpush1.msra.mxu0 0.0
    %3126 = vmatprep.subr.mxu0 0.0
    %3127 = vmatpush1.msra.mxu0 0.0
    %3128 = vmatprep.subr.mxu0 0.0
    %3129 = vmatpush1.msra.mxu0 0.0
    %3130 = vmatprep.subr.mxu0 0.0
    %3131 = vmatpush1.msra.mxu0 0.0
    %3132 = vmatprep.subr.mxu0 0.0
    %3133 = vmatpush1.msra.mxu0 0.0
    %3134 = vmatprep.subr.mxu0 0.0
    %3135 = vmatpush1.msra.mxu0 %v2919
    %3136 = vmatprep.subr.mxu0 0.0
    %3137 = vmatpush2.msra.mxu0 0.0
    %3138 = vmatprep.subr.mxu0 0.0
    %3139 = vmatpush2.msra.mxu0 0.0
    %3140 = vmatprep.subr.mxu0 0.0
    %3141 = vmatpush2.msra.mxu0 0.0
    %3142 = vmatprep.subr.mxu0 0.0
    %3143 = vmatpush2.msra.mxu0 0.0
    %3144 = vmatprep.subr.mxu0 0.0
    %3145 = vmatpush2.msra.mxu0 0.0
    %3146 = vmatprep.subr.mxu0 0.0
    %3147 = vmatpush2.msra.mxu0 0.0
    %3148 = vmatprep.subr.mxu0 0.0
    %3149 = vmatpush2.msra.mxu0 0.0
    %3150 = vmatprep.subr.mxu0 0.0
    %3151 = vmatpush2.msra.mxu0 0.0
    %3152 = vmatprep.subr.mxu0 0.0
    %3153 = vmatpush2.msra.mxu0 0.0
    %3154 = vmatprep.subr.mxu0 0.0
    %3155 = vmatpush2.msra.mxu0 0.0
    %3156 = vmatprep.subr.mxu0 0.0
    %3157 = vmatpush2.msra.mxu0 0.0
    %3158 = vmatprep.subr.mxu0 0.0
    %3159 = vmatpush2.msra.mxu0 0.0
    %3160 = vmatprep.subr.mxu0 0.0
    %3161 = vmatpush2.msra.mxu0 0.0
    %3162 = vmatprep.subr.mxu0 0.0
    %3163 = vmatpush2.msra.mxu0 0.0
    %3164 = vmatprep.subr.mxu0 0.0
    %3165 = vmatpush2.msra.mxu0 0.0
    %3166 = vmatprep.subr.mxu0 0.0
    %3167 = vmatpush2.msra.mxu0 0.0
    %3168 = vmatprep.mubr.f32.mxu0 0.0
    %3169 = vmatmul.mubr.f32.gmra.mxu0 %v3102
    %v3170 = vpop.f32.mrf.mxu0
    %v3171 = vadd.f32 0.0, %v3170
    %v3172 = vpop.f32.mrf.mxu0
    %3173 = vdwg.mxu0
    %v3175 = vsel %vm491, %v3100, 0
    %3177 = vmatprep.subr.mxu0 0.0
    %3178 = vmatpush1.msra.mxu0 0.0
    %3179 = vmatprep.subr.mxu0 0.0
    %3180 = vmatpush1.msra.mxu0 0.0
    %3181 = vmatprep.subr.mxu0 0.0
    %3182 = vmatpush1.msra.mxu0 0.0
    %3183 = vmatprep.subr.mxu0 0.0
    %3184 = vmatpush1.msra.mxu0 0.0
    %3185 = vmatprep.subr.mxu0 0.0
    %3186 = vmatpush1.msra.mxu0 0.0
    %3187 = vmatprep.subr.mxu0 0.0
    %3188 = vmatpush1.msra.mxu0 0.0
    %3189 = vmatprep.subr.mxu0 0.0
    %3190 = vmatpush1.msra.mxu0 0.0
    %3191 = vmatprep.subr.mxu0 0.0
    %3192 = vmatpush1.msra.mxu0 0.0
    %3193 = vmatprep.subr.mxu0 0.0
    %3194 = vmatpush1.msra.mxu0 0.0
    %3195 = vmatprep.subr.mxu0 0.0
    %3196 = vmatpush1.msra.mxu0 0.0
    %3197 = vmatprep.subr.mxu0 0.0
    %3198 = vmatpush1.msra.mxu0 0.0
    %3199 = vmatprep.subr.mxu0 0.0
    %3200 = vmatpush1.msra.mxu0 0.0
    %3201 = vmatprep.subr.mxu0 0.0
    %3202 = vmatpush1.msra.mxu0 0.0
    %3203 = vmatprep.subr.mxu0 0.0
    %3204 = vmatpush1.msra.mxu0 0.0
    %3205 = vmatprep.subr.mxu0 0.0
    %3206 = vmatpush1.msra.mxu0 0.0
    %3207 = vmatprep.subr.mxu0 0.0
    %3208 = vmatpush1.msra.mxu0 %v2924
    %3209 = vmatprep.subr.mxu0 0.0
    %3210 = vmatpush2.msra.mxu0 0.0
    %3211 = vmatprep.subr.mxu0 0.0
    %3212 = vmatpush2.msra.mxu0 0.0
    %3213 = vmatprep.subr.mxu0 0.0
    %3214 = vmatpush2.msra.mxu0 0.0
    %3215 = vmatprep.subr.mxu0 0.0
    %3216 = vmatpush2.msra.mxu0 0.0
    %3217 = vmatprep.subr.mxu0 0.0
    %3218 = vmatpush2.msra.mxu0 0.0
    %3219 = vmatprep.subr.mxu0 0.0
    %3220 = vmatpush2.msra.mxu0 0.0
    %3221 = vmatprep.subr.mxu0 0.0
    %3222 = vmatpush2.msra.mxu0 0.0
    %3223 = vmatprep.subr.mxu0 0.0
    %3224 = vmatpush2.msra.mxu0 0.0
    %3225 = vmatprep.subr.mxu0 0.0
    %3226 = vmatpush2.msra.mxu0 0.0
    %3227 = vmatprep.subr.mxu0 0.0
    %3228 = vmatpush2.msra.mxu0 0.0
    %3229 = vmatprep.subr.mxu0 0.0
    %3230 = vmatpush2.msra.mxu0 0.0
    %3231 = vmatprep.subr.mxu0 0.0
    %3232 = vmatpush2.msra.mxu0 0.0
    %3233 = vmatprep.subr.mxu0 0.0
    %3234 = vmatpush2.msra.mxu0 0.0
    %3235 = vmatprep.subr.mxu0 0.0
    %3236 = vmatpush2.msra.mxu0 0.0
    %3237 = vmatprep.subr.mxu0 0.0
    %3238 = vmatpush2.msra.mxu0 0.0
    %3239 = vmatprep.subr.mxu0 0.0
    %3240 = vmatpush2.msra.mxu0 0.0
    %3241 = vmatprep.mubr.f32.mxu0 0.0
    %3242 = vmatmul.mubr.f32.gmra.mxu0 %v3175
    %v3243 = vpop.f32.mrf.mxu0
    %v3244 = vadd.f32 0.0, %v3243
    %v3245 = vpop.f32.mrf.mxu0
    %3246 = vdwg.mxu0
    %s3247 = scalar_lea.vmem [#allocation10], 128
    %v3248 = vld [vmem:[%s3247] sm:$0xff]
    %v3249 = vld [vmem:[%s3247 + $0x8] sm:$0xff]
    %v3250 = vld [vmem:[%s3247 + $0x10] sm:$0xff]
    %v3251 = vld [vmem:[%s3247 + $0x18] sm:$0xff]
    %v3253 = vsel %vm99, %v3171, 0
    %v3256 = vsel %vm99, %v3244, 0
    %3258 = vmatprep.subr.mxu0 0.0
    %3259 = vmatpush1.msra.mxu0 0.0
    %3260 = vmatprep.subr.mxu0 0.0
    %3261 = vmatpush1.msra.mxu0 0.0
    %3262 = vmatprep.subr.mxu0 0.0
    %3263 = vmatpush1.msra.mxu0 0.0
    %3264 = vmatprep.subr.mxu0 0.0
    %3265 = vmatpush1.msra.mxu0 0.0
    %3266 = vmatprep.subr.mxu0 0.0
    %3267 = vmatpush1.msra.mxu0 0.0
    %3268 = vmatprep.subr.mxu0 0.0
    %3269 = vmatpush1.msra.mxu0 0.0
    %3270 = vmatprep.subr.mxu0 0.0
    %3271 = vmatpush1.msra.mxu0 0.0
    %3272 = vmatprep.subr.mxu0 0.0
    %3273 = vmatpush1.msra.mxu0 0.0
    %3274 = vmatprep.subr.mxu0 0.0
    %3275 = vmatpush1.msra.mxu0 0.0
    %3276 = vmatprep.subr.mxu0 0.0
    %3277 = vmatpush1.msra.mxu0 0.0
    %3278 = vmatprep.subr.mxu0 0.0
    %3279 = vmatpush1.msra.mxu0 0.0
    %3280 = vmatprep.subr.mxu0 0.0
    %3281 = vmatpush1.msra.mxu0 0.0
    %3282 = vmatprep.subr.mxu0 0.0
    %3283 = vmatpush1.msra.mxu0 %v3251
    %3284 = vmatprep.subr.mxu0 0.0
    %3285 = vmatpush1.msra.mxu0 %v3250
    %3286 = vmatprep.subr.mxu0 0.0
    %3287 = vmatpush1.msra.mxu0 %v3249
    %3288 = vmatprep.subr.mxu0 0.0
    %3289 = vmatpush1.msra.mxu0 %v3248
    %3290 = vmatprep.subr.mxu0 0.0
    %3291 = vmatpush2.msra.mxu0 0.0
    %3292 = vmatprep.subr.mxu0 0.0
    %3293 = vmatpush2.msra.mxu0 0.0
    %3294 = vmatprep.subr.mxu0 0.0
    %3295 = vmatpush2.msra.mxu0 0.0
    %3296 = vmatprep.subr.mxu0 0.0
    %3297 = vmatpush2.msra.mxu0 0.0
    %3298 = vmatprep.subr.mxu0 0.0
    %3299 = vmatpush2.msra.mxu0 0.0
    %3300 = vmatprep.subr.mxu0 0.0
    %3301 = vmatpush2.msra.mxu0 0.0
    %3302 = vmatprep.subr.mxu0 0.0
    %3303 = vmatpush2.msra.mxu0 0.0
    %3304 = vmatprep.subr.mxu0 0.0
    %3305 = vmatpush2.msra.mxu0 0.0
    %3306 = vmatprep.subr.mxu0 0.0
    %3307 = vmatpush2.msra.mxu0 0.0
    %3308 = vmatprep.subr.mxu0 0.0
    %3309 = vmatpush2.msra.mxu0 0.0
    %3310 = vmatprep.subr.mxu0 0.0
    %3311 = vmatpush2.msra.mxu0 0.0
    %3312 = vmatprep.subr.mxu0 0.0
    %3313 = vmatpush2.msra.mxu0 0.0
    %3314 = vmatprep.subr.mxu0 0.0
    %3315 = vmatpush2.msra.mxu0 0.0
    %3316 = vmatprep.subr.mxu0 0.0
    %3317 = vmatpush2.msra.mxu0 0.0
    %3318 = vmatprep.subr.mxu0 0.0
    %3319 = vmatpush2.msra.mxu0 0.0
    %3320 = vmatprep.subr.mxu0 0.0
    %3321 = vmatpush2.msra.mxu0 0.0
    %3322 = vmatprep.mubr.f32.mxu0 0.0
    %3323 = vmatmul.mubr.f32.gmra.mxu0 %v3253
    %v3324 = vpop.f32.mrf.mxu0
    %v3325 = vadd.f32 0.0, %v3324
    %v3326 = vpop.f32.mrf.mxu0
    %3327 = vmatprep.mubr.f32.mxu0 0.0
    %3328 = vmatmul.mubr.f32.gmra.mxu0 %v3256
    %v3329 = vpop.f32.mrf.mxu0
    %v3330 = vadd.f32 0.0, %v3329
    %v3331 = vpop.f32.mrf.mxu0
    %3332 = vdwg.mxu0
    %v3333 = vadd.f32 %v2685, %v3325
    %v3334 = vadd.f32 %v2686, %v3330
    %s3335 = scalar_lea.vmem [#allocation5], 160
    %v3336 = vld [vmem:[%s3335] sm:$0xff]
    %v3337 = vld [vmem:[%s3335 + $0x8] sm:$0xff]
    %v3338 = vld [vmem:[%s3335 + $0x10] sm:$0xff]
    %v3339 = vld [vmem:[%s3335 + $0x18] sm:$0xff]
    %3340 = vmatprep.subr.mxu0 0.0
    %3341 = vmatpush1.msra.mxu0 0.0
    %3342 = vmatprep.subr.mxu0 0.0
    %3343 = vmatpush1.msra.mxu0 0.0
    %3344 = vmatprep.subr.mxu0 0.0
    %3345 = vmatpush1.msra.mxu0 0.0
    %3346 = vmatprep.subr.mxu0 0.0
    %3347 = vmatpush1.msra.mxu0 0.0
    %3348 = vmatprep.subr.mxu0 0.0
    %3349 = vmatpush1.msra.mxu0 0.0
    %3350 = vmatprep.subr.mxu0 0.0
    %3351 = vmatpush1.msra.mxu0 0.0
    %3352 = vmatprep.subr.mxu0 0.0
    %3353 = vmatpush1.msra.mxu0 0.0
    %3354 = vmatprep.subr.mxu0 0.0
    %3355 = vmatpush1.msra.mxu0 0.0
    %3356 = vmatprep.subr.mxu0 0.0
    %3357 = vmatpush1.msra.mxu0 0.0
    %3358 = vmatprep.subr.mxu0 0.0
    %3359 = vmatpush1.msra.mxu0 0.0
    %3360 = vmatprep.subr.mxu0 0.0
    %3361 = vmatpush1.msra.mxu0 0.0
    %3362 = vmatprep.subr.mxu0 0.0
    %3363 = vmatpush1.msra.mxu0 0.0
    %3364 = vmatprep.subr.mxu0 0.0
    %3365 = vmatpush1.msra.mxu0 %v3339
    %3366 = vmatprep.subr.mxu0 0.0
    %3367 = vmatpush1.msra.mxu0 %v3338
    %3368 = vmatprep.subr.mxu0 0.0
    %3369 = vmatpush1.msra.mxu0 %v3337
    %3370 = vmatprep.subr.mxu0 0.0
    %3371 = vmatpush1.msra.mxu0 %v3336
    %3372 = vmatprep.subr.mxu0 0.0
    %3373 = vmatpush2.msra.mxu0 0.0
    %3374 = vmatprep.subr.mxu0 0.0
    %3375 = vmatpush2.msra.mxu0 0.0
    %3376 = vmatprep.subr.mxu0 0.0
    %3377 = vmatpush2.msra.mxu0 0.0
    %3378 = vmatprep.subr.mxu0 0.0
    %3379 = vmatpush2.msra.mxu0 0.0
    %3380 = vmatprep.subr.mxu0 0.0
    %3381 = vmatpush2.msra.mxu0 0.0
    %3382 = vmatprep.subr.mxu0 0.0
    %3383 = vmatpush2.msra.mxu0 0.0
    %3384 = vmatprep.subr.mxu0 0.0
    %3385 = vmatpush2.msra.mxu0 0.0
    %3386 = vmatprep.subr.mxu0 0.0
    %3387 = vmatpush2.msra.mxu0 0.0
    %3388 = vmatprep.subr.mxu0 0.0
    %3389 = vmatpush2.msra.mxu0 0.0
    %3390 = vmatprep.subr.mxu0 0.0
    %3391 = vmatpush2.msra.mxu0 0.0
    %3392 = vmatprep.subr.mxu0 0.0
    %3393 = vmatpush2.msra.mxu0 0.0
    %3394 = vmatprep.subr.mxu0 0.0
    %3395 = vmatpush2.msra.mxu0 0.0
    %3396 = vmatprep.subr.mxu0 0.0
    %3397 = vmatpush2.msra.mxu0 0.0
    %3398 = vmatprep.subr.mxu0 0.0
    %3399 = vmatpush2.msra.mxu0 0.0
    %3400 = vmatprep.subr.mxu0 0.0
    %3401 = vmatpush2.msra.mxu0 0.0
    %3402 = vmatprep.subr.mxu0 0.0
    %3403 = vmatpush2.msra.mxu0 0.0
    %3404 = vmatprep.mubr.f32.mxu0 0.0
    %3405 = vmatmul.mubr.f32.gmra.mxu0 %v101
    %v3406 = vpop.f32.mrf.mxu0
    %v3407 = vadd.f32 0.0, %v3406
    %v3408 = vpop.f32.mrf.mxu0
    %3409 = vmatprep.mubr.f32.mxu0 0.0
    %3410 = vmatmul.mubr.f32.gmra.mxu0 %v104
    %v3411 = vpop.f32.mrf.mxu0
    %v3412 = vadd.f32 0.0, %v3411
    %v3413 = vpop.f32.mrf.mxu0
    %3414 = vdwg.mxu0
    %s3415 = scalar_lea.vmem [#allocation7], 160
    %v3416 = vld [vmem:[%s3415] sm:$0xff]
    %v3417 = vld [vmem:[%s3415 + $0x8] sm:$0xff]
    %v3418 = vld [vmem:[%s3415 + $0x10] sm:$0xff]
    %v3419 = vld [vmem:[%s3415 + $0x18] sm:$0xff]
    %3420 = vmatprep.subr.mxu0 0.0
    %3421 = vmatpush1.msra.mxu0 0.0
    %3422 = vmatprep.subr.mxu0 0.0
    %3423 = vmatpush1.msra.mxu0 0.0
    %3424 = vmatprep.subr.mxu0 0.0
    %3425 = vmatpush1.msra.mxu0 0.0
    %3426 = vmatprep.subr.mxu0 0.0
    %3427 = vmatpush1.msra.mxu0 0.0
    %3428 = vmatprep.subr.mxu0 0.0
    %3429 = vmatpush1.msra.mxu0 0.0
    %3430 = vmatprep.subr.mxu0 0.0
    %3431 = vmatpush1.msra.mxu0 0.0
    %3432 = vmatprep.subr.mxu0 0.0
    %3433 = vmatpush1.msra.mxu0 0.0
    %3434 = vmatprep.subr.mxu0 0.0
    %3435 = vmatpush1.msra.mxu0 0.0
    %3436 = vmatprep.subr.mxu0 0.0
    %3437 = vmatpush1.msra.mxu0 0.0
    %3438 = vmatprep.subr.mxu0 0.0
    %3439 = vmatpush1.msra.mxu0 0.0
    %3440 = vmatprep.subr.mxu0 0.0
    %3441 = vmatpush1.msra.mxu0 0.0
    %3442 = vmatprep.subr.mxu0 0.0
    %3443 = vmatpush1.msra.mxu0 0.0
    %3444 = vmatprep.subr.mxu0 0.0
    %3445 = vmatpush1.msra.mxu0 %v3419
    %3446 = vmatprep.subr.mxu0 0.0
    %3447 = vmatpush1.msra.mxu0 %v3418
    %3448 = vmatprep.subr.mxu0 0.0
    %3449 = vmatpush1.msra.mxu0 %v3417
    %3450 = vmatprep.subr.mxu0 0.0
    %3451 = vmatpush1.msra.mxu0 %v3416
    %3452 = vmatprep.subr.mxu0 0.0
    %3453 = vmatpush2.msra.mxu0 0.0
    %3454 = vmatprep.subr.mxu0 0.0
    %3455 = vmatpush2.msra.mxu0 0.0
    %3456 = vmatprep.subr.mxu0 0.0
    %3457 = vmatpush2.msra.mxu0 0.0
    %3458 = vmatprep.subr.mxu0 0.0
    %3459 = vmatpush2.msra.mxu0 0.0
    %3460 = vmatprep.subr.mxu0 0.0
    %3461 = vmatpush2.msra.mxu0 0.0
    %3462 = vmatprep.subr.mxu0 0.0
    %3463 = vmatpush2.msra.mxu0 0.0
    %3464 = vmatprep.subr.mxu0 0.0
    %3465 = vmatpush2.msra.mxu0 0.0
    %3466 = vmatprep.subr.mxu0 0.0
    %3467 = vmatpush2.msra.mxu0 0.0
    %3468 = vmatprep.subr.mxu0 0.0
    %3469 = vmatpush2.msra.mxu0 0.0
    %3470 = vmatprep.subr.mxu0 0.0
    %3471 = vmatpush2.msra.mxu0 0.0
    %3472 = vmatprep.subr.mxu0 0.0
    %3473 = vmatpush2.msra.mxu0 0.0
    %3474 = vmatprep.subr.mxu0 0.0
    %3475 = vmatpush2.msra.mxu0 0.0
    %3476 = vmatprep.subr.mxu0 0.0
    %3477 = vmatpush2.msra.mxu0 0.0
    %3478 = vmatprep.subr.mxu0 0.0
    %3479 = vmatpush2.msra.mxu0 0.0
    %3480 = vmatprep.subr.mxu0 0.0
    %3481 = vmatpush2.msra.mxu0 0.0
    %3482 = vmatprep.subr.mxu0 0.0
    %3483 = vmatpush2.msra.mxu0 0.0
    %3484 = vmatprep.mubr.f32.mxu0 0.0
    %3485 = vmatmul.mubr.f32.gmra.mxu0 %v101
    %v3486 = vpop.f32.mrf.mxu0
    %v3487 = vadd.f32 0.0, %v3486
    %v3488 = vpop.f32.mrf.mxu0
    %3489 = vmatprep.mubr.f32.mxu0 0.0
    %3490 = vmatmul.mubr.f32.gmra.mxu0 %v104
    %v3491 = vpop.f32.mrf.mxu0
    %v3492 = vadd.f32 0.0, %v3491
    %v3493 = vpop.f32.mrf.mxu0
    %3494 = vdwg.mxu0
    %s3495 = scalar_lea.vmem [#allocation8], 160
    %v3496 = vld [vmem:[%s3495] sm:$0xff]
    %v3497 = vld [vmem:[%s3495 + $0x8] sm:$0xff]
    %v3498 = vld [vmem:[%s3495 + $0x10] sm:$0xff]
    %v3499 = vld [vmem:[%s3495 + $0x18] sm:$0xff]
    %3500 = vmatprep.subr.mxu0 0.0
    %3501 = vmatpush1.msra.mxu0 0.0
    %3502 = vmatprep.subr.mxu0 0.0
    %3503 = vmatpush1.msra.mxu0 0.0
    %3504 = vmatprep.subr.mxu0 0.0
    %3505 = vmatpush1.msra.mxu0 0.0
    %3506 = vmatprep.subr.mxu0 0.0
    %3507 = vmatpush1.msra.mxu0 0.0
    %3508 = vmatprep.subr.mxu0 0.0
    %3509 = vmatpush1.msra.mxu0 0.0
    %3510 = vmatprep.subr.mxu0 0.0
    %3511 = vmatpush1.msra.mxu0 0.0
    %3512 = vmatprep.subr.mxu0 0.0
    %3513 = vmatpush1.msra.mxu0 0.0
    %3514 = vmatprep.subr.mxu0 0.0
    %3515 = vmatpush1.msra.mxu0 0.0
    %3516 = vmatprep.subr.mxu0 0.0
    %3517 = vmatpush1.msra.mxu0 0.0
    %3518 = vmatprep.subr.mxu0 0.0
    %3519 = vmatpush1.msra.mxu0 0.0
    %3520 = vmatprep.subr.mxu0 0.0
    %3521 = vmatpush1.msra.mxu0 0.0
    %3522 = vmatprep.subr.mxu0 0.0
    %3523 = vmatpush1.msra.mxu0 0.0
    %3524 = vmatprep.subr.mxu0 0.0
    %3525 = vmatpush1.msra.mxu0 %v3499
    %3526 = vmatprep.subr.mxu0 0.0
    %3527 = vmatpush1.msra.mxu0 %v3498
    %3528 = vmatprep.subr.mxu0 0.0
    %3529 = vmatpush1.msra.mxu0 %v3497
    %3530 = vmatprep.subr.mxu0 0.0
    %3531 = vmatpush1.msra.mxu0 %v3496
    %3532 = vmatprep.subr.mxu0 0.0
    %3533 = vmatpush2.msra.mxu0 0.0
    %3534 = vmatprep.subr.mxu0 0.0
    %3535 = vmatpush2.msra.mxu0 0.0
    %3536 = vmatprep.subr.mxu0 0.0
    %3537 = vmatpush2.msra.mxu0 0.0
    %3538 = vmatprep.subr.mxu0 0.0
    %3539 = vmatpush2.msra.mxu0 0.0
    %3540 = vmatprep.subr.mxu0 0.0
    %3541 = vmatpush2.msra.mxu0 0.0
    %3542 = vmatprep.subr.mxu0 0.0
    %3543 = vmatpush2.msra.mxu0 0.0
    %3544 = vmatprep.subr.mxu0 0.0
    %3545 = vmatpush2.msra.mxu0 0.0
    %3546 = vmatprep.subr.mxu0 0.0
    %3547 = vmatpush2.msra.mxu0 0.0
    %3548 = vmatprep.subr.mxu0 0.0
    %3549 = vmatpush2.msra.mxu0 0.0
    %3550 = vmatprep.subr.mxu0 0.0
    %3551 = vmatpush2.msra.mxu0 0.0
    %3552 = vmatprep.subr.mxu0 0.0
    %3553 = vmatpush2.msra.mxu0 0.0
    %3554 = vmatprep.subr.mxu0 0.0
    %3555 = vmatpush2.msra.mxu0 0.0
    %3556 = vmatprep.subr.mxu0 0.0
    %3557 = vmatpush2.msra.mxu0 0.0
    %3558 = vmatprep.subr.mxu0 0.0
    %3559 = vmatpush2.msra.mxu0 0.0
    %3560 = vmatprep.subr.mxu0 0.0
    %3561 = vmatpush2.msra.mxu0 0.0
    %3562 = vmatprep.subr.mxu0 0.0
    %3563 = vmatpush2.msra.mxu0 0.0
    %3564 = vmatprep.mubr.f32.mxu0 0.0
    %3565 = vmatmul.mubr.f32.gmra.mxu0 %v101
    %v3566 = vpop.f32.mrf.mxu0
    %v3567 = vadd.f32 0.0, %v3566
    %v3568 = vpop.f32.mrf.mxu0
    %3569 = vmatprep.mubr.f32.mxu0 0.0
    %3570 = vmatmul.mubr.f32.gmra.mxu0 %v104
    %v3571 = vpop.f32.mrf.mxu0
    %v3572 = vadd.f32 0.0, %v3571
    %v3573 = vpop.f32.mrf.mxu0
    %3574 = vdwg.mxu0
    %v3576 = vsel %vm99, %v3407, 0
    %v3579 = vsel %vm99, %v3487, 0
    %3581 = vmatprep.subr.mxu0 0.0
    %3582 = vmatpush1.xpose.msra.mxu0 0.0
    %3583 = vmatprep.subr.mxu0 0.0
    %3584 = vmatpush1.xpose.msra.mxu0 0.0
    %3585 = vmatprep.subr.mxu0 0.0
    %3586 = vmatpush1.xpose.msra.mxu0 0.0
    %3587 = vmatprep.subr.mxu0 0.0
    %3588 = vmatpush1.xpose.msra.mxu0 0.0
    %3589 = vmatprep.subr.mxu0 0.0
    %3590 = vmatpush1.xpose.msra.mxu0 0.0
    %3591 = vmatprep.subr.mxu0 0.0
    %3592 = vmatpush1.xpose.msra.mxu0 0.0
    %3593 = vmatprep.subr.mxu0 0.0
    %3594 = vmatpush1.xpose.msra.mxu0 0.0
    %3595 = vmatprep.subr.mxu0 0.0
    %3596 = vmatpush1.xpose.msra.mxu0 0.0
    %3597 = vmatprep.subr.mxu0 0.0
    %3598 = vmatpush1.xpose.msra.mxu0 0.0
    %3599 = vmatprep.subr.mxu0 0.0
    %3600 = vmatpush1.xpose.msra.mxu0 0.0
    %3601 = vmatprep.subr.mxu0 0.0
    %3602 = vmatpush1.xpose.msra.mxu0 0.0
    %3603 = vmatprep.subr.mxu0 0.0
    %3604 = vmatpush1.xpose.msra.mxu0 0.0
    %3605 = vmatprep.subr.mxu0 0.0
    %3606 = vmatpush1.xpose.msra.mxu0 0.0
    %3607 = vmatprep.subr.mxu0 0.0
    %3608 = vmatpush1.xpose.msra.mxu0 0.0
    %3609 = vmatprep.subr.mxu0 0.0
    %3610 = vmatpush1.xpose.msra.mxu0 0.0
    %3611 = vmatprep.subr.mxu0 0.0
    %3612 = vmatpush1.xpose.msra.mxu0 %v3579
    %3613 = vmatprep.subr.mxu0 0.0
    %3614 = vmatpush2.xpose.msra.mxu0 0.0
    %3615 = vmatprep.subr.mxu0 0.0
    %3616 = vmatpush2.xpose.msra.mxu0 0.0
    %3617 = vmatprep.subr.mxu0 0.0
    %3618 = vmatpush2.xpose.msra.mxu0 0.0
    %3619 = vmatprep.subr.mxu0 0.0
    %3620 = vmatpush2.xpose.msra.mxu0 0.0
    %3621 = vmatprep.subr.mxu0 0.0
    %3622 = vmatpush2.xpose.msra.mxu0 0.0
    %3623 = vmatprep.subr.mxu0 0.0
    %3624 = vmatpush2.xpose.msra.mxu0 0.0
    %3625 = vmatprep.subr.mxu0 0.0
    %3626 = vmatpush2.xpose.msra.mxu0 0.0
    %3627 = vmatprep.subr.mxu0 0.0
    %3628 = vmatpush2.xpose.msra.mxu0 0.0
    %3629 = vmatprep.subr.mxu0 0.0
    %3630 = vmatpush2.xpose.msra.mxu0 0.0
    %3631 = vmatprep.subr.mxu0 0.0
    %3632 = vmatpush2.xpose.msra.mxu0 0.0
    %3633 = vmatprep.subr.mxu0 0.0
    %3634 = vmatpush2.xpose.msra.mxu0 0.0
    %3635 = vmatprep.subr.mxu0 0.0
    %3636 = vmatpush2.xpose.msra.mxu0 0.0
    %3637 = vmatprep.subr.mxu0 0.0
    %3638 = vmatpush2.xpose.msra.mxu0 0.0
    %3639 = vmatprep.subr.mxu0 0.0
    %3640 = vmatpush2.xpose.msra.mxu0 0.0
    %3641 = vmatprep.subr.mxu0 0.0
    %3642 = vmatpush2.xpose.msra.mxu0 0.0
    %3643 = vmatprep.subr.mxu0 0.0
    %3644 = vmatpush2.xpose.msra.mxu0 0.0
    %3645 = vmatprep.mubr.f32.mxu0 0.0
    %3646 = vmatmul.mubr.f32.gmra.mxu0 %v3576
    %v3647 = vpop.f32.mrf.mxu0
    %v3648 = vadd.f32 0.0, %v3647
    %v3649 = vpop.f32.mrf.mxu0
    %3650 = vdwg.mxu0
    %v3652 = vsel %vm99, %v3412, 0
    %v3655 = vsel %vm99, %v3492, 0
    %3657 = vmatprep.subr.mxu0 0.0
    %3658 = vmatpush1.xpose.msra.mxu0 0.0
    %3659 = vmatprep.subr.mxu0 0.0
    %3660 = vmatpush1.xpose.msra.mxu0 0.0
    %3661 = vmatprep.subr.mxu0 0.0
    %3662 = vmatpush1.xpose.msra.mxu0 0.0
    %3663 = vmatprep.subr.mxu0 0.0
    %3664 = vmatpush1.xpose.msra.mxu0 0.0
    %3665 = vmatprep.subr.mxu0 0.0
    %3666 = vmatpush1.xpose.msra.mxu0 0.0
    %3667 = vmatprep.subr.mxu0 0.0
    %3668 = vmatpush1.xpose.msra.mxu0 0.0
    %3669 = vmatprep.subr.mxu0 0.0
    %3670 = vmatpush1.xpose.msra.mxu0 0.0
    %3671 = vmatprep.subr.mxu0 0.0
    %3672 = vmatpush1.xpose.msra.mxu0 0.0
    %3673 = vmatprep.subr.mxu0 0.0
    %3674 = vmatpush1.xpose.msra.mxu0 0.0
    %3675 = vmatprep.subr.mxu0 0.0
    %3676 = vmatpush1.xpose.msra.mxu0 0.0
    %3677 = vmatprep.subr.mxu0 0.0
    %3678 = vmatpush1.xpose.msra.mxu0 0.0
    %3679 = vmatprep.subr.mxu0 0.0
    %3680 = vmatpush1.xpose.msra.mxu0 0.0
    %3681 = vmatprep.subr.mxu0 0.0
    %3682 = vmatpush1.xpose.msra.mxu0 0.0
    %3683 = vmatprep.subr.mxu0 0.0
    %3684 = vmatpush1.xpose.msra.mxu0 0.0
    %3685 = vmatprep.subr.mxu0 0.0
    %3686 = vmatpush1.xpose.msra.mxu0 0.0
    %3687 = vmatprep.subr.mxu0 0.0
    %3688 = vmatpush1.xpose.msra.mxu0 %v3655
    %3689 = vmatprep.subr.mxu0 0.0
    %3690 = vmatpush2.xpose.msra.mxu0 0.0
    %3691 = vmatprep.subr.mxu0 0.0
    %3692 = vmatpush2.xpose.msra.mxu0 0.0
    %3693 = vmatprep.subr.mxu0 0.0
    %3694 = vmatpush2.xpose.msra.mxu0 0.0
    %3695 = vmatprep.subr.mxu0 0.0
    %3696 = vmatpush2.xpose.msra.mxu0 0.0
    %3697 = vmatprep.subr.mxu0 0.0
    %3698 = vmatpush2.xpose.msra.mxu0 0.0
    %3699 = vmatprep.subr.mxu0 0.0
    %3700 = vmatpush2.xpose.msra.mxu0 0.0
    %3701 = vmatprep.subr.mxu0 0.0
    %3702 = vmatpush2.xpose.msra.mxu0 0.0
    %3703 = vmatprep.subr.mxu0 0.0
    %3704 = vmatpush2.xpose.msra.mxu0 0.0
    %3705 = vmatprep.subr.mxu0 0.0
    %3706 = vmatpush2.xpose.msra.mxu0 0.0
    %3707 = vmatprep.subr.mxu0 0.0
    %3708 = vmatpush2.xpose.msra.mxu0 0.0
    %3709 = vmatprep.subr.mxu0 0.0
    %3710 = vmatpush2.xpose.msra.mxu0 0.0
    %3711 = vmatprep.subr.mxu0 0.0
    %3712 = vmatpush2.xpose.msra.mxu0 0.0
    %3713 = vmatprep.subr.mxu0 0.0
    %3714 = vmatpush2.xpose.msra.mxu0 0.0
    %3715 = vmatprep.subr.mxu0 0.0
    %3716 = vmatpush2.xpose.msra.mxu0 0.0
    %3717 = vmatprep.subr.mxu0 0.0
    %3718 = vmatpush2.xpose.msra.mxu0 0.0
    %3719 = vmatprep.subr.mxu0 0.0
    %3720 = vmatpush2.xpose.msra.mxu0 0.0
    %3721 = vmatprep.mubr.f32.mxu0 0.0
    %3722 = vmatmul.mubr.f32.gmra.mxu0 %v3652
    %v3723 = vpop.f32.mrf.mxu0
    %v3724 = vadd.f32 0.0, %v3723
    %v3725 = vpop.f32.mrf.mxu0
    %3726 = vdwg.mxu0
    %v3727 = vsel %vm491, %v3648, -inf
    %3728 = vmax.xlane.f32.xlu0 %v3727
    %v3729 = vpop.xlane.xlu0 %3728
    %v3730 = vsel %vm491, %v3724, -inf
    %3731 = vmax.xlane.f32.xlu0 %v3730
    %v3732 = vpop.xlane.xlu0 %3731
    %v3733 = vsub.f32 %v3648, %v3729
    %v3734 = vsub.f32 %v3724, %v3732
    %v3735 = vmul.f32 %v3733, 1.442695
    %v3736 = vpow.pop %v3735
    %v3737 = vmul.f32 %v3734, 1.442695
    %v3738 = vpow.pop %v3737
    %v3739 = vsel %vm491, %v3736, 0.0
    %3740 = vadd.xlane.f32.xlu0 %v3739
    %v3741 = vpop.xlane.xlu0 %3740
    %v3742 = vsel %vm491, %v3738, 0.0
    %3743 = vadd.xlane.f32.xlu0 %v3742
    %v3744 = vpop.xlane.xlu0 %3743
    %v3745 = vrcp.pop %v3741
    %v3746 = vrcp.pop %v3744
    %v3747 = vmul.f32 %v3736, %v3745
    %v3748 = vmul.f32 %v3738, %v3746
    %v3750 = vsel %vm491, %v3747, 0
    %3752 = vmatprep.subr.mxu0 0.0
    %3753 = vmatpush1.msra.mxu0 0.0
    %3754 = vmatprep.subr.mxu0 0.0
    %3755 = vmatpush1.msra.mxu0 0.0
    %3756 = vmatprep.subr.mxu0 0.0
    %3757 = vmatpush1.msra.mxu0 0.0
    %3758 = vmatprep.subr.mxu0 0.0
    %3759 = vmatpush1.msra.mxu0 0.0
    %3760 = vmatprep.subr.mxu0 0.0
    %3761 = vmatpush1.msra.mxu0 0.0
    %3762 = vmatprep.subr.mxu0 0.0
    %3763 = vmatpush1.msra.mxu0 0.0
    %3764 = vmatprep.subr.mxu0 0.0
    %3765 = vmatpush1.msra.mxu0 0.0
    %3766 = vmatprep.subr.mxu0 0.0
    %3767 = vmatpush1.msra.mxu0 0.0
    %3768 = vmatprep.subr.mxu0 0.0
    %3769 = vmatpush1.msra.mxu0 0.0
    %3770 = vmatprep.subr.mxu0 0.0
    %3771 = vmatpush1.msra.mxu0 0.0
    %3772 = vmatprep.subr.mxu0 0.0
    %3773 = vmatpush1.msra.mxu0 0.0
    %3774 = vmatprep.subr.mxu0 0.0
    %3775 = vmatpush1.msra.mxu0 0.0
    %3776 = vmatprep.subr.mxu0 0.0
    %3777 = vmatpush1.msra.mxu0 0.0
    %3778 = vmatprep.subr.mxu0 0.0
    %3779 = vmatpush1.msra.mxu0 0.0
    %3780 = vmatprep.subr.mxu0 0.0
    %3781 = vmatpush1.msra.mxu0 0.0
    %3782 = vmatprep.subr.mxu0 0.0
    %3783 = vmatpush1.msra.mxu0 %v3567
    %3784 = vmatprep.subr.mxu0 0.0
    %3785 = vmatpush2.msra.mxu0 0.0
    %3786 = vmatprep.subr.mxu0 0.0
    %3787 = vmatpush2.msra.mxu0 0.0
    %3788 = vmatprep.subr.mxu0 0.0
    %3789 = vmatpush2.msra.mxu0 0.0
    %3790 = vmatprep.subr.mxu0 0.0
    %3791 = vmatpush2.msra.mxu0 0.0
    %3792 = vmatprep.subr.mxu0 0.0
    %3793 = vmatpush2.msra.mxu0 0.0
    %3794 = vmatprep.subr.mxu0 0.0
    %3795 = vmatpush2.msra.mxu0 0.0
    %3796 = vmatprep.subr.mxu0 0.0
    %3797 = vmatpush2.msra.mxu0 0.0
    %3798 = vmatprep.subr.mxu0 0.0
    %3799 = vmatpush2.msra.mxu0 0.0
    %3800 = vmatprep.subr.mxu0 0.0
    %3801 = vmatpush2.msra.mxu0 0.0
    %3802 = vmatprep.subr.mxu0 0.0
    %3803 = vmatpush2.msra.mxu0 0.0
    %3804 = vmatprep.subr.mxu0 0.0
    %3805 = vmatpush2.msra.mxu0 0.0
    %3806 = vmatprep.subr.mxu0 0.0
    %3807 = vmatpush2.msra.mxu0 0.0
    %3808 = vmatprep.subr.mxu0 0.0
    %3809 = vmatpush2.msra.mxu0 0.0
    %3810 = vmatprep.subr.mxu0 0.0
    %3811 = vmatpush2.msra.mxu0 0.0
    %3812 = vmatprep.subr.mxu0 0.0
    %3813 = vmatpush2.msra.mxu0 0.0
    %3814 = vmatprep.subr.mxu0 0.0
    %3815 = vmatpush2.msra.mxu0 0.0
    %3816 = vmatprep.mubr.f32.mxu0 0.0
    %3817 = vmatmul.mubr.f32.gmra.mxu0 %v3750
    %v3818 = vpop.f32.mrf.mxu0
    %v3819 = vadd.f32 0.0, %v3818
    %v3820 = vpop.f32.mrf.mxu0
    %3821 = vdwg.mxu0
    %v3823 = vsel %vm491, %v3748, 0
    %3825 = vmatprep.subr.mxu0 0.0
    %3826 = vmatpush1.msra.mxu0 0.0
    %3827 = vmatprep.subr.mxu0 0.0
    %3828 = vmatpush1.msra.mxu0 0.0
    %3829 = vmatprep.subr.mxu0 0.0
    %3830 = vmatpush1.msra.mxu0 0.0
    %3831 = vmatprep.subr.mxu0 0.0
    %3832 = vmatpush1.msra.mxu0 0.0
    %3833 = vmatprep.subr.mxu0 0.0
    %3834 = vmatpush1.msra.mxu0 0.0
    %3835 = vmatprep.subr.mxu0 0.0
    %3836 = vmatpush1.msra.mxu0 0.0
    %3837 = vmatprep.subr.mxu0 0.0
    %3838 = vmatpush1.msra.mxu0 0.0
    %3839 = vmatprep.subr.mxu0 0.0
    %3840 = vmatpush1.msra.mxu0 0.0
    %3841 = vmatprep.subr.mxu0 0.0
    %3842 = vmatpush1.msra.mxu0 0.0
    %3843 = vmatprep.subr.mxu0 0.0
    %3844 = vmatpush1.msra.mxu0 0.0
    %3845 = vmatprep.subr.mxu0 0.0
    %3846 = vmatpush1.msra.mxu0 0.0
    %3847 = vmatprep.subr.mxu0 0.0
    %3848 = vmatpush1.msra.mxu0 0.0
    %3849 = vmatprep.subr.mxu0 0.0
    %3850 = vmatpush1.msra.mxu0 0.0
    %3851 = vmatprep.subr.mxu0 0.0
    %3852 = vmatpush1.msra.mxu0 0.0
    %3853 = vmatprep.subr.mxu0 0.0
    %3854 = vmatpush1.msra.mxu0 0.0
    %3855 = vmatprep.subr.mxu0 0.0
    %3856 = vmatpush1.msra.mxu0 %v3572
    %3857 = vmatprep.subr.mxu0 0.0
    %3858 = vmatpush2.msra.mxu0 0.0
    %3859 = vmatprep.subr.mxu0 0.0
    %3860 = vmatpush2.msra.mxu0 0.0
    %3861 = vmatprep.subr.mxu0 0.0
    %3862 = vmatpush2.msra.mxu0 0.0
    %3863 = vmatprep.subr.mxu0 0.0
    %3864 = vmatpush2.msra.mxu0 0.0
    %3865 = vmatprep.subr.mxu0 0.0
    %3866 = vmatpush2.msra.mxu0 0.0
    %3867 = vmatprep.subr.mxu0 0.0
    %3868 = vmatpush2.msra.mxu0 0.0
    %3869 = vmatprep.subr.mxu0 0.0
    %3870 = vmatpush2.msra.mxu0 0.0
    %3871 = vmatprep.subr.mxu0 0.0
    %3872 = vmatpush2.msra.mxu0 0.0
    %3873 = vmatprep.subr.mxu0 0.0
    %3874 = vmatpush2.msra.mxu0 0.0
    %3875 = vmatprep.subr.mxu0 0.0
    %3876 = vmatpush2.msra.mxu0 0.0
    %3877 = vmatprep.subr.mxu0 0.0
    %3878 = vmatpush2.msra.mxu0 0.0
    %3879 = vmatprep.subr.mxu0 0.0
    %3880 = vmatpush2.msra.mxu0 0.0
    %3881 = vmatprep.subr.mxu0 0.0
    %3882 = vmatpush2.msra.mxu0 0.0
    %3883 = vmatprep.subr.mxu0 0.0
    %3884 = vmatpush2.msra.mxu0 0.0
    %3885 = vmatprep.subr.mxu0 0.0
    %3886 = vmatpush2.msra.mxu0 0.0
    %3887 = vmatprep.subr.mxu0 0.0
    %3888 = vmatpush2.msra.mxu0 0.0
    %3889 = vmatprep.mubr.f32.mxu0 0.0
    %3890 = vmatmul.mubr.f32.gmra.mxu0 %v3823
    %v3891 = vpop.f32.mrf.mxu0
    %v3892 = vadd.f32 0.0, %v3891
    %v3893 = vpop.f32.mrf.mxu0
    %3894 = vdwg.mxu0
    %s3895 = scalar_lea.vmem [#allocation10], 160
    %v3896 = vld [vmem:[%s3895] sm:$0xff]
    %v3897 = vld [vmem:[%s3895 + $0x8] sm:$0xff]
    %v3898 = vld [vmem:[%s3895 + $0x10] sm:$0xff]
    %v3899 = vld [vmem:[%s3895 + $0x18] sm:$0xff]
    %v3901 = vsel %vm99, %v3819, 0
    %v3904 = vsel %vm99, %v3892, 0
    %3906 = vmatprep.subr.mxu0 0.0
    %3907 = vmatpush1.msra.mxu0 0.0
    %3908 = vmatprep.subr.mxu0 0.0
    %3909 = vmatpush1.msra.mxu0 0.0
    %3910 = vmatprep.subr.mxu0 0.0
    %3911 = vmatpush1.msra.mxu0 0.0
    %3912 = vmatprep.subr.mxu0 0.0
    %3913 = vmatpush1.msra.mxu0 0.0
    %3914 = vmatprep.subr.mxu0 0.0
    %3915 = vmatpush1.msra.mxu0 0.0
    %3916 = vmatprep.subr.mxu0 0.0
    %3917 = vmatpush1.msra.mxu0 0.0
    %3918 = vmatprep.subr.mxu0 0.0
    %3919 = vmatpush1.msra.mxu0 0.0
    %3920 = vmatprep.subr.mxu0 0.0
    %3921 = vmatpush1.msra.mxu0 0.0
    %3922 = vmatprep.subr.mxu0 0.0
    %3923 = vmatpush1.msra.mxu0 0.0
    %3924 = vmatprep.subr.mxu0 0.0
    %3925 = vmatpush1.msra.mxu0 0.0
    %3926 = vmatprep.subr.mxu0 0.0
    %3927 = vmatpush1.msra.mxu0 0.0
    %3928 = vmatprep.subr.mxu0 0.0
    %3929 = vmatpush1.msra.mxu0 0.0
    %3930 = vmatprep.subr.mxu0 0.0
    %3931 = vmatpush1.msra.mxu0 %v3899
    %3932 = vmatprep.subr.mxu0 0.0
    %3933 = vmatpush1.msra.mxu0 %v3898
    %3934 = vmatprep.subr.mxu0 0.0
    %3935 = vmatpush1.msra.mxu0 %v3897
    %3936 = vmatprep.subr.mxu0 0.0
    %3937 = vmatpush1.msra.mxu0 %v3896
    %3938 = vmatprep.subr.mxu0 0.0
    %3939 = vmatpush2.msra.mxu0 0.0
    %3940 = vmatprep.subr.mxu0 0.0
    %3941 = vmatpush2.msra.mxu0 0.0
    %3942 = vmatprep.subr.mxu0 0.0
    %3943 = vmatpush2.msra.mxu0 0.0
    %3944 = vmatprep.subr.mxu0 0.0
    %3945 = vmatpush2.msra.mxu0 0.0
    %3946 = vmatprep.subr.mxu0 0.0
    %3947 = vmatpush2.msra.mxu0 0.0
    %3948 = vmatprep.subr.mxu0 0.0
    %3949 = vmatpush2.msra.mxu0 0.0
    %3950 = vmatprep.subr.mxu0 0.0
    %3951 = vmatpush2.msra.mxu0 0.0
    %3952 = vmatprep.subr.mxu0 0.0
    %3953 = vmatpush2.msra.mxu0 0.0
    %3954 = vmatprep.subr.mxu0 0.0
    %3955 = vmatpush2.msra.mxu0 0.0
    %3956 = vmatprep.subr.mxu0 0.0
    %3957 = vmatpush2.msra.mxu0 0.0
    %3958 = vmatprep.subr.mxu0 0.0
    %3959 = vmatpush2.msra.mxu0 0.0
    %3960 = vmatprep.subr.mxu0 0.0
    %3961 = vmatpush2.msra.mxu0 0.0
    %3962 = vmatprep.subr.mxu0 0.0
    %3963 = vmatpush2.msra.mxu0 0.0
    %3964 = vmatprep.subr.mxu0 0.0
    %3965 = vmatpush2.msra.mxu0 0.0
    %3966 = vmatprep.subr.mxu0 0.0
    %3967 = vmatpush2.msra.mxu0 0.0
    %3968 = vmatprep.subr.mxu0 0.0
    %3969 = vmatpush2.msra.mxu0 0.0
    %3970 = vmatprep.mubr.f32.mxu0 0.0
    %3971 = vmatmul.mubr.f32.gmra.mxu0 %v3901
    %v3972 = vpop.f32.mrf.mxu0
    %v3973 = vadd.f32 0.0, %v3972
    %v3974 = vpop.f32.mrf.mxu0
    %3975 = vmatprep.mubr.f32.mxu0 0.0
    %3976 = vmatmul.mubr.f32.gmra.mxu0 %v3904
    %v3977 = vpop.f32.mrf.mxu0
    %v3978 = vadd.f32 0.0, %v3977
    %v3979 = vpop.f32.mrf.mxu0
    %3980 = vdwg.mxu0
    %v3981 = vadd.f32 %v3333, %v3973
    %v3982 = vadd.f32 %v3334, %v3978
    %s3983 = scalar_lea.vmem [#allocation5], 192
    %v3984 = vld [vmem:[%s3983] sm:$0xff]
    %v3985 = vld [vmem:[%s3983 + $0x8] sm:$0xff]
    %v3986 = vld [vmem:[%s3983 + $0x10] sm:$0xff]
    %v3987 = vld [vmem:[%s3983 + $0x18] sm:$0xff]
    %3988 = vmatprep.subr.mxu0 0.0
    %3989 = vmatpush1.msra.mxu0 0.0
    %3990 = vmatprep.subr.mxu0 0.0
    %3991 = vmatpush1.msra.mxu0 0.0
    %3992 = vmatprep.subr.mxu0 0.0
    %3993 = vmatpush1.msra.mxu0 0.0
    %3994 = vmatprep.subr.mxu0 0.0
    %3995 = vmatpush1.msra.mxu0 0.0
    %3996 = vmatprep.subr.mxu0 0.0
    %3997 = vmatpush1.msra.mxu0 0.0
    %3998 = vmatprep.subr.mxu0 0.0
    %3999 = vmatpush1.msra.mxu0 0.0
    %4000 = vmatprep.subr.mxu0 0.0
    %4001 = vmatpush1.msra.mxu0 0.0
    %4002 = vmatprep.subr.mxu0 0.0
    %4003 = vmatpush1.msra.mxu0 0.0
    %4004 = vmatprep.subr.mxu0 0.0
    %4005 = vmatpush1.msra.mxu0 0.0
    %4006 = vmatprep.subr.mxu0 0.0
    %4007 = vmatpush1.msra.mxu0 0.0
    %4008 = vmatprep.subr.mxu0 0.0
    %4009 = vmatpush1.msra.mxu0 0.0
    %4010 = vmatprep.subr.mxu0 0.0
    %4011 = vmatpush1.msra.mxu0 0.0
    %4012 = vmatprep.subr.mxu0 0.0
    %4013 = vmatpush1.msra.mxu0 %v3987
    %4014 = vmatprep.subr.mxu0 0.0
    %4015 = vmatpush1.msra.mxu0 %v3986
    %4016 = vmatprep.subr.mxu0 0.0
    %4017 = vmatpush1.msra.mxu0 %v3985
    %4018 = vmatprep.subr.mxu0 0.0
    %4019 = vmatpush1.msra.mxu0 %v3984
    %4020 = vmatprep.subr.mxu0 0.0
    %4021 = vmatpush2.msra.mxu0 0.0
    %4022 = vmatprep.subr.mxu0 0.0
    %4023 = vmatpush2.msra.mxu0 0.0
    %4024 = vmatprep.subr.mxu0 0.0
    %4025 = vmatpush2.msra.mxu0 0.0
    %4026 = vmatprep.subr.mxu0 0.0
    %4027 = vmatpush2.msra.mxu0 0.0
    %4028 = vmatprep.subr.mxu0 0.0
    %4029 = vmatpush2.msra.mxu0 0.0
    %4030 = vmatprep.subr.mxu0 0.0
    %4031 = vmatpush2.msra.mxu0 0.0
    %4032 = vmatprep.subr.mxu0 0.0
    %4033 = vmatpush2.msra.mxu0 0.0
    %4034 = vmatprep.subr.mxu0 0.0
    %4035 = vmatpush2.msra.mxu0 0.0
    %4036 = vmatprep.subr.mxu0 0.0
    %4037 = vmatpush2.msra.mxu0 0.0
    %4038 = vmatprep.subr.mxu0 0.0
    %4039 = vmatpush2.msra.mxu0 0.0
    %4040 = vmatprep.subr.mxu0 0.0
    %4041 = vmatpush2.msra.mxu0 0.0
    %4042 = vmatprep.subr.mxu0 0.0
    %4043 = vmatpush2.msra.mxu0 0.0
    %4044 = vmatprep.subr.mxu0 0.0
    %4045 = vmatpush2.msra.mxu0 0.0
    %4046 = vmatprep.subr.mxu0 0.0
    %4047 = vmatpush2.msra.mxu0 0.0
    %4048 = vmatprep.subr.mxu0 0.0
    %4049 = vmatpush2.msra.mxu0 0.0
    %4050 = vmatprep.subr.mxu0 0.0
    %4051 = vmatpush2.msra.mxu0 0.0
    %4052 = vmatprep.mubr.f32.mxu0 0.0
    %4053 = vmatmul.mubr.f32.gmra.mxu0 %v101
    %v4054 = vpop.f32.mrf.mxu0
    %v4055 = vadd.f32 0.0, %v4054
    %v4056 = vpop.f32.mrf.mxu0
    %4057 = vmatprep.mubr.f32.mxu0 0.0
    %4058 = vmatmul.mubr.f32.gmra.mxu0 %v104
    %v4059 = vpop.f32.mrf.mxu0
    %v4060 = vadd.f32 0.0, %v4059
    %v4061 = vpop.f32.mrf.mxu0
    %4062 = vdwg.mxu0
    %s4063 = scalar_lea.vmem [#allocation7], 192
    %v4064 = vld [vmem:[%s4063] sm:$0xff]
    %v4065 = vld [vmem:[%s4063 + $0x8] sm:$0xff]
    %v4066 = vld [vmem:[%s4063 + $0x10] sm:$0xff]
    %v4067 = vld [vmem:[%s4063 + $0x18] sm:$0xff]
    %4068 = vmatprep.subr.mxu0 0.0
    %4069 = vmatpush1.msra.mxu0 0.0
    %4070 = vmatprep.subr.mxu0 0.0
    %4071 = vmatpush1.msra.mxu0 0.0
    %4072 = vmatprep.subr.mxu0 0.0
    %4073 = vmatpush1.msra.mxu0 0.0
    %4074 = vmatprep.subr.mxu0 0.0
    %4075 = vmatpush1.msra.mxu0 0.0
    %4076 = vmatprep.subr.mxu0 0.0
    %4077 = vmatpush1.msra.mxu0 0.0
    %4078 = vmatprep.subr.mxu0 0.0
    %4079 = vmatpush1.msra.mxu0 0.0
    %4080 = vmatprep.subr.mxu0 0.0
    %4081 = vmatpush1.msra.mxu0 0.0
    %4082 = vmatprep.subr.mxu0 0.0
    %4083 = vmatpush1.msra.mxu0 0.0
    %4084 = vmatprep.subr.mxu0 0.0
    %4085 = vmatpush1.msra.mxu0 0.0
    %4086 = vmatprep.subr.mxu0 0.0
    %4087 = vmatpush1.msra.mxu0 0.0
    %4088 = vmatprep.subr.mxu0 0.0
    %4089 = vmatpush1.msra.mxu0 0.0
    %4090 = vmatprep.subr.mxu0 0.0
    %4091 = vmatpush1.msra.mxu0 0.0
    %4092 = vmatprep.subr.mxu0 0.0
    %4093 = vmatpush1.msra.mxu0 %v4067
    %4094 = vmatprep.subr.mxu0 0.0
    %4095 = vmatpush1.msra.mxu0 %v4066
    %4096 = vmatprep.subr.mxu0 0.0
    %4097 = vmatpush1.msra.mxu0 %v4065
    %4098 = vmatprep.subr.mxu0 0.0
    %4099 = vmatpush1.msra.mxu0 %v4064
    %4100 = vmatprep.subr.mxu0 0.0
    %4101 = vmatpush2.msra.mxu0 0.0
    %4102 = vmatprep.subr.mxu0 0.0
    %4103 = vmatpush2.msra.mxu0 0.0
    %4104 = vmatprep.subr.mxu0 0.0
    %4105 = vmatpush2.msra.mxu0 0.0
    %4106 = vmatprep.subr.mxu0 0.0
    %4107 = vmatpush2.msra.mxu0 0.0
    %4108 = vmatprep.subr.mxu0 0.0
    %4109 = vmatpush2.msra.mxu0 0.0
    %4110 = vmatprep.subr.mxu0 0.0
    %4111 = vmatpush2.msra.mxu0 0.0
    %4112 = vmatprep.subr.mxu0 0.0
    %4113 = vmatpush2.msra.mxu0 0.0
    %4114 = vmatprep.subr.mxu0 0.0
    %4115 = vmatpush2.msra.mxu0 0.0
    %4116 = vmatprep.subr.mxu0 0.0
    %4117 = vmatpush2.msra.mxu0 0.0
    %4118 = vmatprep.subr.mxu0 0.0
    %4119 = vmatpush2.msra.mxu0 0.0
    %4120 = vmatprep.subr.mxu0 0.0
    %4121 = vmatpush2.msra.mxu0 0.0
    %4122 = vmatprep.subr.mxu0 0.0
    %4123 = vmatpush2.msra.mxu0 0.0
    %4124 = vmatprep.subr.mxu0 0.0
    %4125 = vmatpush2.msra.mxu0 0.0
    %4126 = vmatprep.subr.mxu0 0.0
    %4127 = vmatpush2.msra.mxu0 0.0
    %4128 = vmatprep.subr.mxu0 0.0
    %4129 = vmatpush2.msra.mxu0 0.0
    %4130 = vmatprep.subr.mxu0 0.0
    %4131 = vmatpush2.msra.mxu0 0.0
    %4132 = vmatprep.mubr.f32.mxu0 0.0
    %4133 = vmatmul.mubr.f32.gmra.mxu0 %v101
    %v4134 = vpop.f32.mrf.mxu0
    %v4135 = vadd.f32 0.0, %v4134
    %v4136 = vpop.f32.mrf.mxu0
    %4137 = vmatprep.mubr.f32.mxu0 0.0
    %4138 = vmatmul.mubr.f32.gmra.mxu0 %v104
    %v4139 = vpop.f32.mrf.mxu0
    %v4140 = vadd.f32 0.0, %v4139
    %v4141 = vpop.f32.mrf.mxu0
    %4142 = vdwg.mxu0
    %s4143 = scalar_lea.vmem [#allocation8], 192
    %v4144 = vld [vmem:[%s4143] sm:$0xff]
    %v4145 = vld [vmem:[%s4143 + $0x8] sm:$0xff]
    %v4146 = vld [vmem:[%s4143 + $0x10] sm:$0xff]
    %v4147 = vld [vmem:[%s4143 + $0x18] sm:$0xff]
    %4148 = vmatprep.subr.mxu0 0.0
    %4149 = vmatpush1.msra.mxu0 0.0
    %4150 = vmatprep.subr.mxu0 0.0
    %4151 = vmatpush1.msra.mxu0 0.0
    %4152 = vmatprep.subr.mxu0 0.0
    %4153 = vmatpush1.msra.mxu0 0.0
    %4154 = vmatprep.subr.mxu0 0.0
    %4155 = vmatpush1.msra.mxu0 0.0
    %4156 = vmatprep.subr.mxu0 0.0
    %4157 = vmatpush1.msra.mxu0 0.0
    %4158 = vmatprep.subr.mxu0 0.0
    %4159 = vmatpush1.msra.mxu0 0.0
    %4160 = vmatprep.subr.mxu0 0.0
    %4161 = vmatpush1.msra.mxu0 0.0
    %4162 = vmatprep.subr.mxu0 0.0
    %4163 = vmatpush1.msra.mxu0 0.0
    %4164 = vmatprep.subr.mxu0 0.0
    %4165 = vmatpush1.msra.mxu0 0.0
    %4166 = vmatprep.subr.mxu0 0.0
    %4167 = vmatpush1.msra.mxu0 0.0
    %4168 = vmatprep.subr.mxu0 0.0
    %4169 = vmatpush1.msra.mxu0 0.0
    %4170 = vmatprep.subr.mxu0 0.0
    %4171 = vmatpush1.msra.mxu0 0.0
    %4172 = vmatprep.subr.mxu0 0.0
    %4173 = vmatpush1.msra.mxu0 %v4147
    %4174 = vmatprep.subr.mxu0 0.0
    %4175 = vmatpush1.msra.mxu0 %v4146
    %4176 = vmatprep.subr.mxu0 0.0
    %4177 = vmatpush1.msra.mxu0 %v4145
    %4178 = vmatprep.subr.mxu0 0.0
    %4179 = vmatpush1.msra.mxu0 %v4144
    %4180 = vmatprep.subr.mxu0 0.0
    %4181 = vmatpush2.msra.mxu0 0.0
    %4182 = vmatprep.subr.mxu0 0.0
    %4183 = vmatpush2.msra.mxu0 0.0
    %4184 = vmatprep.subr.mxu0 0.0
    %4185 = vmatpush2.msra.mxu0 0.0
    %4186 = vmatprep.subr.mxu0 0.0
    %4187 = vmatpush2.msra.mxu0 0.0
    %4188 = vmatprep.subr.mxu0 0.0
    %4189 = vmatpush2.msra.mxu0 0.0
    %4190 = vmatprep.subr.mxu0 0.0
    %4191 = vmatpush2.msra.mxu0 0.0
    %4192 = vmatprep.subr.mxu0 0.0
    %4193 = vmatpush2.msra.mxu0 0.0
    %4194 = vmatprep.subr.mxu0 0.0
    %4195 = vmatpush2.msra.mxu0 0.0
    %4196 = vmatprep.subr.mxu0 0.0
    %4197 = vmatpush2.msra.mxu0 0.0
    %4198 = vmatprep.subr.mxu0 0.0
    %4199 = vmatpush2.msra.mxu0 0.0
    %4200 = vmatprep.subr.mxu0 0.0
    %4201 = vmatpush2.msra.mxu0 0.0
    %4202 = vmatprep.subr.mxu0 0.0
    %4203 = vmatpush2.msra.mxu0 0.0
    %4204 = vmatprep.subr.mxu0 0.0
    %4205 = vmatpush2.msra.mxu0 0.0
    %4206 = vmatprep.subr.mxu0 0.0
    %4207 = vmatpush2.msra.mxu0 0.0
    %4208 = vmatprep.subr.mxu0 0.0
    %4209 = vmatpush2.msra.mxu0 0.0
    %4210 = vmatprep.subr.mxu0 0.0
    %4211 = vmatpush2.msra.mxu0 0.0
    %4212 = vmatprep.mubr.f32.mxu0 0.0
    %4213 = vmatmul.mubr.f32.gmra.mxu0 %v101
    %v4214 = vpop.f32.mrf.mxu0
    %v4215 = vadd.f32 0.0, %v4214
    %v4216 = vpop.f32.mrf.mxu0
    %4217 = vmatprep.mubr.f32.mxu0 0.0
    %4218 = vmatmul.mubr.f32.gmra.mxu0 %v104
    %v4219 = vpop.f32.mrf.mxu0
    %v4220 = vadd.f32 0.0, %v4219
    %v4221 = vpop.f32.mrf.mxu0
    %4222 = vdwg.mxu0
    %v4224 = vsel %vm99, %v4055, 0
    %v4227 = vsel %vm99, %v4135, 0
    %4229 = vmatprep.subr.mxu0 0.0
    %4230 = vmatpush1.xpose.msra.mxu0 0.0
    %4231 = vmatprep.subr.mxu0 0.0
    %4232 = vmatpush1.xpose.msra.mxu0 0.0
    %4233 = vmatprep.subr.mxu0 0.0
    %4234 = vmatpush1.xpose.msra.mxu0 0.0
    %4235 = vmatprep.subr.mxu0 0.0
    %4236 = vmatpush1.xpose.msra.mxu0 0.0
    %4237 = vmatprep.subr.mxu0 0.0
    %4238 = vmatpush1.xpose.msra.mxu0 0.0
    %4239 = vmatprep.subr.mxu0 0.0
    %4240 = vmatpush1.xpose.msra.mxu0 0.0
    %4241 = vmatprep.subr.mxu0 0.0
    %4242 = vmatpush1.xpose.msra.mxu0 0.0
    %4243 = vmatprep.subr.mxu0 0.0
    %4244 = vmatpush1.xpose.msra.mxu0 0.0
    %4245 = vmatprep.subr.mxu0 0.0
    %4246 = vmatpush1.xpose.msra.mxu0 0.0
    %4247 = vmatprep.subr.mxu0 0.0
    %4248 = vmatpush1.xpose.msra.mxu0 0.0
    %4249 = vmatprep.subr.mxu0 0.0
    %4250 = vmatpush1.xpose.msra.mxu0 0.0
    %4251 = vmatprep.subr.mxu0 0.0
    %4252 = vmatpush1.xpose.msra.mxu0 0.0
    %4253 = vmatprep.subr.mxu0 0.0
    %4254 = vmatpush1.xpose.msra.mxu0 0.0
    %4255 = vmatprep.subr.mxu0 0.0
    %4256 = vmatpush1.xpose.msra.mxu0 0.0
    %4257 = vmatprep.subr.mxu0 0.0
    %4258 = vmatpush1.xpose.msra.mxu0 0.0
    %4259 = vmatprep.subr.mxu0 0.0
    %4260 = vmatpush1.xpose.msra.mxu0 %v4227
    %4261 = vmatprep.subr.mxu0 0.0
    %4262 = vmatpush2.xpose.msra.mxu0 0.0
    %4263 = vmatprep.subr.mxu0 0.0
    %4264 = vmatpush2.xpose.msra.mxu0 0.0
    %4265 = vmatprep.subr.mxu0 0.0
    %4266 = vmatpush2.xpose.msra.mxu0 0.0
    %4267 = vmatprep.subr.mxu0 0.0
    %4268 = vmatpush2.xpose.msra.mxu0 0.0
    %4269 = vmatprep.subr.mxu0 0.0
    %4270 = vmatpush2.xpose.msra.mxu0 0.0
    %4271 = vmatprep.subr.mxu0 0.0
    %4272 = vmatpush2.xpose.msra.mxu0 0.0
    %4273 = vmatprep.subr.mxu0 0.0
    %4274 = vmatpush2.xpose.msra.mxu0 0.0
    %4275 = vmatprep.subr.mxu0 0.0
    %4276 = vmatpush2.xpose.msra.mxu0 0.0
    %4277 = vmatprep.subr.mxu0 0.0
    %4278 = vmatpush2.xpose.msra.mxu0 0.0
    %4279 = vmatprep.subr.mxu0 0.0
    %4280 = vmatpush2.xpose.msra.mxu0 0.0
    %4281 = vmatprep.subr.mxu0 0.0
    %4282 = vmatpush2.xpose.msra.mxu0 0.0
    %4283 = vmatprep.subr.mxu0 0.0
    %4284 = vmatpush2.xpose.msra.mxu0 0.0
    %4285 = vmatprep.subr.mxu0 0.0
    %4286 = vmatpush2.xpose.msra.mxu0 0.0
    %4287 = vmatprep.subr.mxu0 0.0
    %4288 = vmatpush2.xpose.msra.mxu0 0.0
    %4289 = vmatprep.subr.mxu0 0.0
    %4290 = vmatpush2.xpose.msra.mxu0 0.0
    %4291 = vmatprep.subr.mxu0 0.0
    %4292 = vmatpush2.xpose.msra.mxu0 0.0
    %4293 = vmatprep.mubr.f32.mxu0 0.0
    %4294 = vmatmul.mubr.f32.gmra.mxu0 %v4224
    %v4295 = vpop.f32.mrf.mxu0
    %v4296 = vadd.f32 0.0, %v4295
    %v4297 = vpop.f32.mrf.mxu0
    %4298 = vdwg.mxu0
    %v4300 = vsel %vm99, %v4060, 0
    %v4303 = vsel %vm99, %v4140, 0
    %4305 = vmatprep.subr.mxu0 0.0
    %4306 = vmatpush1.xpose.msra.mxu0 0.0
    %4307 = vmatprep.subr.mxu0 0.0
    %4308 = vmatpush1.xpose.msra.mxu0 0.0
    %4309 = vmatprep.subr.mxu0 0.0
    %4310 = vmatpush1.xpose.msra.mxu0 0.0
    %4311 = vmatprep.subr.mxu0 0.0
    %4312 = vmatpush1.xpose.msra.mxu0 0.0
    %4313 = vmatprep.subr.mxu0 0.0
    %4314 = vmatpush1.xpose.msra.mxu0 0.0
    %4315 = vmatprep.subr.mxu0 0.0
    %4316 = vmatpush1.xpose.msra.mxu0 0.0
    %4317 = vmatprep.subr.mxu0 0.0
    %4318 = vmatpush1.xpose.msra.mxu0 0.0
    %4319 = vmatprep.subr.mxu0 0.0
    %4320 = vmatpush1.xpose.msra.mxu0 0.0
    %4321 = vmatprep.subr.mxu0 0.0
    %4322 = vmatpush1.xpose.msra.mxu0 0.0
    %4323 = vmatprep.subr.mxu0 0.0
    %4324 = vmatpush1.xpose.msra.mxu0 0.0
    %4325 = vmatprep.subr.mxu0 0.0
    %4326 = vmatpush1.xpose.msra.mxu0 0.0
    %4327 = vmatprep.subr.mxu0 0.0
    %4328 = vmatpush1.xpose.msra.mxu0 0.0
    %4329 = vmatprep.subr.mxu0 0.0
    %4330 = vmatpush1.xpose.msra.mxu0 0.0
    %4331 = vmatprep.subr.mxu0 0.0
    %4332 = vmatpush1.xpose.msra.mxu0 0.0
    %4333 = vmatprep.subr.mxu0 0.0
    %4334 = vmatpush1.xpose.msra.mxu0 0.0
    %4335 = vmatprep.subr.mxu0 0.0
    %4336 = vmatpush1.xpose.msra.mxu0 %v4303
    %4337 = vmatprep.subr.mxu0 0.0
    %4338 = vmatpush2.xpose.msra.mxu0 0.0
    %4339 = vmatprep.subr.mxu0 0.0
    %4340 = vmatpush2.xpose.msra.mxu0 0.0
    %4341 = vmatprep.subr.mxu0 0.0
    %4342 = vmatpush2.xpose.msra.mxu0 0.0
    %4343 = vmatprep.subr.mxu0 0.0
    %4344 = vmatpush2.xpose.msra.mxu0 0.0
    %4345 = vmatprep.subr.mxu0 0.0
    %4346 = vmatpush2.xpose.msra.mxu0 0.0
    %4347 = vmatprep.subr.mxu0 0.0
    %4348 = vmatpush2.xpose.msra.mxu0 0.0
    %4349 = vmatprep.subr.mxu0 0.0
    %4350 = vmatpush2.xpose.msra.mxu0 0.0
    %4351 = vmatprep.subr.mxu0 0.0
    %4352 = vmatpush2.xpose.msra.mxu0 0.0
    %4353 = vmatprep.subr.mxu0 0.0
    %4354 = vmatpush2.xpose.msra.mxu0 0.0
    %4355 = vmatprep.subr.mxu0 0.0
    %4356 = vmatpush2.xpose.msra.mxu0 0.0
    %4357 = vmatprep.subr.mxu0 0.0
    %4358 = vmatpush2.xpose.msra.mxu0 0.0
    %4359 = vmatprep.subr.mxu0 0.0
    %4360 = vmatpush2.xpose.msra.mxu0 0.0
    %4361 = vmatprep.subr.mxu0 0.0
    %4362 = vmatpush2.xpose.msra.mxu0 0.0
    %4363 = vmatprep.subr.mxu0 0.0
    %4364 = vmatpush2.xpose.msra.mxu0 0.0
    %4365 = vmatprep.subr.mxu0 0.0
    %4366 = vmatpush2.xpose.msra.mxu0 0.0
    %4367 = vmatprep.subr.mxu0 0.0
    %4368 = vmatpush2.xpose.msra.mxu0 0.0
    %4369 = vmatprep.mubr.f32.mxu0 0.0
    %4370 = vmatmul.mubr.f32.gmra.mxu0 %v4300
    %v4371 = vpop.f32.mrf.mxu0
    %v4372 = vadd.f32 0.0, %v4371
    %v4373 = vpop.f32.mrf.mxu0
    %4374 = vdwg.mxu0
    %v4375 = vsel %vm491, %v4296, -inf
    %4376 = vmax.xlane.f32.xlu0 %v4375
    %v4377 = vpop.xlane.xlu0 %4376
    %v4378 = vsel %vm491, %v4372, -inf
    %4379 = vmax.xlane.f32.xlu0 %v4378
    %v4380 = vpop.xlane.xlu0 %4379
    %v4381 = vsub.f32 %v4296, %v4377
    %v4382 = vsub.f32 %v4372, %v4380
    %v4383 = vmul.f32 %v4381, 1.442695
    %v4384 = vpow.pop %v4383
    %v4385 = vmul.f32 %v4382, 1.442695
    %v4386 = vpow.pop %v4385
    %v4387 = vsel %vm491, %v4384, 0.0
    %4388 = vadd.xlane.f32.xlu0 %v4387
    %v4389 = vpop.xlane.xlu0 %4388
    %v4390 = vsel %vm491, %v4386, 0.0
    %4391 = vadd.xlane.f32.xlu0 %v4390
    %v4392 = vpop.xlane.xlu0 %4391
    %v4393 = vrcp.pop %v4389
    %v4394 = vrcp.pop %v4392
    %v4395 = vmul.f32 %v4384, %v4393
    %v4396 = vmul.f32 %v4386, %v4394
    %v4398 = vsel %vm491, %v4395, 0
    %4400 = vmatprep.subr.mxu0 0.0
    %4401 = vmatpush1.msra.mxu0 0.0
    %4402 = vmatprep.subr.mxu0 0.0
    %4403 = vmatpush1.msra.mxu0 0.0
    %4404 = vmatprep.subr.mxu0 0.0
    %4405 = vmatpush1.msra.mxu0 0.0
    %4406 = vmatprep.subr.mxu0 0.0
    %4407 = vmatpush1.msra.mxu0 0.0
    %4408 = vmatprep.subr.mxu0 0.0
    %4409 = vmatpush1.msra.mxu0 0.0
    %4410 = vmatprep.subr.mxu0 0.0
    %4411 = vmatpush1.msra.mxu0 0.0
    %4412 = vmatprep.subr.mxu0 0.0
    %4413 = vmatpush1.msra.mxu0 0.0
    %4414 = vmatprep.subr.mxu0 0.0
    %4415 = vmatpush1.msra.mxu0 0.0
    %4416 = vmatprep.subr.mxu0 0.0
    %4417 = vmatpush1.msra.mxu0 0.0
    %4418 = vmatprep.subr.mxu0 0.0
    %4419 = vmatpush1.msra.mxu0 0.0
    %4420 = vmatprep.subr.mxu0 0.0
    %4421 = vmatpush1.msra.mxu0 0.0
    %4422 = vmatprep.subr.mxu0 0.0
    %4423 = vmatpush1.msra.mxu0 0.0
    %4424 = vmatprep.subr.mxu0 0.0
    %4425 = vmatpush1.msra.mxu0 0.0
    %4426 = vmatprep.subr.mxu0 0.0
    %4427 = vmatpush1.msra.mxu0 0.0
    %4428 = vmatprep.subr.mxu0 0.0
    %4429 = vmatpush1.msra.mxu0 0.0
    %4430 = vmatprep.subr.mxu0 0.0
    %4431 = vmatpush1.msra.mxu0 %v4215
    %4432 = vmatprep.subr.mxu0 0.0
    %4433 = vmatpush2.msra.mxu0 0.0
    %4434 = vmatprep.subr.mxu0 0.0
    %4435 = vmatpush2.msra.mxu0 0.0
    %4436 = vmatprep.subr.mxu0 0.0
    %4437 = vmatpush2.msra.mxu0 0.0
    %4438 = vmatprep.subr.mxu0 0.0
    %4439 = vmatpush2.msra.mxu0 0.0
    %4440 = vmatprep.subr.mxu0 0.0
    %4441 = vmatpush2.msra.mxu0 0.0
    %4442 = vmatprep.subr.mxu0 0.0
    %4443 = vmatpush2.msra.mxu0 0.0
    %4444 = vmatprep.subr.mxu0 0.0
    %4445 = vmatpush2.msra.mxu0 0.0
    %4446 = vmatprep.subr.mxu0 0.0
    %4447 = vmatpush2.msra.mxu0 0.0
    %4448 = vmatprep.subr.mxu0 0.0
    %4449 = vmatpush2.msra.mxu0 0.0
    %4450 = vmatprep.subr.mxu0 0.0
    %4451 = vmatpush2.msra.mxu0 0.0
    %4452 = vmatprep.subr.mxu0 0.0
    %4453 = vmatpush2.msra.mxu0 0.0
    %4454 = vmatprep.subr.mxu0 0.0
    %4455 = vmatpush2.msra.mxu0 0.0
    %4456 = vmatprep.subr.mxu0 0.0
    %4457 = vmatpush2.msra.mxu0 0.0
    %4458 = vmatprep.subr.mxu0 0.0
    %4459 = vmatpush2.msra.mxu0 0.0
    %4460 = vmatprep.subr.mxu0 0.0
    %4461 = vmatpush2.msra.mxu0 0.0
    %4462 = vmatprep.subr.mxu0 0.0
    %4463 = vmatpush2.msra.mxu0 0.0
    %4464 = vmatprep.mubr.f32.mxu0 0.0
    %4465 = vmatmul.mubr.f32.gmra.mxu0 %v4398
    %v4466 = vpop.f32.mrf.mxu0
    %v4467 = vadd.f32 0.0, %v4466
    %v4468 = vpop.f32.mrf.mxu0
    %4469 = vdwg.mxu0
    %v4471 = vsel %vm491, %v4396, 0
    %4473 = vmatprep.subr.mxu0 0.0
    %4474 = vmatpush1.msra.mxu0 0.0
    %4475 = vmatprep.subr.mxu0 0.0
    %4476 = vmatpush1.msra.mxu0 0.0
    %4477 = vmatprep.subr.mxu0 0.0
    %4478 = vmatpush1.msra.mxu0 0.0
    %4479 = vmatprep.subr.mxu0 0.0
    %4480 = vmatpush1.msra.mxu0 0.0
    %4481 = vmatprep.subr.mxu0 0.0
    %4482 = vmatpush1.msra.mxu0 0.0
    %4483 = vmatprep.subr.mxu0 0.0
    %4484 = vmatpush1.msra.mxu0 0.0
    %4485 = vmatprep.subr.mxu0 0.0
    %4486 = vmatpush1.msra.mxu0 0.0
    %4487 = vmatprep.subr.mxu0 0.0
    %4488 = vmatpush1.msra.mxu0 0.0
    %4489 = vmatprep.subr.mxu0 0.0
    %4490 = vmatpush1.msra.mxu0 0.0
    %4491 = vmatprep.subr.mxu0 0.0
    %4492 = vmatpush1.msra.mxu0 0.0
    %4493 = vmatprep.subr.mxu0 0.0
    %4494 = vmatpush1.msra.mxu0 0.0
    %4495 = vmatprep.subr.mxu0 0.0
    %4496 = vmatpush1.msra.mxu0 0.0
    %4497 = vmatprep.subr.mxu0 0.0
    %4498 = vmatpush1.msra.mxu0 0.0
    %4499 = vmatprep.subr.mxu0 0.0
    %4500 = vmatpush1.msra.mxu0 0.0
    %4501 = vmatprep.subr.mxu0 0.0
    %4502 = vmatpush1.msra.mxu0 0.0
    %4503 = vmatprep.subr.mxu0 0.0
    %4504 = vmatpush1.msra.mxu0 %v4220
    %4505 = vmatprep.subr.mxu0 0.0
    %4506 = vmatpush2.msra.mxu0 0.0
    %4507 = vmatprep.subr.mxu0 0.0
    %4508 = vmatpush2.msra.mxu0 0.0
    %4509 = vmatprep.subr.mxu0 0.0
    %4510 = vmatpush2.msra.mxu0 0.0
    %4511 = vmatprep.subr.mxu0 0.0
    %4512 = vmatpush2.msra.mxu0 0.0
    %4513 = vmatprep.subr.mxu0 0.0
    %4514 = vmatpush2.msra.mxu0 0.0
    %4515 = vmatprep.subr.mxu0 0.0
    %4516 = vmatpush2.msra.mxu0 0.0
    %4517 = vmatprep.subr.mxu0 0.0
    %4518 = vmatpush2.msra.mxu0 0.0
    %4519 = vmatprep.subr.mxu0 0.0
    %4520 = vmatpush2.msra.mxu0 0.0
    %4521 = vmatprep.subr.mxu0 0.0
    %4522 = vmatpush2.msra.mxu0 0.0
    %4523 = vmatprep.subr.mxu0 0.0
    %4524 = vmatpush2.msra.mxu0 0.0
    %4525 = vmatprep.subr.mxu0 0.0
    %4526 = vmatpush2.msra.mxu0 0.0
    %4527 = vmatprep.subr.mxu0 0.0
    %4528 = vmatpush2.msra.mxu0 0.0
    %4529 = vmatprep.subr.mxu0 0.0
    %4530 = vmatpush2.msra.mxu0 0.0
    %4531 = vmatprep.subr.mxu0 0.0
    %4532 = vmatpush2.msra.mxu0 0.0
    %4533 = vmatprep.subr.mxu0 0.0
    %4534 = vmatpush2.msra.mxu0 0.0
    %4535 = vmatprep.subr.mxu0 0.0
    %4536 = vmatpush2.msra.mxu0 0.0
    %4537 = vmatprep.mubr.f32.mxu0 0.0
    %4538 = vmatmul.mubr.f32.gmra.mxu0 %v4471
    %v4539 = vpop.f32.mrf.mxu0
    %v4540 = vadd.f32 0.0, %v4539
    %v4541 = vpop.f32.mrf.mxu0
    %4542 = vdwg.mxu0
    %s4543 = scalar_lea.vmem [#allocation10], 192
    %v4544 = vld [vmem:[%s4543] sm:$0xff]
    %v4545 = vld [vmem:[%s4543 + $0x8] sm:$0xff]
    %v4546 = vld [vmem:[%s4543 + $0x10] sm:$0xff]
    %v4547 = vld [vmem:[%s4543 + $0x18] sm:$0xff]
    %v4549 = vsel %vm99, %v4467, 0
    %v4552 = vsel %vm99, %v4540, 0
    %4554 = vmatprep.subr.mxu0 0.0
    %4555 = vmatpush1.msra.mxu0 0.0
    %4556 = vmatprep.subr.mxu0 0.0
    %4557 = vmatpush1.msra.mxu0 0.0
    %4558 = vmatprep.subr.mxu0 0.0
    %4559 = vmatpush1.msra.mxu0 0.0
    %4560 = vmatprep.subr.mxu0 0.0
    %4561 = vmatpush1.msra.mxu0 0.0
    %4562 = vmatprep.subr.mxu0 0.0
    %4563 = vmatpush1.msra.mxu0 0.0
    %4564 = vmatprep.subr.mxu0 0.0
    %4565 = vmatpush1.msra.mxu0 0.0
    %4566 = vmatprep.subr.mxu0 0.0
    %4567 = vmatpush1.msra.mxu0 0.0
    %4568 = vmatprep.subr.mxu0 0.0
    %4569 = vmatpush1.msra.mxu0 0.0
    %4570 = vmatprep.subr.mxu0 0.0
    %4571 = vmatpush1.msra.mxu0 0.0
    %4572 = vmatprep.subr.mxu0 0.0
    %4573 = vmatpush1.msra.mxu0 0.0
    %4574 = vmatprep.subr.mxu0 0.0
    %4575 = vmatpush1.msra.mxu0 0.0
    %4576 = vmatprep.subr.mxu0 0.0
    %4577 = vmatpush1.msra.mxu0 0.0
    %4578 = vmatprep.subr.mxu0 0.0
    %4579 = vmatpush1.msra.mxu0 %v4547
    %4580 = vmatprep.subr.mxu0 0.0
    %4581 = vmatpush1.msra.mxu0 %v4546
    %4582 = vmatprep.subr.mxu0 0.0
    %4583 = vmatpush1.msra.mxu0 %v4545
    %4584 = vmatprep.subr.mxu0 0.0
    %4585 = vmatpush1.msra.mxu0 %v4544
    %4586 = vmatprep.subr.mxu0 0.0
    %4587 = vmatpush2.msra.mxu0 0.0
    %4588 = vmatprep.subr.mxu0 0.0
    %4589 = vmatpush2.msra.mxu0 0.0
    %4590 = vmatprep.subr.mxu0 0.0
    %4591 = vmatpush2.msra.mxu0 0.0
    %4592 = vmatprep.subr.mxu0 0.0
    %4593 = vmatpush2.msra.mxu0 0.0
    %4594 = vmatprep.subr.mxu0 0.0
    %4595 = vmatpush2.msra.mxu0 0.0
    %4596 = vmatprep.subr.mxu0 0.0
    %4597 = vmatpush2.msra.mxu0 0.0
    %4598 = vmatprep.subr.mxu0 0.0
    %4599 = vmatpush2.msra.mxu0 0.0
    %4600 = vmatprep.subr.mxu0 0.0
    %4601 = vmatpush2.msra.mxu0 0.0
    %4602 = vmatprep.subr.mxu0 0.0
    %4603 = vmatpush2.msra.mxu0 0.0
    %4604 = vmatprep.subr.mxu0 0.0
    %4605 = vmatpush2.msra.mxu0 0.0
    %4606 = vmatprep.subr.mxu0 0.0
    %4607 = vmatpush2.msra.mxu0 0.0
    %4608 = vmatprep.subr.mxu0 0.0
    %4609 = vmatpush2.msra.mxu0 0.0
    %4610 = vmatprep.subr.mxu0 0.0
    %4611 = vmatpush2.msra.mxu0 0.0
    %4612 = vmatprep.subr.mxu0 0.0
    %4613 = vmatpush2.msra.mxu0 0.0
    %4614 = vmatprep.subr.mxu0 0.0
    %4615 = vmatpush2.msra.mxu0 0.0
    %4616 = vmatprep.subr.mxu0 0.0
    %4617 = vmatpush2.msra.mxu0 0.0
    %4618 = vmatprep.mubr.f32.mxu0 0.0
    %4619 = vmatmul.mubr.f32.gmra.mxu0 %v4549
    %v4620 = vpop.f32.mrf.mxu0
    %v4621 = vadd.f32 0.0, %v4620
    %v4622 = vpop.f32.mrf.mxu0
    %4623 = vmatprep.mubr.f32.mxu0 0.0
    %4624 = vmatmul.mubr.f32.gmra.mxu0 %v4552
    %v4625 = vpop.f32.mrf.mxu0
    %v4626 = vadd.f32 0.0, %v4625
    %v4627 = vpop.f32.mrf.mxu0
    %4628 = vdwg.mxu0
    %v4629 = vadd.f32 %v3981, %v4621
    %v4630 = vadd.f32 %v3982, %v4626
    %s4631 = scalar_lea.vmem [#allocation5], 224
    %v4632 = vld [vmem:[%s4631] sm:$0xff]
    %v4633 = vld [vmem:[%s4631 + $0x8] sm:$0xff]
    %v4634 = vld [vmem:[%s4631 + $0x10] sm:$0xff]
    %v4635 = vld [vmem:[%s4631 + $0x18] sm:$0xff]
    %4636 = vmatprep.subr.mxu0 0.0
    %4637 = vmatpush1.msra.mxu0 0.0
    %4638 = vmatprep.subr.mxu0 0.0
    %4639 = vmatpush1.msra.mxu0 0.0
    %4640 = vmatprep.subr.mxu0 0.0
    %4641 = vmatpush1.msra.mxu0 0.0
    %4642 = vmatprep.subr.mxu0 0.0
    %4643 = vmatpush1.msra.mxu0 0.0
    %4644 = vmatprep.subr.mxu0 0.0
    %4645 = vmatpush1.msra.mxu0 0.0
    %4646 = vmatprep.subr.mxu0 0.0
    %4647 = vmatpush1.msra.mxu0 0.0
    %4648 = vmatprep.subr.mxu0 0.0
    %4649 = vmatpush1.msra.mxu0 0.0
    %4650 = vmatprep.subr.mxu0 0.0
    %4651 = vmatpush1.msra.mxu0 0.0
    %4652 = vmatprep.subr.mxu0 0.0
    %4653 = vmatpush1.msra.mxu0 0.0
    %4654 = vmatprep.subr.mxu0 0.0
    %4655 = vmatpush1.msra.mxu0 0.0
    %4656 = vmatprep.subr.mxu0 0.0
    %4657 = vmatpush1.msra.mxu0 0.0
    %4658 = vmatprep.subr.mxu0 0.0
    %4659 = vmatpush1.msra.mxu0 0.0
    %4660 = vmatprep.subr.mxu0 0.0
    %4661 = vmatpush1.msra.mxu0 %v4635
    %4662 = vmatprep.subr.mxu0 0.0
    %4663 = vmatpush1.msra.mxu0 %v4634
    %4664 = vmatprep.subr.mxu0 0.0
    %4665 = vmatpush1.msra.mxu0 %v4633
    %4666 = vmatprep.subr.mxu0 0.0
    %4667 = vmatpush1.msra.mxu0 %v4632
    %4668 = vmatprep.subr.mxu0 0.0
    %4669 = vmatpush2.msra.mxu0 0.0
    %4670 = vmatprep.subr.mxu0 0.0
    %4671 = vmatpush2.msra.mxu0 0.0
    %4672 = vmatprep.subr.mxu0 0.0
    %4673 = vmatpush2.msra.mxu0 0.0
    %4674 = vmatprep.subr.mxu0 0.0
    %4675 = vmatpush2.msra.mxu0 0.0
    %4676 = vmatprep.subr.mxu0 0.0
    %4677 = vmatpush2.msra.mxu0 0.0
    %4678 = vmatprep.subr.mxu0 0.0
    %4679 = vmatpush2.msra.mxu0 0.0
    %4680 = vmatprep.subr.mxu0 0.0
    %4681 = vmatpush2.msra.mxu0 0.0
    %4682 = vmatprep.subr.mxu0 0.0
    %4683 = vmatpush2.msra.mxu0 0.0
    %4684 = vmatprep.subr.mxu0 0.0
    %4685 = vmatpush2.msra.mxu0 0.0
    %4686 = vmatprep.subr.mxu0 0.0
    %4687 = vmatpush2.msra.mxu0 0.0
    %4688 = vmatprep.subr.mxu0 0.0
    %4689 = vmatpush2.msra.mxu0 0.0
    %4690 = vmatprep.subr.mxu0 0.0
    %4691 = vmatpush2.msra.mxu0 0.0
    %4692 = vmatprep.subr.mxu0 0.0
    %4693 = vmatpush2.msra.mxu0 0.0
    %4694 = vmatprep.subr.mxu0 0.0
    %4695 = vmatpush2.msra.mxu0 0.0
    %4696 = vmatprep.subr.mxu0 0.0
    %4697 = vmatpush2.msra.mxu0 0.0
    %4698 = vmatprep.subr.mxu0 0.0
    %4699 = vmatpush2.msra.mxu0 0.0
    %4700 = vmatprep.mubr.f32.mxu0 0.0
    %4701 = vmatmul.mubr.f32.gmra.mxu0 %v101
    %v4702 = vpop.f32.mrf.mxu0
    %v4703 = vadd.f32 0.0, %v4702
    %v4704 = vpop.f32.mrf.mxu0
    %4705 = vmatprep.mubr.f32.mxu0 0.0
    %4706 = vmatmul.mubr.f32.gmra.mxu0 %v104
    %v4707 = vpop.f32.mrf.mxu0
    %v4708 = vadd.f32 0.0, %v4707
    %v4709 = vpop.f32.mrf.mxu0
    %4710 = vdwg.mxu0
    %s4711 = scalar_lea.vmem [#allocation7], 224
    %v4712 = vld [vmem:[%s4711] sm:$0xff]
    %v4713 = vld [vmem:[%s4711 + $0x8] sm:$0xff]
    %v4714 = vld [vmem:[%s4711 + $0x10] sm:$0xff]
    %v4715 = vld [vmem:[%s4711 + $0x18] sm:$0xff]
    %4716 = vmatprep.subr.mxu0 0.0
    %4717 = vmatpush1.msra.mxu0 0.0
    %4718 = vmatprep.subr.mxu0 0.0
    %4719 = vmatpush1.msra.mxu0 0.0
    %4720 = vmatprep.subr.mxu0 0.0
    %4721 = vmatpush1.msra.mxu0 0.0
    %4722 = vmatprep.subr.mxu0 0.0
    %4723 = vmatpush1.msra.mxu0 0.0
    %4724 = vmatprep.subr.mxu0 0.0
    %4725 = vmatpush1.msra.mxu0 0.0
    %4726 = vmatprep.subr.mxu0 0.0
    %4727 = vmatpush1.msra.mxu0 0.0
    %4728 = vmatprep.subr.mxu0 0.0
    %4729 = vmatpush1.msra.mxu0 0.0
    %4730 = vmatprep.subr.mxu0 0.0
    %4731 = vmatpush1.msra.mxu0 0.0
    %4732 = vmatprep.subr.mxu0 0.0
    %4733 = vmatpush1.msra.mxu0 0.0
    %4734 = vmatprep.subr.mxu0 0.0
    %4735 = vmatpush1.msra.mxu0 0.0
    %4736 = vmatprep.subr.mxu0 0.0
    %4737 = vmatpush1.msra.mxu0 0.0
    %4738 = vmatprep.subr.mxu0 0.0
    %4739 = vmatpush1.msra.mxu0 0.0
    %4740 = vmatprep.subr.mxu0 0.0
    %4741 = vmatpush1.msra.mxu0 %v4715
    %4742 = vmatprep.subr.mxu0 0.0
    %4743 = vmatpush1.msra.mxu0 %v4714
    %4744 = vmatprep.subr.mxu0 0.0
    %4745 = vmatpush1.msra.mxu0 %v4713
    %4746 = vmatprep.subr.mxu0 0.0
    %4747 = vmatpush1.msra.mxu0 %v4712
    %4748 = vmatprep.subr.mxu0 0.0
    %4749 = vmatpush2.msra.mxu0 0.0
    %4750 = vmatprep.subr.mxu0 0.0
    %4751 = vmatpush2.msra.mxu0 0.0
    %4752 = vmatprep.subr.mxu0 0.0
    %4753 = vmatpush2.msra.mxu0 0.0
    %4754 = vmatprep.subr.mxu0 0.0
    %4755 = vmatpush2.msra.mxu0 0.0
    %4756 = vmatprep.subr.mxu0 0.0
    %4757 = vmatpush2.msra.mxu0 0.0
    %4758 = vmatprep.subr.mxu0 0.0
    %4759 = vmatpush2.msra.mxu0 0.0
    %4760 = vmatprep.subr.mxu0 0.0
    %4761 = vmatpush2.msra.mxu0 0.0
    %4762 = vmatprep.subr.mxu0 0.0
    %4763 = vmatpush2.msra.mxu0 0.0
    %4764 = vmatprep.subr.mxu0 0.0
    %4765 = vmatpush2.msra.mxu0 0.0
    %4766 = vmatprep.subr.mxu0 0.0
    %4767 = vmatpush2.msra.mxu0 0.0
    %4768 = vmatprep.subr.mxu0 0.0
    %4769 = vmatpush2.msra.mxu0 0.0
    %4770 = vmatprep.subr.mxu0 0.0
    %4771 = vmatpush2.msra.mxu0 0.0
    %4772 = vmatprep.subr.mxu0 0.0
    %4773 = vmatpush2.msra.mxu0 0.0
    %4774 = vmatprep.subr.mxu0 0.0
    %4775 = vmatpush2.msra.mxu0 0.0
    %4776 = vmatprep.subr.mxu0 0.0
    %4777 = vmatpush2.msra.mxu0 0.0
    %4778 = vmatprep.subr.mxu0 0.0
    %4779 = vmatpush2.msra.mxu0 0.0
    %4780 = vmatprep.mubr.f32.mxu0 0.0
    %4781 = vmatmul.mubr.f32.gmra.mxu0 %v101
    %v4782 = vpop.f32.mrf.mxu0
    %v4783 = vadd.f32 0.0, %v4782
    %v4784 = vpop.f32.mrf.mxu0
    %4785 = vmatprep.mubr.f32.mxu0 0.0
    %4786 = vmatmul.mubr.f32.gmra.mxu0 %v104
    %v4787 = vpop.f32.mrf.mxu0
    %v4788 = vadd.f32 0.0, %v4787
    %v4789 = vpop.f32.mrf.mxu0
    %4790 = vdwg.mxu0
    %s4791 = scalar_lea.vmem [#allocation8], 224
    %v4792 = vld [vmem:[%s4791] sm:$0xff]
    %v4793 = vld [vmem:[%s4791 + $0x8] sm:$0xff]
    %v4794 = vld [vmem:[%s4791 + $0x10] sm:$0xff]
    %v4795 = vld [vmem:[%s4791 + $0x18] sm:$0xff]
    %4796 = vmatprep.subr.mxu0 0.0
    %4797 = vmatpush1.msra.mxu0 0.0
    %4798 = vmatprep.subr.mxu0 0.0
    %4799 = vmatpush1.msra.mxu0 0.0
    %4800 = vmatprep.subr.mxu0 0.0
    %4801 = vmatpush1.msra.mxu0 0.0
    %4802 = vmatprep.subr.mxu0 0.0
    %4803 = vmatpush1.msra.mxu0 0.0
    %4804 = vmatprep.subr.mxu0 0.0
    %4805 = vmatpush1.msra.mxu0 0.0
    %4806 = vmatprep.subr.mxu0 0.0
    %4807 = vmatpush1.msra.mxu0 0.0
    %4808 = vmatprep.subr.mxu0 0.0
    %4809 = vmatpush1.msra.mxu0 0.0
    %4810 = vmatprep.subr.mxu0 0.0
    %4811 = vmatpush1.msra.mxu0 0.0
    %4812 = vmatprep.subr.mxu0 0.0
    %4813 = vmatpush1.msra.mxu0 0.0
    %4814 = vmatprep.subr.mxu0 0.0
    %4815 = vmatpush1.msra.mxu0 0.0
    %4816 = vmatprep.subr.mxu0 0.0
    %4817 = vmatpush1.msra.mxu0 0.0
    %4818 = vmatprep.subr.mxu0 0.0
    %4819 = vmatpush1.msra.mxu0 0.0
    %4820 = vmatprep.subr.mxu0 0.0
    %4821 = vmatpush1.msra.mxu0 %v4795
    %4822 = vmatprep.subr.mxu0 0.0
    %4823 = vmatpush1.msra.mxu0 %v4794
    %4824 = vmatprep.subr.mxu0 0.0
    %4825 = vmatpush1.msra.mxu0 %v4793
    %4826 = vmatprep.subr.mxu0 0.0
    %4827 = vmatpush1.msra.mxu0 %v4792
    %4828 = vmatprep.subr.mxu0 0.0
    %4829 = vmatpush2.msra.mxu0 0.0
    %4830 = vmatprep.subr.mxu0 0.0
    %4831 = vmatpush2.msra.mxu0 0.0
    %4832 = vmatprep.subr.mxu0 0.0
    %4833 = vmatpush2.msra.mxu0 0.0
    %4834 = vmatprep.subr.mxu0 0.0
    %4835 = vmatpush2.msra.mxu0 0.0
    %4836 = vmatprep.subr.mxu0 0.0
    %4837 = vmatpush2.msra.mxu0 0.0
    %4838 = vmatprep.subr.mxu0 0.0
    %4839 = vmatpush2.msra.mxu0 0.0
    %4840 = vmatprep.subr.mxu0 0.0
    %4841 = vmatpush2.msra.mxu0 0.0
    %4842 = vmatprep.subr.mxu0 0.0
    %4843 = vmatpush2.msra.mxu0 0.0
    %4844 = vmatprep.subr.mxu0 0.0
    %4845 = vmatpush2.msra.mxu0 0.0
    %4846 = vmatprep.subr.mxu0 0.0
    %4847 = vmatpush2.msra.mxu0 0.0
    %4848 = vmatprep.subr.mxu0 0.0
    %4849 = vmatpush2.msra.mxu0 0.0
    %4850 = vmatprep.subr.mxu0 0.0
    %4851 = vmatpush2.msra.mxu0 0.0
    %4852 = vmatprep.subr.mxu0 0.0
    %4853 = vmatpush2.msra.mxu0 0.0
    %4854 = vmatprep.subr.mxu0 0.0
    %4855 = vmatpush2.msra.mxu0 0.0
    %4856 = vmatprep.subr.mxu0 0.0
    %4857 = vmatpush2.msra.mxu0 0.0
    %4858 = vmatprep.subr.mxu0 0.0
    %4859 = vmatpush2.msra.mxu0 0.0
    %4860 = vmatprep.mubr.f32.mxu0 0.0
    %4861 = vmatmul.mubr.f32.gmra.mxu0 %v101
    %v4862 = vpop.f32.mrf.mxu0
    %v4863 = vadd.f32 0.0, %v4862
    %v4864 = vpop.f32.mrf.mxu0
    %4865 = vmatprep.mubr.f32.mxu0 0.0
    %4866 = vmatmul.mubr.f32.gmra.mxu0 %v104
    %v4867 = vpop.f32.mrf.mxu0
    %v4868 = vadd.f32 0.0, %v4867
    %v4869 = vpop.f32.mrf.mxu0
    %4870 = vdwg.mxu0
    %v4872 = vsel %vm99, %v4703, 0
    %v4875 = vsel %vm99, %v4783, 0
    %4877 = vmatprep.subr.mxu0 0.0
    %4878 = vmatpush1.xpose.msra.mxu0 0.0
    %4879 = vmatprep.subr.mxu0 0.0
    %4880 = vmatpush1.xpose.msra.mxu0 0.0
    %4881 = vmatprep.subr.mxu0 0.0
    %4882 = vmatpush1.xpose.msra.mxu0 0.0
    %4883 = vmatprep.subr.mxu0 0.0
    %4884 = vmatpush1.xpose.msra.mxu0 0.0
    %4885 = vmatprep.subr.mxu0 0.0
    %4886 = vmatpush1.xpose.msra.mxu0 0.0
    %4887 = vmatprep.subr.mxu0 0.0
    %4888 = vmatpush1.xpose.msra.mxu0 0.0
    %4889 = vmatprep.subr.mxu0 0.0
    %4890 = vmatpush1.xpose.msra.mxu0 0.0
    %4891 = vmatprep.subr.mxu0 0.0
    %4892 = vmatpush1.xpose.msra.mxu0 0.0
    %4893 = vmatprep.subr.mxu0 0.0
    %4894 = vmatpush1.xpose.msra.mxu0 0.0
    %4895 = vmatprep.subr.mxu0 0.0
    %4896 = vmatpush1.xpose.msra.mxu0 0.0
    %4897 = vmatprep.subr.mxu0 0.0
    %4898 = vmatpush1.xpose.msra.mxu0 0.0
    %4899 = vmatprep.subr.mxu0 0.0
    %4900 = vmatpush1.xpose.msra.mxu0 0.0
    %4901 = vmatprep.subr.mxu0 0.0
    %4902 = vmatpush1.xpose.msra.mxu0 0.0
    %4903 = vmatprep.subr.mxu0 0.0
    %4904 = vmatpush1.xpose.msra.mxu0 0.0
    %4905 = vmatprep.subr.mxu0 0.0
    %4906 = vmatpush1.xpose.msra.mxu0 0.0
    %4907 = vmatprep.subr.mxu0 0.0
    %4908 = vmatpush1.xpose.msra.mxu0 %v4875
    %4909 = vmatprep.subr.mxu0 0.0
    %4910 = vmatpush2.xpose.msra.mxu0 0.0
    %4911 = vmatprep.subr.mxu0 0.0
    %4912 = vmatpush2.xpose.msra.mxu0 0.0
    %4913 = vmatprep.subr.mxu0 0.0
    %4914 = vmatpush2.xpose.msra.mxu0 0.0
    %4915 = vmatprep.subr.mxu0 0.0
    %4916 = vmatpush2.xpose.msra.mxu0 0.0
    %4917 = vmatprep.subr.mxu0 0.0
    %4918 = vmatpush2.xpose.msra.mxu0 0.0
    %4919 = vmatprep.subr.mxu0 0.0
    %4920 = vmatpush2.xpose.msra.mxu0 0.0
    %4921 = vmatprep.subr.mxu0 0.0
    %4922 = vmatpush2.xpose.msra.mxu0 0.0
    %4923 = vmatprep.subr.mxu0 0.0
    %4924 = vmatpush2.xpose.msra.mxu0 0.0
    %4925 = vmatprep.subr.mxu0 0.0
    %4926 = vmatpush2.xpose.msra.mxu0 0.0
    %4927 = vmatprep.subr.mxu0 0.0
    %4928 = vmatpush2.xpose.msra.mxu0 0.0
    %4929 = vmatprep.subr.mxu0 0.0
    %4930 = vmatpush2.xpose.msra.mxu0 0.0
    %4931 = vmatprep.subr.mxu0 0.0
    %4932 = vmatpush2.xpose.msra.mxu0 0.0
    %4933 = vmatprep.subr.mxu0 0.0
    %4934 = vmatpush2.xpose.msra.mxu0 0.0
    %4935 = vmatprep.subr.mxu0 0.0
    %4936 = vmatpush2.xpose.msra.mxu0 0.0
    %4937 = vmatprep.subr.mxu0 0.0
    %4938 = vmatpush2.xpose.msra.mxu0 0.0
    %4939 = vmatprep.subr.mxu0 0.0
    %4940 = vmatpush2.xpose.msra.mxu0 0.0
    %4941 = vmatprep.mubr.f32.mxu0 0.0
    %4942 = vmatmul.mubr.f32.gmra.mxu0 %v4872
    %v4943 = vpop.f32.mrf.mxu0
    %v4944 = vadd.f32 0.0, %v4943
    %v4945 = vpop.f32.mrf.mxu0
    %4946 = vdwg.mxu0
    %v4948 = vsel %vm99, %v4708, 0
    %v4951 = vsel %vm99, %v4788, 0
    %4953 = vmatprep.subr.mxu0 0.0
    %4954 = vmatpush1.xpose.msra.mxu0 0.0
    %4955 = vmatprep.subr.mxu0 0.0
    %4956 = vmatpush1.xpose.msra.mxu0 0.0
    %4957 = vmatprep.subr.mxu0 0.0
    %4958 = vmatpush1.xpose.msra.mxu0 0.0
    %4959 = vmatprep.subr.mxu0 0.0
    %4960 = vmatpush1.xpose.msra.mxu0 0.0
    %4961 = vmatprep.subr.mxu0 0.0
    %4962 = vmatpush1.xpose.msra.mxu0 0.0
    %4963 = vmatprep.subr.mxu0 0.0
    %4964 = vmatpush1.xpose.msra.mxu0 0.0
    %4965 = vmatprep.subr.mxu0 0.0
    %4966 = vmatpush1.xpose.msra.mxu0 0.0
    %4967 = vmatprep.subr.mxu0 0.0
    %4968 = vmatpush1.xpose.msra.mxu0 0.0
    %4969 = vmatprep.subr.mxu0 0.0
    %4970 = vmatpush1.xpose.msra.mxu0 0.0
    %4971 = vmatprep.subr.mxu0 0.0
    %4972 = vmatpush1.xpose.msra.mxu0 0.0
    %4973 = vmatprep.subr.mxu0 0.0
    %4974 = vmatpush1.xpose.msra.mxu0 0.0
    %4975 = vmatprep.subr.mxu0 0.0
    %4976 = vmatpush1.xpose.msra.mxu0 0.0
    %4977 = vmatprep.subr.mxu0 0.0
    %4978 = vmatpush1.xpose.msra.mxu0 0.0
    %4979 = vmatprep.subr.mxu0 0.0
    %4980 = vmatpush1.xpose.msra.mxu0 0.0
    %4981 = vmatprep.subr.mxu0 0.0
    %4982 = vmatpush1.xpose.msra.mxu0 0.0
    %4983 = vmatprep.subr.mxu0 0.0
    %4984 = vmatpush1.xpose.msra.mxu0 %v4951
    %4985 = vmatprep.subr.mxu0 0.0
    %4986 = vmatpush2.xpose.msra.mxu0 0.0
    %4987 = vmatprep.subr.mxu0 0.0
    %4988 = vmatpush2.xpose.msra.mxu0 0.0
    %4989 = vmatprep.subr.mxu0 0.0
    %4990 = vmatpush2.xpose.msra.mxu0 0.0
    %4991 = vmatprep.subr.mxu0 0.0
    %4992 = vmatpush2.xpose.msra.mxu0 0.0
    %4993 = vmatprep.subr.mxu0 0.0
    %4994 = vmatpush2.xpose.msra.mxu0 0.0
    %4995 = vmatprep.subr.mxu0 0.0
    %4996 = vmatpush2.xpose.msra.mxu0 0.0
    %4997 = vmatprep.subr.mxu0 0.0
    %4998 = vmatpush2.xpose.msra.mxu0 0.0
    %4999 = vmatprep.subr.mxu0 0.0
    %5000 = vmatpush2.xpose.msra.mxu0 0.0
    %5001 = vmatprep.subr.mxu0 0.0
    %5002 = vmatpush2.xpose.msra.mxu0 0.0
    %5003 = vmatprep.subr.mxu0 0.0
    %5004 = vmatpush2.xpose.msra.mxu0 0.0
    %5005 = vmatprep.subr.mxu0 0.0
    %5006 = vmatpush2.xpose.msra.mxu0 0.0
    %5007 = vmatprep.subr.mxu0 0.0
    %5008 = vmatpush2.xpose.msra.mxu0 0.0
    %5009 = vmatprep.subr.mxu0 0.0
    %5010 = vmatpush2.xpose.msra.mxu0 0.0
    %5011 = vmatprep.subr.mxu0 0.0
    %5012 = vmatpush2.xpose.msra.mxu0 0.0
    %5013 = vmatprep.subr.mxu0 0.0
    %5014 = vmatpush2.xpose.msra.mxu0 0.0
    %5015 = vmatprep.subr.mxu0 0.0
    %5016 = vmatpush2.xpose.msra.mxu0 0.0
    %5017 = vmatprep.mubr.f32.mxu0 0.0
    %5018 = vmatmul.mubr.f32.gmra.mxu0 %v4948
    %v5019 = vpop.f32.mrf.mxu0
    %v5020 = vadd.f32 0.0, %v5019
    %v5021 = vpop.f32.mrf.mxu0
    %5022 = vdwg.mxu0
    %v5023 = vsel %vm491, %v4944, -inf
    %5024 = vmax.xlane.f32.xlu0 %v5023
    %v5025 = vpop.xlane.xlu0 %5024
    %v5026 = vsel %vm491, %v5020, -inf
    %5027 = vmax.xlane.f32.xlu0 %v5026
    %v5028 = vpop.xlane.xlu0 %5027
    %v5029 = vsub.f32 %v4944, %v5025
    %v5030 = vsub.f32 %v5020, %v5028
    %v5031 = vmul.f32 %v5029, 1.442695
    %v5032 = vpow.pop %v5031
    %v5033 = vmul.f32 %v5030, 1.442695
    %v5034 = vpow.pop %v5033
    %v5035 = vsel %vm491, %v5032, 0.0
    %5036 = vadd.xlane.f32.xlu0 %v5035
    %v5037 = vpop.xlane.xlu0 %5036
    %v5038 = vsel %vm491, %v5034, 0.0
    %5039 = vadd.xlane.f32.xlu0 %v5038
    %v5040 = vpop.xlane.xlu0 %5039
    %v5041 = vrcp.pop %v5037
    %v5042 = vrcp.pop %v5040
    %v5043 = vmul.f32 %v5032, %v5041
    %v5044 = vmul.f32 %v5034, %v5042
    %v5046 = vsel %vm491, %v5043, 0
    %5048 = vmatprep.subr.mxu0 0.0
    %5049 = vmatpush1.msra.mxu0 0.0
    %5050 = vmatprep.subr.mxu0 0.0
    %5051 = vmatpush1.msra.mxu0 0.0
    %5052 = vmatprep.subr.mxu0 0.0
    %5053 = vmatpush1.msra.mxu0 0.0
    %5054 = vmatprep.subr.mxu0 0.0
    %5055 = vmatpush1.msra.mxu0 0.0
    %5056 = vmatprep.subr.mxu0 0.0
    %5057 = vmatpush1.msra.mxu0 0.0
    %5058 = vmatprep.subr.mxu0 0.0
    %5059 = vmatpush1.msra.mxu0 0.0
    %5060 = vmatprep.subr.mxu0 0.0
    %5061 = vmatpush1.msra.mxu0 0.0
    %5062 = vmatprep.subr.mxu0 0.0
    %5063 = vmatpush1.msra.mxu0 0.0
    %5064 = vmatprep.subr.mxu0 0.0
    %5065 = vmatpush1.msra.mxu0 0.0
    %5066 = vmatprep.subr.mxu0 0.0
    %5067 = vmatpush1.msra.mxu0 0.0
    %5068 = vmatprep.subr.mxu0 0.0
    %5069 = vmatpush1.msra.mxu0 0.0
    %5070 = vmatprep.subr.mxu0 0.0
    %5071 = vmatpush1.msra.mxu0 0.0
    %5072 = vmatprep.subr.mxu0 0.0
    %5073 = vmatpush1.msra.mxu0 0.0
    %5074 = vmatprep.subr.mxu0 0.0
    %5075 = vmatpush1.msra.mxu0 0.0
    %5076 = vmatprep.subr.mxu0 0.0
    %5077 = vmatpush1.msra.mxu0 0.0
    %5078 = vmatprep.subr.mxu0 0.0
    %5079 = vmatpush1.msra.mxu0 %v4863
    %5080 = vmatprep.subr.mxu0 0.0
    %5081 = vmatpush2.msra.mxu0 0.0
    %5082 = vmatprep.subr.mxu0 0.0
    %5083 = vmatpush2.msra.mxu0 0.0
    %5084 = vmatprep.subr.mxu0 0.0
    %5085 = vmatpush2.msra.mxu0 0.0
    %5086 = vmatprep.subr.mxu0 0.0
    %5087 = vmatpush2.msra.mxu0 0.0
    %5088 = vmatprep.subr.mxu0 0.0
    %5089 = vmatpush2.msra.mxu0 0.0
    %5090 = vmatprep.subr.mxu0 0.0
    %5091 = vmatpush2.msra.mxu0 0.0
    %5092 = vmatprep.subr.mxu0 0.0
    %5093 = vmatpush2.msra.mxu0 0.0
    %5094 = vmatprep.subr.mxu0 0.0
    %5095 = vmatpush2.msra.mxu0 0.0
    %5096 = vmatprep.subr.mxu0 0.0
    %5097 = vmatpush2.msra.mxu0 0.0
    %5098 = vmatprep.subr.mxu0 0.0
    %5099 = vmatpush2.msra.mxu0 0.0
    %5100 = vmatprep.subr.mxu0 0.0
    %5101 = vmatpush2.msra.mxu0 0.0
    %5102 = vmatprep.subr.mxu0 0.0
    %5103 = vmatpush2.msra.mxu0 0.0
    %5104 = vmatprep.subr.mxu0 0.0
    %5105 = vmatpush2.msra.mxu0 0.0
    %5106 = vmatprep.subr.mxu0 0.0
    %5107 = vmatpush2.msra.mxu0 0.0
    %5108 = vmatprep.subr.mxu0 0.0
    %5109 = vmatpush2.msra.mxu0 0.0
    %5110 = vmatprep.subr.mxu0 0.0
    %5111 = vmatpush2.msra.mxu0 0.0
    %5112 = vmatprep.mubr.f32.mxu0 0.0
    %5113 = vmatmul.mubr.f32.gmra.mxu0 %v5046
    %v5114 = vpop.f32.mrf.mxu0
    %v5115 = vadd.f32 0.0, %v5114
    %v5116 = vpop.f32.mrf.mxu0
    %5117 = vdwg.mxu0
    %v5119 = vsel %vm491, %v5044, 0
    %5121 = vmatprep.subr.mxu0 0.0
    %5122 = vmatpush1.msra.mxu0 0.0
    %5123 = vmatprep.subr.mxu0 0.0
    %5124 = vmatpush1.msra.mxu0 0.0
    %5125 = vmatprep.subr.mxu0 0.0
    %5126 = vmatpush1.msra.mxu0 0.0
    %5127 = vmatprep.subr.mxu0 0.0
    %5128 = vmatpush1.msra.mxu0 0.0
    %5129 = vmatprep.subr.mxu0 0.0
    %5130 = vmatpush1.msra.mxu0 0.0
    %5131 = vmatprep.subr.mxu0 0.0
    %5132 = vmatpush1.msra.mxu0 0.0
    %5133 = vmatprep.subr.mxu0 0.0
    %5134 = vmatpush1.msra.mxu0 0.0
    %5135 = vmatprep.subr.mxu0 0.0
    %5136 = vmatpush1.msra.mxu0 0.0
    %5137 = vmatprep.subr.mxu0 0.0
    %5138 = vmatpush1.msra.mxu0 0.0
    %5139 = vmatprep.subr.mxu0 0.0
    %5140 = vmatpush1.msra.mxu0 0.0
    %5141 = vmatprep.subr.mxu0 0.0
    %5142 = vmatpush1.msra.mxu0 0.0
    %5143 = vmatprep.subr.mxu0 0.0
    %5144 = vmatpush1.msra.mxu0 0.0
    %5145 = vmatprep.subr.mxu0 0.0
    %5146 = vmatpush1.msra.mxu0 0.0
    %5147 = vmatprep.subr.mxu0 0.0
    %5148 = vmatpush1.msra.mxu0 0.0
    %5149 = vmatprep.subr.mxu0 0.0
    %5150 = vmatpush1.msra.mxu0 0.0
    %5151 = vmatprep.subr.mxu0 0.0
    %5152 = vmatpush1.msra.mxu0 %v4868
    %5153 = vmatprep.subr.mxu0 0.0
    %5154 = vmatpush2.msra.mxu0 0.0
    %5155 = vmatprep.subr.mxu0 0.0
    %5156 = vmatpush2.msra.mxu0 0.0
    %5157 = vmatprep.subr.mxu0 0.0
    %5158 = vmatpush2.msra.mxu0 0.0
    %5159 = vmatprep.subr.mxu0 0.0
    %5160 = vmatpush2.msra.mxu0 0.0
    %5161 = vmatprep.subr.mxu0 0.0
    %5162 = vmatpush2.msra.mxu0 0.0
    %5163 = vmatprep.subr.mxu0 0.0
    %5164 = vmatpush2.msra.mxu0 0.0
    %5165 = vmatprep.subr.mxu0 0.0
    %5166 = vmatpush2.msra.mxu0 0.0
    %5167 = vmatprep.subr.mxu0 0.0
    %5168 = vmatpush2.msra.mxu0 0.0
    %5169 = vmatprep.subr.mxu0 0.0
    %5170 = vmatpush2.msra.mxu0 0.0
    %5171 = vmatprep.subr.mxu0 0.0
    %5172 = vmatpush2.msra.mxu0 0.0
    %5173 = vmatprep.subr.mxu0 0.0
    %5174 = vmatpush2.msra.mxu0 0.0
    %5175 = vmatprep.subr.mxu0 0.0
    %5176 = vmatpush2.msra.mxu0 0.0
    %5177 = vmatprep.subr.mxu0 0.0
    %5178 = vmatpush2.msra.mxu0 0.0
    %5179 = vmatprep.subr.mxu0 0.0
    %5180 = vmatpush2.msra.mxu0 0.0
    %5181 = vmatprep.subr.mxu0 0.0
    %5182 = vmatpush2.msra.mxu0 0.0
    %5183 = vmatprep.subr.mxu0 0.0
    %5184 = vmatpush2.msra.mxu0 0.0
    %5185 = vmatprep.mubr.f32.mxu0 0.0
    %5186 = vmatmul.mubr.f32.gmra.mxu0 %v5119
    %v5187 = vpop.f32.mrf.mxu0
    %v5188 = vadd.f32 0.0, %v5187
    %v5189 = vpop.f32.mrf.mxu0
    %5190 = vdwg.mxu0
    %s5191 = scalar_lea.vmem [#allocation10], 224
    %v5192 = vld [vmem:[%s5191] sm:$0xff]
    %v5193 = vld [vmem:[%s5191 + $0x8] sm:$0xff]
    %v5194 = vld [vmem:[%s5191 + $0x10] sm:$0xff]
    %v5195 = vld [vmem:[%s5191 + $0x18] sm:$0xff]
    %v5197 = vsel %vm99, %v5115, 0
    %v5200 = vsel %vm99, %v5188, 0
    %5202 = vmatprep.subr.mxu0 0.0
    %5203 = vmatpush1.msra.mxu0 0.0
    %5204 = vmatprep.subr.mxu0 0.0
    %5205 = vmatpush1.msra.mxu0 0.0
    %5206 = vmatprep.subr.mxu0 0.0
    %5207 = vmatpush1.msra.mxu0 0.0
    %5208 = vmatprep.subr.mxu0 0.0
    %5209 = vmatpush1.msra.mxu0 0.0
    %5210 = vmatprep.subr.mxu0 0.0
    %5211 = vmatpush1.msra.mxu0 0.0
    %5212 = vmatprep.subr.mxu0 0.0
    %5213 = vmatpush1.msra.mxu0 0.0
    %5214 = vmatprep.subr.mxu0 0.0
    %5215 = vmatpush1.msra.mxu0 0.0
    %5216 = vmatprep.subr.mxu0 0.0
    %5217 = vmatpush1.msra.mxu0 0.0
    %5218 = vmatprep.subr.mxu0 0.0
    %5219 = vmatpush1.msra.mxu0 0.0
    %5220 = vmatprep.subr.mxu0 0.0
    %5221 = vmatpush1.msra.mxu0 0.0
    %5222 = vmatprep.subr.mxu0 0.0
    %5223 = vmatpush1.msra.mxu0 0.0
    %5224 = vmatprep.subr.mxu0 0.0
    %5225 = vmatpush1.msra.mxu0 0.0
    %5226 = vmatprep.subr.mxu0 0.0
    %5227 = vmatpush1.msra.mxu0 %v5195
    %5228 = vmatprep.subr.mxu0 0.0
    %5229 = vmatpush1.msra.mxu0 %v5194
    %5230 = vmatprep.subr.mxu0 0.0
    %5231 = vmatpush1.msra.mxu0 %v5193
    %5232 = vmatprep.subr.mxu0 0.0
    %5233 = vmatpush1.msra.mxu0 %v5192
    %5234 = vmatprep.subr.mxu0 0.0
    %5235 = vmatpush2.msra.mxu0 0.0
    %5236 = vmatprep.subr.mxu0 0.0
    %5237 = vmatpush2.msra.mxu0 0.0
    %5238 = vmatprep.subr.mxu0 0.0
    %5239 = vmatpush2.msra.mxu0 0.0
    %5240 = vmatprep.subr.mxu0 0.0
    %5241 = vmatpush2.msra.mxu0 0.0
    %5242 = vmatprep.subr.mxu0 0.0
    %5243 = vmatpush2.msra.mxu0 0.0
    %5244 = vmatprep.subr.mxu0 0.0
    %5245 = vmatpush2.msra.mxu0 0.0
    %5246 = vmatprep.subr.mxu0 0.0
    %5247 = vmatpush2.msra.mxu0 0.0
    %5248 = vmatprep.subr.mxu0 0.0
    %5249 = vmatpush2.msra.mxu0 0.0
    %5250 = vmatprep.subr.mxu0 0.0
    %5251 = vmatpush2.msra.mxu0 0.0
    %5252 = vmatprep.subr.mxu0 0.0
    %5253 = vmatpush2.msra.mxu0 0.0
    %5254 = vmatprep.subr.mxu0 0.0
    %5255 = vmatpush2.msra.mxu0 0.0
    %5256 = vmatprep.subr.mxu0 0.0
    %5257 = vmatpush2.msra.mxu0 0.0
    %5258 = vmatprep.subr.mxu0 0.0
    %5259 = vmatpush2.msra.mxu0 0.0
    %5260 = vmatprep.subr.mxu0 0.0
    %5261 = vmatpush2.msra.mxu0 0.0
    %5262 = vmatprep.subr.mxu0 0.0
    %5263 = vmatpush2.msra.mxu0 0.0
    %5264 = vmatprep.subr.mxu0 0.0
    %5265 = vmatpush2.msra.mxu0 0.0
    %5266 = vmatprep.mubr.f32.mxu0 0.0
    %5267 = vmatmul.mubr.f32.gmra.mxu0 %v5197
    %v5268 = vpop.f32.mrf.mxu0
    %v5269 = vadd.f32 0.0, %v5268
    %v5270 = vpop.f32.mrf.mxu0
    %5271 = vmatprep.mubr.f32.mxu0 0.0
    %5272 = vmatmul.mubr.f32.gmra.mxu0 %v5200
    %v5273 = vpop.f32.mrf.mxu0
    %v5274 = vadd.f32 0.0, %v5273
    %v5275 = vpop.f32.mrf.mxu0
    %5276 = vdwg.mxu0
    %v5277 = vadd.f32 %v4629, %v5269
    %v5278 = vadd.f32 %v4630, %v5274
    %v5280 = vlaneseq
    %v5281 = vshrl.u32 %v5280, 7
    %v5282 = vsub.s32 0, %v5281
    %v5283 = vrot.slane %v94, %v5282
    %v5285 = vadd.f32 %v5277, %v5283
    %v5286 = vadd.f32 %v5278, %v5283
    %5287 = vst.msk [vmem:[#allocation11] sm:$0xff] %vm99, %v5285
    %5288 = vst.msk [vmem:[#allocation11 + $0x8] sm:$0xff] %vm99, %v5286
    // Predicated region
    $region46: #{tpu_custom_call.1} parent=1 // pred_check
      _
    $region47: #{tpu_custom_call.1} parent=1 // pred_check_branch
      %5290 = sbr.rel (0) target = $region49
    $region48: #{tpu_custom_call.1} parent=1 // pred_region
      %s5292 = ssub.s32 256, 256
      %5293 = vsyncadd [#allocation4], %s5292
      %s5294 = sshll.u32 [#allocation11], 4
      %s5295 = int_to_ptr.vmem [resolvable:$true] %s5294
      %5300 = dma.vmem_to_hbm [thread:$0]  %s5295, 256, %s6, [#allocation4], 128, 128, 8
    $region49: #{tpu_custom_call.1} parent=1 // pred_fallthru
      _
    // Predicated region
    $region50: #{tpu_custom_call.1} parent=1 // pred_check
      _
    $region51: #{tpu_custom_call.1} parent=1 // pred_check_branch
      %5302 = sbr.rel (0) target = $region53
    $region52: #{tpu_custom_call.1} parent=1 // pred_region
      %5303 = dma.done [#allocation4], 256
    $region53: #{tpu_custom_call.1} parent=1 // pred_fallthru
      _
    %5304 = vsyncpa [#allocation3], 1
    %5305 = vsyncpa [#allocation6], 1
    %5306 = vsyncpa [#allocation9], 1
    %5307 = vsyncpa [#allocation4], 1

</llo_original>
